<compile_context>
chip_gen: v7x
topology: tpu7x:2x2x1
jax: 0.10.0
libtpu: 0.0.40
codegen_flags: <defaults>
</compile_context>

<pallas_src>
import jax
import jax.numpy as jnp
from jax.experimental import pallas as pl
from jax.experimental.pallas import tpu as pltpu

BN_EPS = 1e-5
K1, C1 = 4, 30           # conv1: 4x4 kernel, 1 -> 30 channels
K2, C2 = 2, 10           # conv2: 2x2 kernel, 30 -> 10 channels
IN_H = IN_W = 28         # AvgPool2d(24).view(N, 10) requires 28x28 inputs
OH1 = IN_H - K1 + 1      # 25
OW1 = IN_W - K1 + 1      # 25
OH2 = OH1 - K2 + 1       # 24
OW2 = OW1 - K2 + 1       # 24
F1 = C1 * OW1            # 750 : conv1 features, f = c*25 + x
F1PAD = 768              # 6*128, lane-dense feature axis
KIM = K1 * IN_W          # 112 : fused conv1 contraction depth (dy, xin)
KPAD = 128               # lane-dense contraction
C2PAD = 128              # lane-dense logit/output axis
GRAN = 16                # batch-tile granularity (bf16 sublane tile = 16)
B_MAX = 32               # 32*25 = 800 GEMM rows per block, ~8 MiB VMEM

_DOT_DTYPE = jnp.bfloat16   # MXU operand dtype (jnp.float32 = exact, slower)


# --------------------------- Pallas kernels ---------------------------------

def _bn_stats_kernel(lhs_ref, t_ref, sum_ref, sq_ref):
    """Pass 1: per-block partial sum / sum-of-squares of the (bias-free)
    conv1 pre-activation, written as a lane/sublane-dense (8, 768) slab."""
    raw = jnp.dot(lhs_ref[...], t_ref[...],
                  preferred_element_type=jnp.float32)      # (B*25, 768) f32
    # (B*25, 768) -> (B*25/8, 8, 768): pure vreg regrouping (inner dim = 8
    # sublanes), reduced over the leading dim with plain vector adds.  The
    # final 8-row fold happens in the wrapper.
    raw3 = raw.reshape(-1, 8, F1PAD)
    sum_ref[...] = jnp.sum(raw3, axis=0)                   # (8, 768)
    sq_ref[...] = jnp.sum(raw3 * raw3, axis=0)             # (8, 768)


def _fused_fwd_kernel(lhs_ref, t_ref, scale_ref, shift_ref, s_ref, v_ref,
                      b2_ref, out_ref):
    """Pass 2: conv1 -> BN -> ReLU -> conv2 -> AvgPool2d(24) -> softmax for a
    block of B images (conv1 bias is folded into shift_ref)."""
    raw = jnp.dot(lhs_ref[...], t_ref[...],
                  preferred_element_type=jnp.float32)      # (B*25, 768) f32
    a = jnp.maximum(raw * scale_ref[...] + shift_ref[...], 0.0)
    ab = a.astype(_DOT_DTYPE)
    # Per-image y-window column sums on the MXU via 0/1 selection matrices
    # (replaces 2x24 cross-sublane row-adds on the VPU/XLU).
    r0 = jnp.dot(s_ref[0], ab, preferred_element_type=jnp.float32)  # (B, 768)
    r1 = jnp.dot(s_ref[1], ab, preferred_element_type=jnp.float32)  # (B, 768)
    # conv2 + AvgPool fused by linearity into the tiny V contraction.
    logits = (jnp.dot(r0.astype(_DOT_DTYPE), v_ref[0],
                      preferred_element_type=jnp.float32)
              + jnp.dot(r1.astype(_DOT_DTYPE), v_ref[1],
                        preferred_element_type=jnp.float32)
              + b2_ref[...])                               # (B, 128) f32
    # Padded lanes carry bias -1e30 -> exp() == 0, so the 10-way softmax is
    # unchanged while the store stays 128 lanes wide (no vst.msk).
    z = logits - jnp.max(logits, axis=1, keepdims=True)
    e = jnp.exp(z)
    out_ref[...] = e / jnp.sum(e, axis=1, keepdims=True)


# ------------------------ host-side constant folding -------------------------

def _build_conv1_matrix(w1):
    """T[dy*28 + xin, c*25 + x] = w1[c,0,dy,xin-x] if 0 <= xin-x < K1,
    zero-padded to (128, 768)."""
    xin = jnp.arange(IN_W)[:, None]                        # (28, 1)
    xout = jnp.arange(OW1)[None, :]                        # (1, 25)
    d = xin - xout                                         # (28, 25)
    valid = (d >= 0) & (d < K1)
    dcl = jnp.clip(d, 0, K1 - 1)
    taps = w1[:, 0, :, :]                                  # (C1, K1dy, K1dx)
    t = taps[:, :, dcl]                                    # (C1, K1, 28, 25)
    t = jnp.where(valid[None, None], t, 0.0)
    t = jnp.transpose(t, (1, 2, 0, 3)).reshape(KIM, F1)    # (112, 750)
    t = jnp.pad(t, ((0, KPAD - KIM), (0, F1PAD - F1)))
    return t.astype(_DOT_DTYPE)


def _build_conv2_pool_matrix(w2):
    """V[dy, c*25+x, o] = sum_dx [dx <= x < dx+24] * w2[o,c,dy,dx] / 576,
    zero-padded to (2, 768, 128)."""
    x = jnp.arange(OW1)[None, :]                           # (1, 25)
    dx = jnp.arange(K2)[:, None]                           # (2, 1)
    mask = ((x >= dx) & (x < dx + OW2)).astype(w2.dtype)   # (2, 25)
    v = jnp.einsum('kx,ocdk->dcxo', mask, w2) / float(OH2 * OW2)
    v = v.reshape(K2, F1, C2)
    v = jnp.pad(v, ((0, 0), (0, F1PAD - F1), (0, C2PAD - C2)))
    return v.astype(_DOT_DTYPE)


def _build_pool_select(bsz):
    """S[0/1, b, b*25 + y] = 1 for y in [0,24) / [1,25): per-image y-window
    row-sum matrices for the MXU pooling reduction."""
    rows = jnp.arange(bsz * OH1)
    b_of = rows // OH1
    y_of = rows % OH1
    onehot = (b_of[None, :] == jnp.arange(bsz)[:, None]).astype(jnp.float32)
    s0 = onehot * (y_of < OH2).astype(jnp.float32)[None, :]
    s1 = onehot * (y_of >= 1).astype(jnp.float32)[None, :]
    return jnp.stack([s0, s1]).astype(_DOT_DTYPE)          # (2, B, B*25)


# ----------------------------- wrapper ---------------------------------------

def rede_legal_forward(img_nchw, w1, b1, gamma, beta, w2, b2):
    n, cin, h, w = img_nchw.shape
    assert cin == 1 and h == IN_H and w == IN_W, \
        "AvgPool2d(24).view(N, 10) requires (N, 1, 28, 28) inputs"
    f32 = jnp.float32

    # --- batch tiling: B images per grid step ---------------------------------
    n_g = -(-n // GRAN) * GRAN
    if n_g >= B_MAX:
        bsz = B_MAX
        n_pad = -(-n // bsz) * bsz
    else:
        bsz = n_g
        n_pad = n_g
    num_blocks = n_pad // bsz
    m_rows = bsz * OH1                                     # GEMM M per block

    # --- host-side operand prep (XLA ops, tiny) --------------------------------
    img = img_nchw[:, 0, :, :].astype(f32)
    if n_pad > n:
        img = jnp.concatenate(
            [img, jnp.zeros((n_pad - n, IN_H, IN_W), f32)], axis=0)
    # dy-only im2col: fuses the 4 dy-shifted conv1 GEMMs into one K=112 GEMM.
    lhs = jnp.concatenate([img[:, dy:dy + OH1, :] for dy in range(K1)], axis=-1)
    lhs = jnp.pad(lhs, ((0, 0), (0, 0), (0, KPAD - KIM)))
    lhs = lhs.reshape(n_pad * OH1, KPAD).astype(_DOT_DTYPE)  # (N_pad*25, 128)

    t_mat = _build_conv1_matrix(w1.astype(f32))            # (128, 768)
    v_mat = _build_conv2_pool_matrix(w2.astype(f32))       # (2, 768, 128)
    s_mat = _build_pool_select(bsz)                        # (2, B, B*25)
    b1f = b1.astype(f32)
    b2_pad = jnp.full((1, C2PAD), -1e30, f32).at[0, :C2].set(b2.astype(f32))

    lhs_spec = pl.BlockSpec((m_rows, KPAD), lambda i: (i, 0))
    t_spec = pl.BlockSpec((KPAD, F1PAD), lambda i: (0, 0))

    # ---- pass 1: BatchNorm batch statistics (training mode) ------------------
    flops1 = 2 * n_pad * OH1 * KPAD * F1PAD + 3 * n_pad * OH1 * F1PAD
    bytes1 = (n_pad * OH1 * KPAD * 2 + KPAD * F1PAD * 2
              + 2 * num_blocks * 8 * F1PAD * 4)
    part_sum, part_sq = pl.pallas_call(
        _bn_stats_kernel,
        grid=(num_blocks,),
        in_specs=[lhs_spec, t_spec],
        out_specs=(pl.BlockSpec((8, F1PAD), lambda i: (i, 0)),
                   pl.BlockSpec((8, F1PAD), lambda i: (i, 0))),
        out_shape=(jax.ShapeDtypeStruct((num_blocks * 8, F1PAD), f32),
                   jax.ShapeDtypeStruct((num_blocks * 8, F1PAD), f32)),
        compiler_params=pltpu.CompilerParams(
            dimension_semantics=("parallel",)),   # per-block partials: v7x 2-TC
        cost_estimate=pl.CostEstimate(flops=flops1, transcendentals=0,
                                      bytes_accessed=bytes1),
    )(lhs, t_mat)

    m = float(n * OH1 * OW1)                               # true count / channel
    raw_sum_c = part_sum.sum(axis=0)[:F1].reshape(C1, OW1).sum(axis=1)
    raw_sq_c = part_sq.sum(axis=0)[:F1].reshape(C1, OW1).sum(axis=1)
    # Fold the conv1 bias analytically (kernel statistics are bias-free so the
    # zero-padded batch rows contribute exactly nothing):
    sum_c = raw_sum_c + m * b1f
    sq_c = raw_sq_c + 2.0 * b1f * raw_sum_c + m * b1f * b1f
    mean = sum_c / m
    var = jnp.maximum(sq_c / m - mean * mean, 0.0)         # cancellation guard
    scale = gamma.astype(f32) * jax.lax.rsqrt(var + BN_EPS)
    shift = beta.astype(f32) + (b1f - mean) * scale        # conv1 bias folded in
    scale_flat = jnp.pad(jnp.repeat(scale, OW1), (0, F1PAD - F1))[None, :]
    shift_flat = jnp.pad(jnp.repeat(shift, OW1), (0, F1PAD - F1))[None, :]
    # TODO(synk): running_mean / running_var buffer updates (a training-mode
    # side effect that does not change the forward output) are not reproduced.

    # ---- pass 2: fused conv1 + BN + ReLU + conv2 + AvgPool(24) + softmax ------
    flops2 = (2 * n_pad * OH1 * KPAD * F1PAD               # conv1 GEMM
              + 4 * n_pad * OH1 * F1PAD                    # BN + ReLU
              + 4 * bsz * n_pad * OH1 * F1PAD              # pooling GEMMs
              + 4 * n_pad * F1PAD * C2PAD)                 # V GEMMs
    bytes2 = (n_pad * OH1 * KPAD * 2 + KPAD * F1PAD * 2 + 2 * F1PAD * 4
              + 2 * bsz * m_rows * 2 + 2 * F1PAD * C2PAD * 2
              + C2PAD * 4 + n_pad * C2PAD * 4)
    out = pl.pallas_call(
        _fused_fwd_kernel,
        grid=(num_blocks,),
        in_specs=[lhs_spec, t_spec,
                  pl.BlockSpec((1, F1PAD), lambda i: (0, 0)),
                  pl.BlockSpec((1, F1PAD), lambda i: (0, 0)),
                  pl.BlockSpec((2, bsz, m_rows), lambda i: (0, 0, 0)),
                  pl.BlockSpec((2, F1PAD, C2PAD), lambda i: (0, 0, 0)),
                  pl.BlockSpec((1, C2PAD), lambda i: (0, 0))],
        out_specs=pl.BlockSpec((bsz, C2PAD), lambda i: (i, 0)),
        out_shape=jax.ShapeDtypeStruct((n_pad, C2PAD), f32),
        compiler_params=pltpu.CompilerParams(
            dimension_semantics=("parallel",)),
        cost_estimate=pl.CostEstimate(flops=flops2,
                                      transcendentals=n_pad * C2PAD,
                                      bytes_accessed=bytes2),
    )(lhs, t_mat, scale_flat, shift_flat, s_mat, v_mat, b2_pad)
    return out[:n, :C2]


# --------------------------- pure-JAX reference ------------------------------

def rede_legal_reference(img_nchw, w1, b1, gamma, beta, w2, b2):
    dn = ('NCHW', 'OIHW', 'NCHW')
    out = jax.lax.conv_general_dilated(img_nchw, w1, (1, 1), 'VALID',
                                       dimension_numbers=dn)
    out = out + b1[None, :, None, None]
    mean = jnp.mean(out, axis=(0, 2, 3), keepdims=True)
    var = jnp.mean((out - mean) ** 2, axis=(0, 2, 3), keepdims=True)
    out = (out - mean) / jnp.sqrt(var + BN_EPS)
    out = out * gamma[None, :, None, None] + beta[None, :, None, None]
    out = jnp.maximum(out, 0.0)
    out = jax.lax.conv_general_dilated(out, w2, (1, 1), 'VALID',
                                       dimension_numbers=dn)
    out = out + b2[None, :, None, None]
    pooled = jnp.mean(out, axis=(2, 3))                    # AvgPool2d(24)
    z = pooled - jnp.max(pooled, axis=1, keepdims=True)
    e = jnp.exp(z)
    return e / jnp.sum(e, axis=1, keepdims=True)


if __name__ == "__main__":
    key = jax.random.PRNGKey(0)
    kx, k1, k2, k3, k4 = jax.random.split(key, 5)

    x = jax.random.normal(kx, (2, 1, IN_H, IN_W), jnp.float32)
    w1 = jax.random.normal(k1, (C1, 1, K1, K1), jnp.float32) * 0.25
    b1 = jax.random.normal(k2, (C1,), jnp.float32) * 0.1
    w2 = jax.random.normal(k3, (C2, C1, K2, K2), jnp.float32) * 0.09
    b2 = jax.random.normal(k4, (C2,), jnp.float32) * 0.1
    gamma = jnp.ones((C1,), jnp.float32)    # BatchNorm2d default affine init
    beta = jnp.zeros((C1,), jnp.float32)

    out = jax.jit(rede_legal_forward)(x, w1, b1, gamma, beta, w2, b2)
    out = jax.block_until_ready(out)

    ref = rede_legal_reference(x, w1, b1, gamma, beta, w2, b2)
    assert out.shape == (2, C2)
    # bf16 MXU operands -> loose but structure-verifying tolerance vs the f32
    # reference; softmax itself is f32 so rows still sum to 1 tightly.
    assert bool(jnp.allclose(out, ref, rtol=5e-2, atol=5e-3)), (out, ref)
    assert bool(jnp.allclose(jnp.sum(out, axis=1), 1.0, atol=1e-5))
    print("KERNEL_OK")
</pallas_src>

<mosaic_0001>
module attributes {stable_mosaic.version = 11 : i64} {
  func.func @_bn_stats_kernel(%arg0: i32, %arg1: memref<400x128xbf16, #tpu.memory_space<vmem>>, %arg2: memref<128x768xbf16, #tpu.memory_space<vmem>>, %arg3: memref<8x768xf32, #tpu.memory_space<vmem>>, %arg4: memref<8x768xf32, #tpu.memory_space<vmem>>) attributes {dimension_semantics = [#tpu.dimension_semantics<parallel>], iteration_bounds = array<i64: 1>, scalar_prefetch = 0 : i64, scratch_operands = 0 : i64, tpu.core_type = #tpu.core_type<tc>, window_params = [{transform_indices = @transform_0, window_bounds = array<i64: 400, 128>}, {pipeline_mode = #tpu.pipeline_mode<synchronous>, transform_indices = @transform_1, window_bounds = array<i64: 128, 768>}, {transform_indices = @transform_2, window_bounds = array<i64: 8, 768>}, {transform_indices = @transform_3, window_bounds = array<i64: 8, 768>}]} {
    %c0 = arith.constant 0 : index
    %c0_0 = arith.constant 0 : index
    %0 = vector.load %arg1[%c0, %c0_0] : memref<400x128xbf16, #tpu.memory_space<vmem>>, vector<400x128xbf16>
    %c0_1 = arith.constant 0 : index
    %c0_2 = arith.constant 0 : index
    %1 = vector.load %arg2[%c0_1, %c0_2] : memref<128x768xbf16, #tpu.memory_space<vmem>>, vector<128x768xbf16>
    %cst = arith.constant dense<0.000000e+00> : vector<400x768xf32>
    %2 = tpu.matmul %0, %1, %cst {dimension_numbers = #tpu.dot_dimension_numbers<[1], [0], [0], [1], [0, 0, 1, 1], [], []>} : vector<400x128xbf16>, vector<128x768xbf16>, vector<400x768xf32> -> vector<400x768xf32>
    %3 = vector.shape_cast %2 : vector<400x768xf32> to vector<50x8x768xf32>
    %cst_3 = arith.constant dense<0.000000e+00> : vector<8x768xf32>
    %4 = vector.multi_reduction <add>, %3, %cst_3 [0] : vector<50x8x768xf32> to vector<8x768xf32>
    %c0_4 = arith.constant 0 : index
    %c0_5 = arith.constant 0 : index
    %5 = vector.load %arg3[%c0_4, %c0_5] : memref<8x768xf32, #tpu.memory_space<vmem>>, vector<8x768xf32>
    tpu.vector_store %arg3[%c0_4, %c0_5], %4 {strides = array<i32>} : memref<8x768xf32, #tpu.memory_space<vmem>>, vector<8x768xf32>,
    %6 = arith.mulf %3, %3 : vector<50x8x768xf32>
    %cst_6 = arith.constant dense<0.000000e+00> : vector<8x768xf32>
    %7 = vector.multi_reduction <add>, %6, %cst_6 [0] : vector<50x8x768xf32> to vector<8x768xf32>
    %c0_7 = arith.constant 0 : index
    %c0_8 = arith.constant 0 : index
    %8 = vector.load %arg4[%c0_7, %c0_8] : memref<8x768xf32, #tpu.memory_space<vmem>>, vector<8x768xf32>
    tpu.vector_store %arg4[%c0_7, %c0_8], %7 {strides = array<i32>} : memref<8x768xf32, #tpu.memory_space<vmem>>, vector<8x768xf32>,
    return
  }
  func.func @transform_0(%arg0: i32) -> (i32, i32) {
    %c0_i32 = arith.constant 0 : i32
    %c0_i32_0 = arith.constant 0 : i32
    return %arg0, %c0_i32 : i32, i32
  }
  func.func @transform_1(%arg0: i32) -> (i32, i32) {
    %c0_i32 = arith.constant 0 : i32
    %c0_i32_0 = arith.constant 0 : i32
    %c0_i32_1 = arith.constant 0 : i32
    return %c0_i32, %c0_i32_0 : i32, i32
  }
  func.func @transform_2(%arg0: i32) -> (i32, i32) {
    %c0_i32 = arith.constant 0 : i32
    %c0_i32_0 = arith.constant 0 : i32
    return %arg0, %c0_i32 : i32, i32
  }
  func.func @transform_3(%arg0: i32) -> (i32, i32) {
    %c0_i32 = arith.constant 0 : i32
    %c0_i32_0 = arith.constant 0 : i32
    return %arg0, %c0_i32 : i32, i32
  }
}

module attributes {stable_mosaic.version = 11 : i64} {
  func.func @_fused_fwd_kernel(%arg0: i32, %arg1: memref<400x128xbf16, #tpu.memory_space<vmem>>, %arg2: memref<128x768xbf16, #tpu.memory_space<vmem>>, %arg3: memref<1x768xf32, #tpu.memory_space<vmem>>, %arg4: memref<1x768xf32, #tpu.memory_space<vmem>>, %arg5: memref<2x16x400xbf16, #tpu.memory_space<vmem>>, %arg6: memref<2x768x128xbf16, #tpu.memory_space<vmem>>, %arg7: memref<1x128xf32, #tpu.memory_space<vmem>>, %arg8: memref<16x128xf32, #tpu.memory_space<vmem>>) attributes {dimension_semantics = [#tpu.dimension_semantics<parallel>], iteration_bounds = array<i64: 1>, scalar_prefetch = 0 : i64, scratch_operands = 0 : i64, tpu.core_type = #tpu.core_type<tc>, window_params = [{transform_indices = @transform_0, window_bounds = array<i64: 400, 128>}, {pipeline_mode = #tpu.pipeline_mode<synchronous>, transform_indices = @transform_1, window_bounds = array<i64: 128, 768>}, {pipeline_mode = #tpu.pipeline_mode<synchronous>, transform_indices = @transform_2, window_bounds = array<i64: 1, 768>}, {pipeline_mode = #tpu.pipeline_mode<synchronous>, transform_indices = @transform_3, window_bounds = array<i64: 1, 768>}, {pipeline_mode = #tpu.pipeline_mode<synchronous>, transform_indices = @transform_4, window_bounds = array<i64: 2, 16, 400>}, {pipeline_mode = #tpu.pipeline_mode<synchronous>, transform_indices = @transform_5, window_bounds = array<i64: 2, 768, 128>}, {pipeline_mode = #tpu.pipeline_mode<synchronous>, transform_indices = @transform_6, window_bounds = array<i64: 1, 128>}, {transform_indices = @transform_7, window_bounds = array<i64: 16, 128>}]} {
    %c0 = arith.constant 0 : index
    %c0_0 = arith.constant 0 : index
    %0 = vector.load %arg1[%c0, %c0_0] : memref<400x128xbf16, #tpu.memory_space<vmem>>, vector<400x128xbf16>
    %c0_1 = arith.constant 0 : index
    %c0_2 = arith.constant 0 : index
    %1 = vector.load %arg2[%c0_1, %c0_2] : memref<128x768xbf16, #tpu.memory_space<vmem>>, vector<128x768xbf16>
    %cst = arith.constant dense<0.000000e+00> : vector<400x768xf32>
    %2 = tpu.matmul %0, %1, %cst {dimension_numbers = #tpu.dot_dimension_numbers<[1], [0], [0], [1], [0, 0, 1, 1], [], []>} : vector<400x128xbf16>, vector<128x768xbf16>, vector<400x768xf32> -> vector<400x768xf32>
    %c0_3 = arith.constant 0 : index
    %c0_4 = arith.constant 0 : index
    %3 = vector.load %arg3[%c0_3, %c0_4] : memref<1x768xf32, #tpu.memory_space<vmem>>, vector<1x768xf32>
    %4 = vector.broadcast %3 : vector<1x768xf32> to vector<400x768xf32>
    %5 = arith.mulf %2, %4 : vector<400x768xf32>
    %c0_5 = arith.constant 0 : index
    %c0_6 = arith.constant 0 : index
    %6 = vector.load %arg4[%c0_5, %c0_6] : memref<1x768xf32, #tpu.memory_space<vmem>>, vector<1x768xf32>
    %7 = vector.broadcast %6 : vector<1x768xf32> to vector<400x768xf32>
    %8 = arith.addf %5, %7 : vector<400x768xf32>
    %cst_7 = arith.constant 0.000000e+00 : f32
    %9 = vector.broadcast %cst_7 : f32 to vector<400x768xf32>
    %10 = arith.maximumf %8, %9 : vector<400x768xf32>
    %11 = arith.truncf %10 : vector<400x768xf32> to vector<400x768xbf16>
    %c0_8 = arith.constant 0 : index
    %c0_9 = arith.constant 0 : index
    %c0_10 = arith.constant 0 : index
    %12 = vector.load %arg5[%c0_8, %c0_9, %c0_10] : memref<2x16x400xbf16, #tpu.memory_space<vmem>>, vector<1x16x400xbf16>
    %13 = vector.shape_cast %12 : vector<1x16x400xbf16> to vector<16x400xbf16>
    %cst_11 = arith.constant dense<0.000000e+00> : vector<16x768xf32>
    %14 = tpu.matmul %13, %11, %cst_11 {dimension_numbers = #tpu.dot_dimension_numbers<[1], [0], [0], [1], [0, 0, 1, 1], [], []>} : vector<16x400xbf16>, vector<400x768xbf16>, vector<16x768xf32> -> vector<16x768xf32>
    %c1 = arith.constant 1 : index
    %c0_12 = arith.constant 0 : index
    %c0_13 = arith.constant 0 : index
    %15 = vector.load %arg5[%c1, %c0_12, %c0_13] : memref<2x16x400xbf16, #tpu.memory_space<vmem>>, vector<1x16x400xbf16>
    %16 = vector.shape_cast %15 : vector<1x16x400xbf16> to vector<16x400xbf16>
    %cst_14 = arith.constant dense<0.000000e+00> : vector<16x768xf32>
    %17 = tpu.matmul %16, %11, %cst_14 {dimension_numbers = #tpu.dot_dimension_numbers<[1], [0], [0], [1], [0, 0, 1, 1], [], []>} : vector<16x400xbf16>, vector<400x768xbf16>, vector<16x768xf32> -> vector<16x768xf32>
    %18 = arith.truncf %14 : vector<16x768xf32> to vector<16x768xbf16>
    %c0_15 = arith.constant 0 : index
    %c0_16 = arith.constant 0 : index
    %c0_17 = arith.constant 0 : index
    %19 = vector.load %arg6[%c0_15, %c0_16, %c0_17] : memref<2x768x128xbf16, #tpu.memory_space<vmem>>, vector<1x768x128xbf16>
    %20 = vector.shape_cast %19 : vector<1x768x128xbf16> to vector<768x128xbf16>
    %cst_18 = arith.constant dense<0.000000e+00> : vector<16x128xf32>
    %21 = tpu.matmul %18, %20, %cst_18 {dimension_numbers = #tpu.dot_dimension_numbers<[1], [0], [0], [1], [0, 0, 1, 1], [], []>} : vector<16x768xbf16>, vector<768x128xbf16>, vector<16x128xf32> -> vector<16x128xf32>
    %22 = arith.truncf %17 : vector<16x768xf32> to vector<16x768xbf16>
    %c1_19 = arith.constant 1 : index
    %c0_20 = arith.constant 0 : index
    %c0_21 = arith.constant 0 : index
    %23 = vector.load %arg6[%c1_19, %c0_20, %c0_21] : memref<2x768x128xbf16, #tpu.memory_space<vmem>>, vector<1x768x128xbf16>
    %24 = vector.shape_cast %23 : vector<1x768x128xbf16> to vector<768x128xbf16>
    %cst_22 = arith.constant dense<0.000000e+00> : vector<16x128xf32>
    %25 = tpu.matmul %22, %24, %cst_22 {dimension_numbers = #tpu.dot_dimension_numbers<[1], [0], [0], [1], [0, 0, 1, 1], [], []>} : vector<16x768xbf16>, vector<768x128xbf16>, vector<16x128xf32> -> vector<16x128xf32>
    %26 = arith.addf %21, %25 : vector<16x128xf32>
    %c0_23 = arith.constant 0 : index
    %c0_24 = arith.constant 0 : index
    %27 = vector.load %arg7[%c0_23, %c0_24] : memref<1x128xf32, #tpu.memory_space<vmem>>, vector<1x128xf32>
    %28 = vector.broadcast %27 : vector<1x128xf32> to vector<16x128xf32>
    %29 = arith.addf %26, %28 : vector<16x128xf32>
    %cst_25 = arith.constant dense<0xFF800000> : vector<16xf32>
    %30 = vector.multi_reduction <maximumf>, %29, %cst_25 [1] : vector<16x128xf32> to vector<16xf32>
    %31 = vector.shape_cast %30 : vector<16xf32> to vector<16x1xf32>
    %32 = vector.broadcast %31 : vector<16x1xf32> to vector<16x128xf32>
    %33 = arith.subf %29, %32 : vector<16x128xf32>
    %34 = math.exp %33 : vector<16x128xf32>
    %cst_26 = arith.constant dense<0.000000e+00> : vector<16xf32>
    %35 = vector.multi_reduction <add>, %34, %cst_26 [1] : vector<16x128xf32> to vector<16xf32>
    %36 = vector.shape_cast %35 : vector<16xf32> to vector<16x1xf32>
    %37 = vector.broadcast %36 : vector<16x1xf32> to vector<16x128xf32>
    %38 = arith.divf %34, %37 : vector<16x128xf32>
    %c0_27 = arith.constant 0 : index
    %c0_28 = arith.constant 0 : index
    %39 = vector.load %arg8[%c0_27, %c0_28] : memref<16x128xf32, #tpu.memory_space<vmem>>, vector<16x128xf32>
    tpu.vector_store %arg8[%c0_27, %c0_28], %38 {strides = array<i32>} : memref<16x128xf32, #tpu.memory_space<vmem>>, vector<16x128xf32>,
    return
  }
  func.func @transform_0(%arg0: i32) -> (i32, i32) {
    %c0_i32 = arith.constant 0 : i32
    %c0_i32_0 = arith.constant 0 : i32
    return %arg0, %c0_i32 : i32, i32
  }
  func.func @transform_1(%arg0: i32) -> (i32, i32) {
    %c0_i32 = arith.constant 0 : i32
    %c0_i32_0 = arith.constant 0 : i32
    %c0_i32_1 = arith.constant 0 : i32
    return %c0_i32, %c0_i32_0 : i32, i32
  }
  func.func @transform_2(%arg0: i32) -> (i32, i32) {
    %c0_i32 = arith.constant 0 : i32
    %c0_i32_0 = arith.constant 0 : i32
    %c0_i32_1 = arith.constant 0 : i32
    return %c0_i32, %c0_i32_0 : i32, i32
  }
  func.func @transform_3(%arg0: i32) -> (i32, i32) {
    %c0_i32 = arith.constant 0 : i32
    %c0_i32_0 = arith.constant 0 : i32
    %c0_i32_1 = arith.constant 0 : i32
    return %c0_i32, %c0_i32_0 : i32, i32
  }
  func.func @transform_4(%arg0: i32) -> (i32, i32, i32) {
    %c0_i32 = arith.constant 0 : i32
    %c0_i32_0 = arith.constant 0 : i32
    %c0_i32_1 = arith.constant 0 : i32
    %c0_i32_2 = arith.constant 0 : i32
    return %c0_i32, %c0_i32_0, %c0_i32_1 : i32, i32, i32
  }
  func.func @transform_5(%arg0: i32) -> (i32, i32, i32) {
    %c0_i32 = arith.constant 0 : i32
    %c0_i32_0 = arith.constant 0 : i32
    %c0_i32_1 = arith.constant 0 : i32
    %c0_i32_2 = arith.constant 0 : i32
    return %c0_i32, %c0_i32_0, %c0_i32_1 : i32, i32, i32
  }
  func.func @transform_6(%arg0: i32) -> (i32, i32) {
    %c0_i32 = arith.constant 0 : i32
    %c0_i32_0 = arith.constant 0 : i32
    %c0_i32_1 = arith.constant 0 : i32
    return %c0_i32, %c0_i32_0 : i32, i32
  }
  func.func @transform_7(%arg0: i32) -> (i32, i32) {
    %c0_i32 = arith.constant 0 : i32
    %c0_i32_0 = arith.constant 0 : i32
    return %arg0, %c0_i32 : i32, i32
  }
}

</mosaic_0001>

<llo_original>
// kernel: rede_legal_forward.2
$region0: #{rede_legal_forward.2}
  #allocation0 [shape = 'u32[]', space=smem, size = 0x4, offset = 0x4, fixed_abs, tag = 'smem constant byte address 0x4 - core index']
  #allocation1 [shape = 'u32[144,128]{1,0:T(1,128)}', space=vmem, size = 0x12000, scoped, tag = 'internal scratch']
  %s0 = inlined_call_operand.vmem [shape: bf16[400,128], index: 0, kind: input, shape index: {}]
  %s1 = inlined_call_operand.vmem [shape: bf16[128,768], index: 1, kind: input, shape index: {}]
  %s2 = inlined_call_operand.vmem [shape: f32[8,768], index: 2, kind: output, shape index: {0}]
  %s3 = inlined_call_operand.vmem [shape: f32[8,768], index: 3, kind: output, shape index: {1}]
  %4 = xla_tuple %s2, %s3
  %s5 = sld [smem:[#allocation0]]
  $region26: #{rede_legal_forward.2} parent=0
    _
  %s7 = ssub.s32 1, %s5
  %s8 = scalar_select 0, %s7, %s5
  // Predicated region
  $region2: #{rede_legal_forward.2} parent=0 // pred_check
    _
  $region3: #{rede_legal_forward.2} parent=0 // pred_check_branch
    %10 = sbr.rel (0) target = $region5
  $region4: #{rede_legal_forward.2} parent=0 // pred_region
    _
  $region5: #{rede_legal_forward.2} parent=0 // pred_fallthru
    _
  // Predicated region
  $region6: #{rede_legal_forward.2} parent=0 // pred_check
    _
  $region7: #{rede_legal_forward.2} parent=0 // pred_check_branch
    %12 = sbr.rel (0) target = $region9
  $region8: #{rede_legal_forward.2} parent=0 // pred_region
    _
  $region9: #{rede_legal_forward.2} parent=0 // pred_fallthru
    _
  %v14 = vld [vmem:[%s0] sm:$0xf]
  %v15 = vld [vmem:[%s0 + $0x4] sm:$0xf]
  %v16 = vld [vmem:[%s0 + $0x8] sm:$0xf]
  %v17 = vld [vmem:[%s0 + $0xc] sm:$0xf]
  %v18 = vld [vmem:[%s0 + $0x10] sm:$0xf]
  %v19 = vld [vmem:[%s0 + $0x14] sm:$0xf]
  %v20 = vld [vmem:[%s0 + $0x18] sm:$0xf]
  %v21 = vld [vmem:[%s0 + $0x1c] sm:$0xf]
  %v22 = vld [vmem:[%s0 + $0x20] sm:$0xf]
  %v23 = vld [vmem:[%s0 + $0x24] sm:$0xf]
  %v24 = vld [vmem:[%s0 + $0x28] sm:$0xf]
  %v25 = vld [vmem:[%s0 + $0x2c] sm:$0xf]
  %v26 = vld [vmem:[%s0 + $0x30] sm:$0xf]
  %v27 = vld [vmem:[%s0 + $0x34] sm:$0xf]
  %v28 = vld [vmem:[%s0 + $0x38] sm:$0xf]
  %v29 = vld [vmem:[%s0 + $0x3c] sm:$0xf]
  %v30 = vld [vmem:[%s0 + $0x40] sm:$0xf]
  %v31 = vld [vmem:[%s0 + $0x44] sm:$0xf]
  %v32 = vld [vmem:[%s0 + $0x48] sm:$0xf]
  %v33 = vld [vmem:[%s0 + $0x4c] sm:$0xf]
  %v34 = vld [vmem:[%s0 + $0x50] sm:$0xf]
  %v35 = vld [vmem:[%s0 + $0x54] sm:$0xf]
  %v36 = vld [vmem:[%s0 + $0x58] sm:$0xf]
  %v37 = vld [vmem:[%s0 + $0x5c] sm:$0xf]
  %v38 = vld [vmem:[%s0 + $0x60] sm:$0xf]
  %v39 = vld [vmem:[%s0 + $0x64] sm:$0xf]
  %v40 = vld [vmem:[%s0 + $0x68] sm:$0xf]
  %v41 = vld [vmem:[%s0 + $0x6c] sm:$0xf]
  %v42 = vld [vmem:[%s0 + $0x70] sm:$0xf]
  %v43 = vld [vmem:[%s0 + $0x74] sm:$0xf]
  %v44 = vld [vmem:[%s0 + $0x78] sm:$0xf]
  %v45 = vld [vmem:[%s0 + $0x7c] sm:$0xf]
  %v46 = vld [vmem:[%s0 + $0x80] sm:$0xf]
  %v47 = vld [vmem:[%s0 + $0x84] sm:$0xf]
  %v48 = vld [vmem:[%s0 + $0x88] sm:$0xf]
  %v49 = vld [vmem:[%s0 + $0x8c] sm:$0xf]
  %v50 = vld [vmem:[%s0 + $0x90] sm:$0xf]
  %v51 = vld [vmem:[%s0 + $0x94] sm:$0xf]
  %v52 = vld [vmem:[%s0 + $0x98] sm:$0xf]
  %v53 = vld [vmem:[%s0 + $0x9c] sm:$0xf]
  %v54 = vld [vmem:[%s0 + $0xa0] sm:$0xf]
  %v55 = vld [vmem:[%s0 + $0xa4] sm:$0xf]
  %v56 = vld [vmem:[%s0 + $0xa8] sm:$0xf]
  %v57 = vld [vmem:[%s0 + $0xac] sm:$0xf]
  %v58 = vld [vmem:[%s0 + $0xb0] sm:$0xf]
  %v59 = vld [vmem:[%s0 + $0xb4] sm:$0xf]
  %v60 = vld [vmem:[%s0 + $0xb8] sm:$0xf]
  %v61 = vld [vmem:[%s0 + $0xbc] sm:$0xf]
  %v62 = vld [vmem:[%s0 + $0xc0] sm:$0xf]
  %v63 = vld [vmem:[%s0 + $0xc4] sm:$0xf]
  %v64 = vld [vmem:[%s1] sm:$0xff]
  %v65 = vld [vmem:[%s1 + $0x8] sm:$0xff]
  %v66 = vld [vmem:[%s1 + $0x10] sm:$0xff]
  %v67 = vld [vmem:[%s1 + $0x18] sm:$0xff]
  %v68 = vld [vmem:[%s1 + $0x20] sm:$0xff]
  %v69 = vld [vmem:[%s1 + $0x28] sm:$0xff]
  %v70 = vld [vmem:[%s1 + $0x30] sm:$0xff]
  %v71 = vld [vmem:[%s1 + $0x38] sm:$0xff]
  %v72 = vld [vmem:[%s1 + $0x40] sm:$0xff]
  %v73 = vld [vmem:[%s1 + $0x48] sm:$0xff]
  %v74 = vld [vmem:[%s1 + $0x50] sm:$0xff]
  %v75 = vld [vmem:[%s1 + $0x58] sm:$0xff]
  %v76 = vld [vmem:[%s1 + $0x60] sm:$0xff]
  %v77 = vld [vmem:[%s1 + $0x68] sm:$0xff]
  %v78 = vld [vmem:[%s1 + $0x70] sm:$0xff]
  %v79 = vld [vmem:[%s1 + $0x78] sm:$0xff]
  %v80 = vld [vmem:[%s1 + $0x80] sm:$0xff]
  %v81 = vld [vmem:[%s1 + $0x88] sm:$0xff]
  %v82 = vld [vmem:[%s1 + $0x90] sm:$0xff]
  %v83 = vld [vmem:[%s1 + $0x98] sm:$0xff]
  %v84 = vld [vmem:[%s1 + $0xa0] sm:$0xff]
  %v85 = vld [vmem:[%s1 + $0xa8] sm:$0xff]
  %v86 = vld [vmem:[%s1 + $0xb0] sm:$0xff]
  %v87 = vld [vmem:[%s1 + $0xb8] sm:$0xff]
  %v88 = vld [vmem:[%s1 + $0xc0] sm:$0xff]
  %v89 = vld [vmem:[%s1 + $0xc8] sm:$0xff]
  %v90 = vld [vmem:[%s1 + $0xd0] sm:$0xff]
  %v91 = vld [vmem:[%s1 + $0xd8] sm:$0xff]
  %v92 = vld [vmem:[%s1 + $0xe0] sm:$0xff]
  %v93 = vld [vmem:[%s1 + $0xe8] sm:$0xff]
  %v94 = vld [vmem:[%s1 + $0xf0] sm:$0xff]
  %v95 = vld [vmem:[%s1 + $0xf8] sm:$0xff]
  %v96 = vld [vmem:[%s1 + $0x100] sm:$0xff]
  %v97 = vld [vmem:[%s1 + $0x108] sm:$0xff]
  %v98 = vld [vmem:[%s1 + $0x110] sm:$0xff]
  %v99 = vld [vmem:[%s1 + $0x118] sm:$0xff]
  %v100 = vld [vmem:[%s1 + $0x120] sm:$0xff]
  %v101 = vld [vmem:[%s1 + $0x128] sm:$0xff]
  %v102 = vld [vmem:[%s1 + $0x130] sm:$0xff]
  %v103 = vld [vmem:[%s1 + $0x138] sm:$0xff]
  %v104 = vld [vmem:[%s1 + $0x140] sm:$0xff]
  %v105 = vld [vmem:[%s1 + $0x148] sm:$0xff]
  %v106 = vld [vmem:[%s1 + $0x150] sm:$0xff]
  %v107 = vld [vmem:[%s1 + $0x158] sm:$0xff]
  %v108 = vld [vmem:[%s1 + $0x160] sm:$0xff]
  %v109 = vld [vmem:[%s1 + $0x168] sm:$0xff]
  %v110 = vld [vmem:[%s1 + $0x170] sm:$0xff]
  %v111 = vld [vmem:[%s1 + $0x178] sm:$0xff]
  %v162 = vunpack.c.l.b16 %v14
  %v163 = vunpack.c.l.b16 %v15
  %v164 = vunpack.c.l.b16 %v16
  %v165 = vunpack.c.l.b16 %v17
  %v166 = vunpack.c.l.b16 %v18
  %v167 = vunpack.c.l.b16 %v19
  %v168 = vunpack.c.l.b16 %v20
  %v169 = vunpack.c.l.b16 %v21
  %v170 = vunpack.c.l.b16 %v22
  %v171 = vunpack.c.l.b16 %v23
  %v172 = vunpack.c.l.b16 %v24
  %v173 = vunpack.c.l.b16 %v25
  %v174 = vunpack.c.l.b16 %v26
  %v175 = vunpack.c.l.b16 %v27
  %v176 = vunpack.c.l.b16 %v28
  %v177 = vunpack.c.l.b16 %v29
  %v178 = vunpack.c.l.b16 %v30
  %v179 = vunpack.c.l.b16 %v31
  %v180 = vunpack.c.l.b16 %v32
  %v181 = vunpack.c.l.b16 %v33
  %v182 = vunpack.c.l.b16 %v34
  %v183 = vunpack.c.l.b16 %v35
  %v184 = vunpack.c.l.b16 %v36
  %v185 = vunpack.c.l.b16 %v37
  %v186 = vunpack.c.l.b16 %v38
  %v187 = vunpack.c.l.b16 %v39
  %v188 = vunpack.c.l.b16 %v40
  %v189 = vunpack.c.l.b16 %v41
  %v190 = vunpack.c.l.b16 %v42
  %v191 = vunpack.c.l.b16 %v43
  %v192 = vunpack.c.l.b16 %v44
  %v193 = vunpack.c.l.b16 %v45
  %v194 = vunpack.c.l.b16 %v46
  %v195 = vunpack.c.l.b16 %v47
  %v196 = vunpack.c.l.b16 %v48
  %v197 = vunpack.c.l.b16 %v49
  %v198 = vunpack.c.l.b16 %v50
  %v199 = vunpack.c.l.b16 %v51
  %v200 = vunpack.c.l.b16 %v52
  %v201 = vunpack.c.l.b16 %v53
  %v202 = vunpack.c.l.b16 %v54
  %v203 = vunpack.c.l.b16 %v55
  %v204 = vunpack.c.l.b16 %v56
  %v205 = vunpack.c.l.b16 %v57
  %v206 = vunpack.c.l.b16 %v58
  %v207 = vunpack.c.l.b16 %v59
  %v208 = vunpack.c.l.b16 %v60
  %v209 = vunpack.c.l.b16 %v61
  %v210 = vunpack.c.l.b16 %v62
  %v211 = vunpack.c.l.b16 %v63
  %v212 = vpack.c.b16 %v163, %v162
  %v213 = vpack.c.b16 %v165, %v164
  %v214 = vpack.c.b16 %v167, %v166
  %v215 = vpack.c.b16 %v169, %v168
  %v216 = vpack.c.b16 %v171, %v170
  %v217 = vpack.c.b16 %v173, %v172
  %v218 = vpack.c.b16 %v175, %v174
  %v219 = vpack.c.b16 %v177, %v176
  %v220 = vpack.c.b16 %v179, %v178
  %v221 = vpack.c.b16 %v181, %v180
  %v222 = vpack.c.b16 %v183, %v182
  %v223 = vpack.c.b16 %v185, %v184
  %v224 = vpack.c.b16 %v187, %v186
  %v225 = vpack.c.b16 %v189, %v188
  %v226 = vpack.c.b16 %v191, %v190
  %v227 = vpack.c.b16 %v193, %v192
  %v228 = vpack.c.b16 %v195, %v194
  %v229 = vpack.c.b16 %v197, %v196
  %v230 = vpack.c.b16 %v199, %v198
  %v231 = vpack.c.b16 %v201, %v200
  %v232 = vpack.c.b16 %v203, %v202
  %v233 = vpack.c.b16 %v205, %v204
  %v234 = vpack.c.b16 %v207, %v206
  %v235 = vpack.c.b16 %v209, %v208
  %v236 = vpack.c.b16 %v211, %v210
  %v310 = vunpack.c.l.b16 %v64
  %v311 = vunpack.c.h.b16 %v64
  %v312 = vunpack.c.l.b16 %v65
  %v313 = vunpack.c.h.b16 %v65
  %v314 = vunpack.c.l.b16 %v66
  %v315 = vunpack.c.h.b16 %v66
  %v316 = vunpack.c.l.b16 %v67
  %v317 = vunpack.c.h.b16 %v67
  %v318 = vunpack.c.l.b16 %v68
  %v319 = vunpack.c.h.b16 %v68
  %v320 = vunpack.c.l.b16 %v69
  %v321 = vunpack.c.h.b16 %v69
  %v322 = vunpack.c.l.b16 %v70
  %v323 = vunpack.c.h.b16 %v70
  %v324 = vunpack.c.l.b16 %v71
  %v325 = vunpack.c.h.b16 %v71
  %v326 = vunpack.c.l.b16 %v72
  %v327 = vunpack.c.h.b16 %v72
  %v328 = vunpack.c.l.b16 %v73
  %v329 = vunpack.c.h.b16 %v73
  %v330 = vunpack.c.l.b16 %v74
  %v331 = vunpack.c.h.b16 %v74
  %v332 = vunpack.c.l.b16 %v75
  %v333 = vunpack.c.h.b16 %v75
  %v334 = vunpack.c.l.b16 %v76
  %v335 = vunpack.c.h.b16 %v76
  %v336 = vunpack.c.l.b16 %v77
  %v337 = vunpack.c.h.b16 %v77
  %v338 = vunpack.c.l.b16 %v78
  %v339 = vunpack.c.h.b16 %v78
  %v340 = vunpack.c.l.b16 %v79
  %v341 = vunpack.c.h.b16 %v79
  %v342 = vunpack.c.l.b16 %v80
  %v343 = vunpack.c.h.b16 %v80
  %v344 = vunpack.c.l.b16 %v81
  %v345 = vunpack.c.h.b16 %v81
  %v346 = vunpack.c.l.b16 %v82
  %v347 = vunpack.c.h.b16 %v82
  %v348 = vunpack.c.l.b16 %v83
  %v349 = vunpack.c.h.b16 %v83
  %v350 = vunpack.c.l.b16 %v84
  %v351 = vunpack.c.h.b16 %v84
  %v352 = vunpack.c.l.b16 %v85
  %v353 = vunpack.c.h.b16 %v85
  %v354 = vunpack.c.l.b16 %v86
  %v355 = vunpack.c.h.b16 %v86
  %v356 = vunpack.c.l.b16 %v87
  %v357 = vunpack.c.h.b16 %v87
  %v358 = vunpack.c.l.b16 %v88
  %v359 = vunpack.c.h.b16 %v88
  %v360 = vunpack.c.l.b16 %v89
  %v361 = vunpack.c.h.b16 %v89
  %v362 = vunpack.c.l.b16 %v90
  %v363 = vunpack.c.h.b16 %v90
  %v364 = vunpack.c.l.b16 %v91
  %v365 = vunpack.c.h.b16 %v91
  %v366 = vunpack.c.l.b16 %v92
  %v367 = vunpack.c.h.b16 %v92
  %v368 = vunpack.c.l.b16 %v93
  %v369 = vunpack.c.h.b16 %v93
  %v370 = vunpack.c.l.b16 %v94
  %v371 = vunpack.c.h.b16 %v94
  %v372 = vunpack.c.l.b16 %v95
  %v373 = vunpack.c.h.b16 %v95
  %v374 = vunpack.c.l.b16 %v96
  %v375 = vunpack.c.h.b16 %v96
  %v376 = vunpack.c.l.b16 %v97
  %v377 = vunpack.c.h.b16 %v97
  %v378 = vunpack.c.l.b16 %v98
  %v379 = vunpack.c.h.b16 %v98
  %v380 = vunpack.c.l.b16 %v99
  %v381 = vunpack.c.h.b16 %v99
  %v382 = vunpack.c.l.b16 %v100
  %v383 = vunpack.c.h.b16 %v100
  %v384 = vunpack.c.l.b16 %v101
  %v385 = vunpack.c.h.b16 %v101
  %v386 = vunpack.c.l.b16 %v102
  %v387 = vunpack.c.h.b16 %v102
  %v388 = vunpack.c.l.b16 %v103
  %v389 = vunpack.c.h.b16 %v103
  %v390 = vunpack.c.l.b16 %v104
  %v391 = vunpack.c.h.b16 %v104
  %v392 = vunpack.c.l.b16 %v105
  %v393 = vunpack.c.h.b16 %v105
  %v394 = vunpack.c.l.b16 %v106
  %v395 = vunpack.c.h.b16 %v106
  %v396 = vunpack.c.l.b16 %v107
  %v397 = vunpack.c.h.b16 %v107
  %v398 = vunpack.c.l.b16 %v108
  %v399 = vunpack.c.h.b16 %v108
  %v400 = vunpack.c.l.b16 %v109
  %v401 = vunpack.c.h.b16 %v109
  %v402 = vunpack.c.l.b16 %v110
  %v403 = vunpack.c.h.b16 %v110
  %v404 = vunpack.c.l.b16 %v111
  %v405 = vunpack.c.h.b16 %v111
  %v406 = vpack.c.b16 %v316, %v310
  %v407 = vpack.c.b16 %v317, %v311
  %v408 = vpack.c.b16 %v318, %v312
  %v409 = vpack.c.b16 %v319, %v313
  %v410 = vpack.c.b16 %v320, %v314
  %v411 = vpack.c.b16 %v321, %v315
  %v412 = vpack.c.b16 %v328, %v322
  %v413 = vpack.c.b16 %v329, %v323
  %v414 = vpack.c.b16 %v330, %v324
  %v415 = vpack.c.b16 %v331, %v325
  %v416 = vpack.c.b16 %v332, %v326
  %v417 = vpack.c.b16 %v333, %v327
  %v418 = vpack.c.b16 %v340, %v334
  %v419 = vpack.c.b16 %v341, %v335
  %v420 = vpack.c.b16 %v342, %v336
  %v421 = vpack.c.b16 %v343, %v337
  %v422 = vpack.c.b16 %v344, %v338
  %v423 = vpack.c.b16 %v345, %v339
  %v424 = vpack.c.b16 %v352, %v346
  %v425 = vpack.c.b16 %v353, %v347
  %v426 = vpack.c.b16 %v354, %v348
  %v427 = vpack.c.b16 %v355, %v349
  %v428 = vpack.c.b16 %v356, %v350
  %v429 = vpack.c.b16 %v357, %v351
  %v430 = vpack.c.b16 %v364, %v358
  %v431 = vpack.c.b16 %v365, %v359
  %v432 = vpack.c.b16 %v366, %v360
  %v433 = vpack.c.b16 %v367, %v361
  %v434 = vpack.c.b16 %v368, %v362
  %v435 = vpack.c.b16 %v369, %v363
  %v436 = vpack.c.b16 %v376, %v370
  %v437 = vpack.c.b16 %v377, %v371
  %v438 = vpack.c.b16 %v378, %v372
  %v439 = vpack.c.b16 %v379, %v373
  %v440 = vpack.c.b16 %v380, %v374
  %v441 = vpack.c.b16 %v381, %v375
  %v442 = vpack.c.b16 %v388, %v382
  %v443 = vpack.c.b16 %v389, %v383
  %v444 = vpack.c.b16 %v390, %v384
  %v445 = vpack.c.b16 %v391, %v385
  %v446 = vpack.c.b16 %v392, %v386
  %v447 = vpack.c.b16 %v393, %v387
  %v448 = vpack.c.b16 %v400, %v394
  %v449 = vpack.c.b16 %v401, %v395
  %v450 = vpack.c.b16 %v402, %v396
  %v451 = vpack.c.b16 %v403, %v397
  %v452 = vpack.c.b16 %v404, %v398
  %v453 = vpack.c.b16 %v405, %v399
  %502 = vmatprep.subr.bf16.mxu0 %v407
  %503 = vmatpush1.bf16.msra.mxu0 %v406
  %504 = vmatprep.subr.bf16.mxu0 %v413
  %505 = vmatpush1.bf16.msra.mxu0 %v412
  %506 = vmatprep.subr.bf16.mxu0 %v419
  %507 = vmatpush1.bf16.msra.mxu0 %v418
  %508 = vmatprep.subr.bf16.mxu0 %v425
  %509 = vmatpush1.bf16.msra.mxu0 %v424
  %510 = vmatprep.subr.bf16.mxu0 %v431
  %511 = vmatpush1.bf16.msra.mxu0 %v430
  %512 = vmatprep.subr.bf16.mxu0 %v437
  %513 = vmatpush1.bf16.msra.mxu0 %v436
  %514 = vmatprep.subr.bf16.mxu0 %v443
  %515 = vmatpush1.bf16.msra.mxu0 %v442
  %516 = vmatprep.subr.bf16.mxu0 %v449
  %517 = vmatpush1.bf16.msra.mxu0 %v448
  %518 = vmatprep.subr.bf16.mxu0 0
  %519 = vmatpush1.bf16.msra.mxu0 0
  %520 = vmatprep.subr.bf16.mxu0 0
  %521 = vmatpush1.bf16.msra.mxu0 0
  %522 = vmatprep.subr.bf16.mxu0 0
  %523 = vmatpush1.bf16.msra.mxu0 0
  %524 = vmatprep.subr.bf16.mxu0 0
  %525 = vmatpush1.bf16.msra.mxu0 0
  %526 = vmatprep.subr.bf16.mxu0 0
  %527 = vmatpush1.bf16.msra.mxu0 0
  %528 = vmatprep.subr.bf16.mxu0 0
  %529 = vmatpush1.bf16.msra.mxu0 0
  %530 = vmatprep.subr.bf16.mxu0 0
  %531 = vmatpush1.bf16.msra.mxu0 0
  %532 = vmatprep.subr.bf16.mxu0 0
  %533 = vmatpush1.bf16.msra.mxu0 0
  %534 = vmatprep.mubr.bf16.mxu0 0
  %535 = vmatmul.mubr.bf16.gmra.mrb[0].mxu0 %v212
  %v536 = vpop.f32.mrb[0].mxu0
  %v537 = vadd.f32 0.0, %v536
  %v538 = vpop.f32.mrb[0].mxu0
  %v539 = vadd.f32 0.0, %v538
  %v540 = vpop.f32.mrb[0].mxu0
  %v541 = vadd.f32 0.0, %v540
  %v542 = vpop.f32.mrb[0].mxu0
  %v543 = vadd.f32 0.0, %v542
  %544 = vmatprep.mubr.bf16.mxu0 0
  %545 = vmatmul.mubr.bf16.gmra.mrb[0].mxu0 %v213
  %v546 = vpop.f32.mrb[0].mxu0
  %v547 = vadd.f32 0.0, %v546
  %v548 = vpop.f32.mrb[0].mxu0
  %v549 = vadd.f32 0.0, %v548
  %v550 = vpop.f32.mrb[0].mxu0
  %v551 = vadd.f32 0.0, %v550
  %v552 = vpop.f32.mrb[0].mxu0
  %v553 = vadd.f32 0.0, %v552
  %554 = vmatprep.mubr.bf16.mxu0 0
  %555 = vmatmul.mubr.bf16.gmra.mrb[0].mxu0 %v214
  %v556 = vpop.f32.mrb[0].mxu0
  %v557 = vadd.f32 0.0, %v556
  %v558 = vpop.f32.mrb[0].mxu0
  %v559 = vadd.f32 0.0, %v558
  %v560 = vpop.f32.mrb[0].mxu0
  %v561 = vadd.f32 0.0, %v560
  %v562 = vpop.f32.mrb[0].mxu0
  %v563 = vadd.f32 0.0, %v562
  %564 = vmatprep.mubr.bf16.mxu0 0
  %565 = vmatmul.mubr.bf16.gmra.mrb[0].mxu0 %v215
  %v566 = vpop.f32.mrb[0].mxu0
  %v567 = vadd.f32 0.0, %v566
  %v568 = vpop.f32.mrb[0].mxu0
  %v569 = vadd.f32 0.0, %v568
  %v570 = vpop.f32.mrb[0].mxu0
  %v571 = vadd.f32 0.0, %v570
  %v572 = vpop.f32.mrb[0].mxu0
  %v573 = vadd.f32 0.0, %v572
  %574 = vmatprep.mubr.bf16.mxu0 0
  %575 = vmatmul.mubr.bf16.gmra.mrb[0].mxu0 %v216
  %v576 = vpop.f32.mrb[0].mxu0
  %v577 = vadd.f32 0.0, %v576
  %v578 = vpop.f32.mrb[0].mxu0
  %v579 = vadd.f32 0.0, %v578
  %v580 = vpop.f32.mrb[0].mxu0
  %v581 = vadd.f32 0.0, %v580
  %v582 = vpop.f32.mrb[0].mxu0
  %v583 = vadd.f32 0.0, %v582
  %584 = vmatprep.mubr.bf16.mxu0 0
  %585 = vmatmul.mubr.bf16.gmra.mrb[0].mxu0 %v217
  %v586 = vpop.f32.mrb[0].mxu0
  %v587 = vadd.f32 0.0, %v586
  %v588 = vpop.f32.mrb[0].mxu0
  %v589 = vadd.f32 0.0, %v588
  %v590 = vpop.f32.mrb[0].mxu0
  %v591 = vadd.f32 0.0, %v590
  %v592 = vpop.f32.mrb[0].mxu0
  %v593 = vadd.f32 0.0, %v592
  %594 = vmatprep.mubr.bf16.mxu0 0
  %595 = vmatmul.mubr.bf16.gmra.mrb[0].mxu0 %v218
  %v596 = vpop.f32.mrb[0].mxu0
  %v597 = vadd.f32 0.0, %v596
  %v598 = vpop.f32.mrb[0].mxu0
  %v599 = vadd.f32 0.0, %v598
  %v600 = vpop.f32.mrb[0].mxu0
  %v601 = vadd.f32 0.0, %v600
  %v602 = vpop.f32.mrb[0].mxu0
  %v603 = vadd.f32 0.0, %v602
  %604 = vmatprep.mubr.bf16.mxu0 0
  %605 = vmatmul.mubr.bf16.gmra.mrb[0].mxu0 %v219
  %v606 = vpop.f32.mrb[0].mxu0
  %v607 = vadd.f32 0.0, %v606
  %v608 = vpop.f32.mrb[0].mxu0
  %v609 = vadd.f32 0.0, %v608
  %v610 = vpop.f32.mrb[0].mxu0
  %v611 = vadd.f32 0.0, %v610
  %v612 = vpop.f32.mrb[0].mxu0
  %v613 = vadd.f32 0.0, %v612
  %614 = vmatprep.mubr.bf16.mxu0 0
  %615 = vmatmul.mubr.bf16.gmra.mrb[0].mxu0 %v220
  %v616 = vpop.f32.mrb[0].mxu0
  %v617 = vadd.f32 0.0, %v616
  %v618 = vpop.f32.mrb[0].mxu0
  %v619 = vadd.f32 0.0, %v618
  %v620 = vpop.f32.mrb[0].mxu0
  %v621 = vadd.f32 0.0, %v620
  %v622 = vpop.f32.mrb[0].mxu0
  %v623 = vadd.f32 0.0, %v622
  %624 = vmatprep.mubr.bf16.mxu0 0
  %625 = vmatmul.mubr.bf16.gmra.mrb[0].mxu0 %v221
  %v626 = vpop.f32.mrb[0].mxu0
  %v627 = vadd.f32 0.0, %v626
  %v628 = vpop.f32.mrb[0].mxu0
  %v629 = vadd.f32 0.0, %v628
  %v630 = vpop.f32.mrb[0].mxu0
  %v631 = vadd.f32 0.0, %v630
  %v632 = vpop.f32.mrb[0].mxu0
  %v633 = vadd.f32 0.0, %v632
  %634 = vmatprep.mubr.bf16.mxu0 0
  %635 = vmatmul.mubr.bf16.gmra.mrb[0].mxu0 %v222
  %v636 = vpop.f32.mrb[0].mxu0
  %v637 = vadd.f32 0.0, %v636
  %v638 = vpop.f32.mrb[0].mxu0
  %v639 = vadd.f32 0.0, %v638
  %v640 = vpop.f32.mrb[0].mxu0
  %v641 = vadd.f32 0.0, %v640
  %v642 = vpop.f32.mrb[0].mxu0
  %v643 = vadd.f32 0.0, %v642
  %644 = vmatprep.mubr.bf16.mxu0 0
  %645 = vmatmul.mubr.bf16.gmra.mrb[0].mxu0 %v223
  %v646 = vpop.f32.mrb[0].mxu0
  %v647 = vadd.f32 0.0, %v646
  %v648 = vpop.f32.mrb[0].mxu0
  %v649 = vadd.f32 0.0, %v648
  %v650 = vpop.f32.mrb[0].mxu0
  %v651 = vadd.f32 0.0, %v650
  %v652 = vpop.f32.mrb[0].mxu0
  %v653 = vadd.f32 0.0, %v652
  %654 = vmatprep.mubr.bf16.mxu0 0
  %655 = vmatmul.mubr.bf16.gmra.mrb[0].mxu0 %v224
  %v656 = vpop.f32.mrb[0].mxu0
  %v657 = vadd.f32 0.0, %v656
  %v658 = vpop.f32.mrb[0].mxu0
  %v659 = vadd.f32 0.0, %v658
  %v660 = vpop.f32.mrb[0].mxu0
  %v661 = vadd.f32 0.0, %v660
  %v662 = vpop.f32.mrb[0].mxu0
  %v663 = vadd.f32 0.0, %v662
  %664 = vmatprep.mubr.bf16.mxu0 0
  %665 = vmatmul.mubr.bf16.gmra.mrb[0].mxu0 %v225
  %v666 = vpop.f32.mrb[0].mxu0
  %v667 = vadd.f32 0.0, %v666
  %v668 = vpop.f32.mrb[0].mxu0
  %v669 = vadd.f32 0.0, %v668
  %v670 = vpop.f32.mrb[0].mxu0
  %v671 = vadd.f32 0.0, %v670
  %v672 = vpop.f32.mrb[0].mxu0
  %v673 = vadd.f32 0.0, %v672
  %674 = vmatprep.mubr.bf16.mxu0 0
  %675 = vmatmul.mubr.bf16.gmra.mrb[0].mxu0 %v226
  %v676 = vpop.f32.mrb[0].mxu0
  %v677 = vadd.f32 0.0, %v676
  %v678 = vpop.f32.mrb[0].mxu0
  %v679 = vadd.f32 0.0, %v678
  %v680 = vpop.f32.mrb[0].mxu0
  %v681 = vadd.f32 0.0, %v680
  %v682 = vpop.f32.mrb[0].mxu0
  %v683 = vadd.f32 0.0, %v682
  %684 = vmatprep.mubr.bf16.mxu0 0
  %685 = vmatmul.mubr.bf16.gmra.mrb[0].mxu0 %v227
  %v686 = vpop.f32.mrb[0].mxu0
  %v687 = vadd.f32 0.0, %v686
  %v688 = vpop.f32.mrb[0].mxu0
  %v689 = vadd.f32 0.0, %v688
  %v690 = vpop.f32.mrb[0].mxu0
  %v691 = vadd.f32 0.0, %v690
  %v692 = vpop.f32.mrb[0].mxu0
  %v693 = vadd.f32 0.0, %v692
  %694 = vmatprep.mubr.bf16.mxu0 0
  %695 = vmatmul.mubr.bf16.gmra.mrb[0].mxu0 %v228
  %v696 = vpop.f32.mrb[0].mxu0
  %v697 = vadd.f32 0.0, %v696
  %v698 = vpop.f32.mrb[0].mxu0
  %v699 = vadd.f32 0.0, %v698
  %v700 = vpop.f32.mrb[0].mxu0
  %v701 = vadd.f32 0.0, %v700
  %v702 = vpop.f32.mrb[0].mxu0
  %v703 = vadd.f32 0.0, %v702
  %704 = vmatprep.mubr.bf16.mxu0 0
  %705 = vmatmul.mubr.bf16.gmra.mrb[0].mxu0 %v229
  %v706 = vpop.f32.mrb[0].mxu0
  %v707 = vadd.f32 0.0, %v706
  %v708 = vpop.f32.mrb[0].mxu0
  %v709 = vadd.f32 0.0, %v708
  %v710 = vpop.f32.mrb[0].mxu0
  %v711 = vadd.f32 0.0, %v710
  %v712 = vpop.f32.mrb[0].mxu0
  %v713 = vadd.f32 0.0, %v712
  %714 = vmatprep.mubr.bf16.mxu0 0
  %715 = vmatmul.mubr.bf16.gmra.mrb[0].mxu0 %v230
  %v716 = vpop.f32.mrb[0].mxu0
  %v717 = vadd.f32 0.0, %v716
  %v718 = vpop.f32.mrb[0].mxu0
  %v719 = vadd.f32 0.0, %v718
  %v720 = vpop.f32.mrb[0].mxu0
  %v721 = vadd.f32 0.0, %v720
  %v722 = vpop.f32.mrb[0].mxu0
  %v723 = vadd.f32 0.0, %v722
  %724 = vmatprep.mubr.bf16.mxu0 0
  %725 = vmatmul.mubr.bf16.gmra.mrb[0].mxu0 %v231
  %v726 = vpop.f32.mrb[0].mxu0
  %v727 = vadd.f32 0.0, %v726
  %v728 = vpop.f32.mrb[0].mxu0
  %v729 = vadd.f32 0.0, %v728
  %v730 = vpop.f32.mrb[0].mxu0
  %v731 = vadd.f32 0.0, %v730
  %v732 = vpop.f32.mrb[0].mxu0
  %v733 = vadd.f32 0.0, %v732
  %734 = vmatprep.mubr.bf16.mxu0 0
  %735 = vmatmul.mubr.bf16.gmra.mrb[0].mxu0 %v232
  %v736 = vpop.f32.mrb[0].mxu0
  %v737 = vadd.f32 0.0, %v736
  %v738 = vpop.f32.mrb[0].mxu0
  %v739 = vadd.f32 0.0, %v738
  %v740 = vpop.f32.mrb[0].mxu0
  %v741 = vadd.f32 0.0, %v740
  %v742 = vpop.f32.mrb[0].mxu0
  %v743 = vadd.f32 0.0, %v742
  %744 = vmatprep.mubr.bf16.mxu0 0
  %745 = vmatmul.mubr.bf16.gmra.mrb[0].mxu0 %v233
  %v746 = vpop.f32.mrb[0].mxu0
  %v747 = vadd.f32 0.0, %v746
  %v748 = vpop.f32.mrb[0].mxu0
  %v749 = vadd.f32 0.0, %v748
  %v750 = vpop.f32.mrb[0].mxu0
  %v751 = vadd.f32 0.0, %v750
  %v752 = vpop.f32.mrb[0].mxu0
  %v753 = vadd.f32 0.0, %v752
  %754 = vmatprep.mubr.bf16.mxu0 0
  %755 = vmatmul.mubr.bf16.gmra.mrb[0].mxu0 %v234
  %v756 = vpop.f32.mrb[0].mxu0
  %v757 = vadd.f32 0.0, %v756
  %v758 = vpop.f32.mrb[0].mxu0
  %v759 = vadd.f32 0.0, %v758
  %v760 = vpop.f32.mrb[0].mxu0
  %v761 = vadd.f32 0.0, %v760
  %v762 = vpop.f32.mrb[0].mxu0
  %v763 = vadd.f32 0.0, %v762
  %764 = vmatprep.mubr.bf16.mxu0 0
  %765 = vmatmul.mubr.bf16.gmra.mrb[0].mxu0 %v235
  %v766 = vpop.f32.mrb[0].mxu0
  %v767 = vadd.f32 0.0, %v766
  %v768 = vpop.f32.mrb[0].mxu0
  %v769 = vadd.f32 0.0, %v768
  %v770 = vpop.f32.mrb[0].mxu0
  %v771 = vadd.f32 0.0, %v770
  %v772 = vpop.f32.mrb[0].mxu0
  %v773 = vadd.f32 0.0, %v772
  %774 = vmatprep.mubr.bf16.mxu0 0
  %775 = vmatmul.mubr.bf16.gmra.mrb[0].mxu0 %v236
  %v776 = vpop.f32.mrb[0].mxu0
  %v777 = vadd.f32 0.0, %v776
  %v778 = vpop.f32.mrb[0].mxu0
  %v779 = vadd.f32 0.0, %v778
  %v780 = vpop.f32.mrb[0].mxu0
  %v781 = vadd.f32 0.0, %v780
  %v782 = vpop.f32.mrb[0].mxu0
  %v783 = vadd.f32 0.0, %v782
  %784 = vdwg.mxu0
  %785 = vmatprep.subr.bf16.mxu0 %v409
  %786 = vmatpush1.bf16.msra.mxu0 %v408
  %787 = vmatprep.subr.bf16.mxu0 %v415
  %788 = vmatpush1.bf16.msra.mxu0 %v414
  %789 = vmatprep.subr.bf16.mxu0 %v421
  %790 = vmatpush1.bf16.msra.mxu0 %v420
  %791 = vmatprep.subr.bf16.mxu0 %v427
  %792 = vmatpush1.bf16.msra.mxu0 %v426
  %793 = vmatprep.subr.bf16.mxu0 %v433
  %794 = vmatpush1.bf16.msra.mxu0 %v432
  %795 = vmatprep.subr.bf16.mxu0 %v439
  %796 = vmatpush1.bf16.msra.mxu0 %v438
  %797 = vmatprep.subr.bf16.mxu0 %v445
  %798 = vmatpush1.bf16.msra.mxu0 %v444
  %799 = vmatprep.subr.bf16.mxu0 %v451
  %800 = vmatpush1.bf16.msra.mxu0 %v450
  %801 = vmatprep.subr.bf16.mxu0 0
  %802 = vmatpush1.bf16.msra.mxu0 0
  %803 = vmatprep.subr.bf16.mxu0 0
  %804 = vmatpush1.bf16.msra.mxu0 0
  %805 = vmatprep.subr.bf16.mxu0 0
  %806 = vmatpush1.bf16.msra.mxu0 0
  %807 = vmatprep.subr.bf16.mxu0 0
  %808 = vmatpush1.bf16.msra.mxu0 0
  %809 = vmatprep.subr.bf16.mxu0 0
  %810 = vmatpush1.bf16.msra.mxu0 0
  %811 = vmatprep.subr.bf16.mxu0 0
  %812 = vmatpush1.bf16.msra.mxu0 0
  %813 = vmatprep.subr.bf16.mxu0 0
  %814 = vmatpush1.bf16.msra.mxu0 0
  %815 = vmatprep.subr.bf16.mxu0 0
  %816 = vmatpush1.bf16.msra.mxu0 0
  %817 = vmatprep.mubr.bf16.mxu0 0
  %818 = vmatmul.mubr.bf16.gmra.mrb[0].mxu0 %v212
  %v819 = vpop.f32.mrb[0].mxu0
  %v820 = vadd.f32 0.0, %v819
  %v821 = vpop.f32.mrb[0].mxu0
  %v822 = vadd.f32 0.0, %v821
  %v823 = vpop.f32.mrb[0].mxu0
  %v824 = vadd.f32 0.0, %v823
  %v825 = vpop.f32.mrb[0].mxu0
  %v826 = vadd.f32 0.0, %v825
  %827 = vmatprep.mubr.bf16.mxu0 0
  %828 = vmatmul.mubr.bf16.gmra.mrb[0].mxu0 %v213
  %v829 = vpop.f32.mrb[0].mxu0
  %v830 = vadd.f32 0.0, %v829
  %v831 = vpop.f32.mrb[0].mxu0
  %v832 = vadd.f32 0.0, %v831
  %v833 = vpop.f32.mrb[0].mxu0
  %v834 = vadd.f32 0.0, %v833
  %v835 = vpop.f32.mrb[0].mxu0
  %v836 = vadd.f32 0.0, %v835
  %837 = vmatprep.mubr.bf16.mxu0 0
  %838 = vmatmul.mubr.bf16.gmra.mrb[0].mxu0 %v214
  %v839 = vpop.f32.mrb[0].mxu0
  %v840 = vadd.f32 0.0, %v839
  %v841 = vpop.f32.mrb[0].mxu0
  %v842 = vadd.f32 0.0, %v841
  %v843 = vpop.f32.mrb[0].mxu0
  %v844 = vadd.f32 0.0, %v843
  %v845 = vpop.f32.mrb[0].mxu0
  %v846 = vadd.f32 0.0, %v845
  %847 = vmatprep.mubr.bf16.mxu0 0
  %848 = vmatmul.mubr.bf16.gmra.mrb[0].mxu0 %v215
  %v849 = vpop.f32.mrb[0].mxu0
  %v850 = vadd.f32 0.0, %v849
  %v851 = vpop.f32.mrb[0].mxu0
  %v852 = vadd.f32 0.0, %v851
  %v853 = vpop.f32.mrb[0].mxu0
  %v854 = vadd.f32 0.0, %v853
  %v855 = vpop.f32.mrb[0].mxu0
  %v856 = vadd.f32 0.0, %v855
  %857 = vmatprep.mubr.bf16.mxu0 0
  %858 = vmatmul.mubr.bf16.gmra.mrb[0].mxu0 %v216
  %v859 = vpop.f32.mrb[0].mxu0
  %v860 = vadd.f32 0.0, %v859
  %v861 = vpop.f32.mrb[0].mxu0
  %v862 = vadd.f32 0.0, %v861
  %v863 = vpop.f32.mrb[0].mxu0
  %v864 = vadd.f32 0.0, %v863
  %v865 = vpop.f32.mrb[0].mxu0
  %v866 = vadd.f32 0.0, %v865
  %867 = vmatprep.mubr.bf16.mxu0 0
  %868 = vmatmul.mubr.bf16.gmra.mrb[0].mxu0 %v217
  %v869 = vpop.f32.mrb[0].mxu0
  %v870 = vadd.f32 0.0, %v869
  %v871 = vpop.f32.mrb[0].mxu0
  %v872 = vadd.f32 0.0, %v871
  %v873 = vpop.f32.mrb[0].mxu0
  %v874 = vadd.f32 0.0, %v873
  %v875 = vpop.f32.mrb[0].mxu0
  %v876 = vadd.f32 0.0, %v875
  %877 = vmatprep.mubr.bf16.mxu0 0
  %878 = vmatmul.mubr.bf16.gmra.mrb[0].mxu0 %v218
  %v879 = vpop.f32.mrb[0].mxu0
  %v880 = vadd.f32 0.0, %v879
  %v881 = vpop.f32.mrb[0].mxu0
  %v882 = vadd.f32 0.0, %v881
  %v883 = vpop.f32.mrb[0].mxu0
  %v884 = vadd.f32 0.0, %v883
  %v885 = vpop.f32.mrb[0].mxu0
  %v886 = vadd.f32 0.0, %v885
  %887 = vmatprep.mubr.bf16.mxu0 0
  %888 = vmatmul.mubr.bf16.gmra.mrb[0].mxu0 %v219
  %v889 = vpop.f32.mrb[0].mxu0
  %v890 = vadd.f32 0.0, %v889
  %v891 = vpop.f32.mrb[0].mxu0
  %v892 = vadd.f32 0.0, %v891
  %v893 = vpop.f32.mrb[0].mxu0
  %v894 = vadd.f32 0.0, %v893
  %v895 = vpop.f32.mrb[0].mxu0
  %v896 = vadd.f32 0.0, %v895
  %897 = vmatprep.mubr.bf16.mxu0 0
  %898 = vmatmul.mubr.bf16.gmra.mrb[0].mxu0 %v220
  %v899 = vpop.f32.mrb[0].mxu0
  %v900 = vadd.f32 0.0, %v899
  %v901 = vpop.f32.mrb[0].mxu0
  %v902 = vadd.f32 0.0, %v901
  %v903 = vpop.f32.mrb[0].mxu0
  %v904 = vadd.f32 0.0, %v903
  %v905 = vpop.f32.mrb[0].mxu0
  %v906 = vadd.f32 0.0, %v905
  %907 = vmatprep.mubr.bf16.mxu0 0
  %908 = vmatmul.mubr.bf16.gmra.mrb[0].mxu0 %v221
  %v909 = vpop.f32.mrb[0].mxu0
  %v910 = vadd.f32 0.0, %v909
  %v911 = vpop.f32.mrb[0].mxu0
  %v912 = vadd.f32 0.0, %v911
  %v913 = vpop.f32.mrb[0].mxu0
  %v914 = vadd.f32 0.0, %v913
  %v915 = vpop.f32.mrb[0].mxu0
  %v916 = vadd.f32 0.0, %v915
  %917 = vmatprep.mubr.bf16.mxu0 0
  %918 = vmatmul.mubr.bf16.gmra.mrb[0].mxu0 %v222
  %v919 = vpop.f32.mrb[0].mxu0
  %v920 = vadd.f32 0.0, %v919
  %v921 = vpop.f32.mrb[0].mxu0
  %v922 = vadd.f32 0.0, %v921
  %v923 = vpop.f32.mrb[0].mxu0
  %v924 = vadd.f32 0.0, %v923
  %v925 = vpop.f32.mrb[0].mxu0
  %v926 = vadd.f32 0.0, %v925
  %927 = vmatprep.mubr.bf16.mxu0 0
  %928 = vmatmul.mubr.bf16.gmra.mrb[0].mxu0 %v223
  %v929 = vpop.f32.mrb[0].mxu0
  %v930 = vadd.f32 0.0, %v929
  %v931 = vpop.f32.mrb[0].mxu0
  %v932 = vadd.f32 0.0, %v931
  %v933 = vpop.f32.mrb[0].mxu0
  %v934 = vadd.f32 0.0, %v933
  %v935 = vpop.f32.mrb[0].mxu0
  %v936 = vadd.f32 0.0, %v935
  %937 = vmatprep.mubr.bf16.mxu0 0
  %938 = vmatmul.mubr.bf16.gmra.mrb[0].mxu0 %v224
  %v939 = vpop.f32.mrb[0].mxu0
  %v940 = vadd.f32 0.0, %v939
  %v941 = vpop.f32.mrb[0].mxu0
  %v942 = vadd.f32 0.0, %v941
  %v943 = vpop.f32.mrb[0].mxu0
  %v944 = vadd.f32 0.0, %v943
  %v945 = vpop.f32.mrb[0].mxu0
  %v946 = vadd.f32 0.0, %v945
  %947 = vmatprep.mubr.bf16.mxu0 0
  %948 = vmatmul.mubr.bf16.gmra.mrb[0].mxu0 %v225
  %v949 = vpop.f32.mrb[0].mxu0
  %v950 = vadd.f32 0.0, %v949
  %v951 = vpop.f32.mrb[0].mxu0
  %v952 = vadd.f32 0.0, %v951
  %v953 = vpop.f32.mrb[0].mxu0
  %v954 = vadd.f32 0.0, %v953
  %v955 = vpop.f32.mrb[0].mxu0
  %v956 = vadd.f32 0.0, %v955
  %957 = vmatprep.mubr.bf16.mxu0 0
  %958 = vmatmul.mubr.bf16.gmra.mrb[0].mxu0 %v226
  %v959 = vpop.f32.mrb[0].mxu0
  %v960 = vadd.f32 0.0, %v959
  %v961 = vpop.f32.mrb[0].mxu0
  %v962 = vadd.f32 0.0, %v961
  %v963 = vpop.f32.mrb[0].mxu0
  %v964 = vadd.f32 0.0, %v963
  %v965 = vpop.f32.mrb[0].mxu0
  %v966 = vadd.f32 0.0, %v965
  %967 = vmatprep.mubr.bf16.mxu0 0
  %968 = vmatmul.mubr.bf16.gmra.mrb[0].mxu0 %v227
  %v969 = vpop.f32.mrb[0].mxu0
  %v970 = vadd.f32 0.0, %v969
  %v971 = vpop.f32.mrb[0].mxu0
  %v972 = vadd.f32 0.0, %v971
  %v973 = vpop.f32.mrb[0].mxu0
  %v974 = vadd.f32 0.0, %v973
  %v975 = vpop.f32.mrb[0].mxu0
  %v976 = vadd.f32 0.0, %v975
  %977 = vmatprep.mubr.bf16.mxu0 0
  %978 = vmatmul.mubr.bf16.gmra.mrb[0].mxu0 %v228
  %v979 = vpop.f32.mrb[0].mxu0
  %v980 = vadd.f32 0.0, %v979
  %v981 = vpop.f32.mrb[0].mxu0
  %v982 = vadd.f32 0.0, %v981
  %v983 = vpop.f32.mrb[0].mxu0
  %v984 = vadd.f32 0.0, %v983
  %v985 = vpop.f32.mrb[0].mxu0
  %v986 = vadd.f32 0.0, %v985
  %987 = vmatprep.mubr.bf16.mxu0 0
  %988 = vmatmul.mubr.bf16.gmra.mrb[0].mxu0 %v229
  %v989 = vpop.f32.mrb[0].mxu0
  %v990 = vadd.f32 0.0, %v989
  %v991 = vpop.f32.mrb[0].mxu0
  %v992 = vadd.f32 0.0, %v991
  %v993 = vpop.f32.mrb[0].mxu0
  %v994 = vadd.f32 0.0, %v993
  %v995 = vpop.f32.mrb[0].mxu0
  %v996 = vadd.f32 0.0, %v995
  %997 = vmatprep.mubr.bf16.mxu0 0
  %998 = vmatmul.mubr.bf16.gmra.mrb[0].mxu0 %v230
  %v999 = vpop.f32.mrb[0].mxu0
  %v1000 = vadd.f32 0.0, %v999
  %v1001 = vpop.f32.mrb[0].mxu0
  %v1002 = vadd.f32 0.0, %v1001
  %v1003 = vpop.f32.mrb[0].mxu0
  %v1004 = vadd.f32 0.0, %v1003
  %v1005 = vpop.f32.mrb[0].mxu0
  %v1006 = vadd.f32 0.0, %v1005
  %1007 = vmatprep.mubr.bf16.mxu0 0
  %1008 = vmatmul.mubr.bf16.gmra.mrb[0].mxu0 %v231
  %v1009 = vpop.f32.mrb[0].mxu0
  %v1010 = vadd.f32 0.0, %v1009
  %v1011 = vpop.f32.mrb[0].mxu0
  %v1012 = vadd.f32 0.0, %v1011
  %v1013 = vpop.f32.mrb[0].mxu0
  %v1014 = vadd.f32 0.0, %v1013
  %v1015 = vpop.f32.mrb[0].mxu0
  %v1016 = vadd.f32 0.0, %v1015
  %1017 = vmatprep.mubr.bf16.mxu0 0
  %1018 = vmatmul.mubr.bf16.gmra.mrb[0].mxu0 %v232
  %v1019 = vpop.f32.mrb[0].mxu0
  %v1020 = vadd.f32 0.0, %v1019
  %v1021 = vpop.f32.mrb[0].mxu0
  %v1022 = vadd.f32 0.0, %v1021
  %v1023 = vpop.f32.mrb[0].mxu0
  %v1024 = vadd.f32 0.0, %v1023
  %v1025 = vpop.f32.mrb[0].mxu0
  %v1026 = vadd.f32 0.0, %v1025
  %1027 = vmatprep.mubr.bf16.mxu0 0
  %1028 = vmatmul.mubr.bf16.gmra.mrb[0].mxu0 %v233
  %v1029 = vpop.f32.mrb[0].mxu0
  %v1030 = vadd.f32 0.0, %v1029
  %v1031 = vpop.f32.mrb[0].mxu0
  %v1032 = vadd.f32 0.0, %v1031
  %v1033 = vpop.f32.mrb[0].mxu0
  %v1034 = vadd.f32 0.0, %v1033
  %v1035 = vpop.f32.mrb[0].mxu0
  %v1036 = vadd.f32 0.0, %v1035
  %1037 = vmatprep.mubr.bf16.mxu0 0
  %1038 = vmatmul.mubr.bf16.gmra.mrb[0].mxu0 %v234
  %v1039 = vpop.f32.mrb[0].mxu0
  %v1040 = vadd.f32 0.0, %v1039
  %v1041 = vpop.f32.mrb[0].mxu0
  %v1042 = vadd.f32 0.0, %v1041
  %v1043 = vpop.f32.mrb[0].mxu0
  %v1044 = vadd.f32 0.0, %v1043
  %v1045 = vpop.f32.mrb[0].mxu0
  %v1046 = vadd.f32 0.0, %v1045
  %1047 = vmatprep.mubr.bf16.mxu0 0
  %1048 = vmatmul.mubr.bf16.gmra.mrb[0].mxu0 %v235
  %v1049 = vpop.f32.mrb[0].mxu0
  %v1050 = vadd.f32 0.0, %v1049
  %v1051 = vpop.f32.mrb[0].mxu0
  %v1052 = vadd.f32 0.0, %v1051
  %v1053 = vpop.f32.mrb[0].mxu0
  %v1054 = vadd.f32 0.0, %v1053
  %v1055 = vpop.f32.mrb[0].mxu0
  %v1056 = vadd.f32 0.0, %v1055
  %1057 = vmatprep.mubr.bf16.mxu0 0
  %1058 = vmatmul.mubr.bf16.gmra.mrb[0].mxu0 %v236
  %v1059 = vpop.f32.mrb[0].mxu0
  %v1060 = vadd.f32 0.0, %v1059
  %v1061 = vpop.f32.mrb[0].mxu0
  %v1062 = vadd.f32 0.0, %v1061
  %v1063 = vpop.f32.mrb[0].mxu0
  %v1064 = vadd.f32 0.0, %v1063
  %v1065 = vpop.f32.mrb[0].mxu0
  %v1066 = vadd.f32 0.0, %v1065
  %1067 = vdwg.mxu0
  %1068 = vmatprep.subr.bf16.mxu0 %v411
  %1069 = vmatpush1.bf16.msra.mxu0 %v410
  %1070 = vmatprep.subr.bf16.mxu0 %v417
  %1071 = vmatpush1.bf16.msra.mxu0 %v416
  %1072 = vmatprep.subr.bf16.mxu0 %v423
  %1073 = vmatpush1.bf16.msra.mxu0 %v422
  %1074 = vmatprep.subr.bf16.mxu0 %v429
  %1075 = vmatpush1.bf16.msra.mxu0 %v428
  %1076 = vmatprep.subr.bf16.mxu0 %v435
  %1077 = vmatpush1.bf16.msra.mxu0 %v434
  %1078 = vmatprep.subr.bf16.mxu0 %v441
  %1079 = vmatpush1.bf16.msra.mxu0 %v440
  %1080 = vmatprep.subr.bf16.mxu0 %v447
  %1081 = vmatpush1.bf16.msra.mxu0 %v446
  %1082 = vmatprep.subr.bf16.mxu0 %v453
  %1083 = vmatpush1.bf16.msra.mxu0 %v452
  %1084 = vmatprep.subr.bf16.mxu0 0
  %1085 = vmatpush1.bf16.msra.mxu0 0
  %1086 = vmatprep.subr.bf16.mxu0 0
  %1087 = vmatpush1.bf16.msra.mxu0 0
  %1088 = vmatprep.subr.bf16.mxu0 0
  %1089 = vmatpush1.bf16.msra.mxu0 0
  %1090 = vmatprep.subr.bf16.mxu0 0
  %1091 = vmatpush1.bf16.msra.mxu0 0
  %1092 = vmatprep.subr.bf16.mxu0 0
  %1093 = vmatpush1.bf16.msra.mxu0 0
  %1094 = vmatprep.subr.bf16.mxu0 0
  %1095 = vmatpush1.bf16.msra.mxu0 0
  %1096 = vmatprep.subr.bf16.mxu0 0
  %1097 = vmatpush1.bf16.msra.mxu0 0
  %1098 = vmatprep.subr.bf16.mxu0 0
  %1099 = vmatpush1.bf16.msra.mxu0 0
  %1100 = vmatprep.mubr.bf16.mxu0 0
  %1101 = vmatmul.mubr.bf16.gmra.mrb[0].mxu0 %v212
  %v1102 = vpop.f32.mrb[0].mxu0
  %v1103 = vadd.f32 0.0, %v1102
  %v1104 = vpop.f32.mrb[0].mxu0
  %v1105 = vadd.f32 0.0, %v1104
  %v1106 = vpop.f32.mrb[0].mxu0
  %v1107 = vadd.f32 0.0, %v1106
  %v1108 = vpop.f32.mrb[0].mxu0
  %v1109 = vadd.f32 0.0, %v1108
  %1110 = vmatprep.mubr.bf16.mxu0 0
  %1111 = vmatmul.mubr.bf16.gmra.mrb[0].mxu0 %v213
  %v1112 = vpop.f32.mrb[0].mxu0
  %v1113 = vadd.f32 0.0, %v1112
  %v1114 = vpop.f32.mrb[0].mxu0
  %v1115 = vadd.f32 0.0, %v1114
  %v1116 = vpop.f32.mrb[0].mxu0
  %v1117 = vadd.f32 0.0, %v1116
  %v1118 = vpop.f32.mrb[0].mxu0
  %v1119 = vadd.f32 0.0, %v1118
  %1120 = vmatprep.mubr.bf16.mxu0 0
  %1121 = vmatmul.mubr.bf16.gmra.mrb[0].mxu0 %v214
  %v1122 = vpop.f32.mrb[0].mxu0
  %v1123 = vadd.f32 0.0, %v1122
  %v1124 = vpop.f32.mrb[0].mxu0
  %v1125 = vadd.f32 0.0, %v1124
  %v1126 = vpop.f32.mrb[0].mxu0
  %v1127 = vadd.f32 0.0, %v1126
  %v1128 = vpop.f32.mrb[0].mxu0
  %v1129 = vadd.f32 0.0, %v1128
  %1130 = vmatprep.mubr.bf16.mxu0 0
  %1131 = vmatmul.mubr.bf16.gmra.mrb[0].mxu0 %v215
  %v1132 = vpop.f32.mrb[0].mxu0
  %v1133 = vadd.f32 0.0, %v1132
  %v1134 = vpop.f32.mrb[0].mxu0
  %v1135 = vadd.f32 0.0, %v1134
  %v1136 = vpop.f32.mrb[0].mxu0
  %v1137 = vadd.f32 0.0, %v1136
  %v1138 = vpop.f32.mrb[0].mxu0
  %v1139 = vadd.f32 0.0, %v1138
  %1140 = vmatprep.mubr.bf16.mxu0 0
  %1141 = vmatmul.mubr.bf16.gmra.mrb[0].mxu0 %v216
  %v1142 = vpop.f32.mrb[0].mxu0
  %v1143 = vadd.f32 0.0, %v1142
  %v1144 = vpop.f32.mrb[0].mxu0
  %v1145 = vadd.f32 0.0, %v1144
  %v1146 = vpop.f32.mrb[0].mxu0
  %v1147 = vadd.f32 0.0, %v1146
  %v1148 = vpop.f32.mrb[0].mxu0
  %v1149 = vadd.f32 0.0, %v1148
  %1150 = vmatprep.mubr.bf16.mxu0 0
  %1151 = vmatmul.mubr.bf16.gmra.mrb[0].mxu0 %v217
  %v1152 = vpop.f32.mrb[0].mxu0
  %v1153 = vadd.f32 0.0, %v1152
  %v1154 = vpop.f32.mrb[0].mxu0
  %v1155 = vadd.f32 0.0, %v1154
  %v1156 = vpop.f32.mrb[0].mxu0
  %v1157 = vadd.f32 0.0, %v1156
  %v1158 = vpop.f32.mrb[0].mxu0
  %v1159 = vadd.f32 0.0, %v1158
  %1160 = vmatprep.mubr.bf16.mxu0 0
  %1161 = vmatmul.mubr.bf16.gmra.mrb[0].mxu0 %v218
  %v1162 = vpop.f32.mrb[0].mxu0
  %v1163 = vadd.f32 0.0, %v1162
  %v1164 = vpop.f32.mrb[0].mxu0
  %v1165 = vadd.f32 0.0, %v1164
  %v1166 = vpop.f32.mrb[0].mxu0
  %v1167 = vadd.f32 0.0, %v1166
  %v1168 = vpop.f32.mrb[0].mxu0
  %v1169 = vadd.f32 0.0, %v1168
  %1170 = vmatprep.mubr.bf16.mxu0 0
  %1171 = vmatmul.mubr.bf16.gmra.mrb[0].mxu0 %v219
  %v1172 = vpop.f32.mrb[0].mxu0
  %v1173 = vadd.f32 0.0, %v1172
  %v1174 = vpop.f32.mrb[0].mxu0
  %v1175 = vadd.f32 0.0, %v1174
  %v1176 = vpop.f32.mrb[0].mxu0
  %v1177 = vadd.f32 0.0, %v1176
  %v1178 = vpop.f32.mrb[0].mxu0
  %v1179 = vadd.f32 0.0, %v1178
  %1180 = vmatprep.mubr.bf16.mxu0 0
  %1181 = vmatmul.mubr.bf16.gmra.mrb[0].mxu0 %v220
  %v1182 = vpop.f32.mrb[0].mxu0
  %v1183 = vadd.f32 0.0, %v1182
  %v1184 = vpop.f32.mrb[0].mxu0
  %v1185 = vadd.f32 0.0, %v1184
  %v1186 = vpop.f32.mrb[0].mxu0
  %v1187 = vadd.f32 0.0, %v1186
  %v1188 = vpop.f32.mrb[0].mxu0
  %v1189 = vadd.f32 0.0, %v1188
  %1190 = vmatprep.mubr.bf16.mxu0 0
  %1191 = vmatmul.mubr.bf16.gmra.mrb[0].mxu0 %v221
  %v1192 = vpop.f32.mrb[0].mxu0
  %v1193 = vadd.f32 0.0, %v1192
  %v1194 = vpop.f32.mrb[0].mxu0
  %v1195 = vadd.f32 0.0, %v1194
  %v1196 = vpop.f32.mrb[0].mxu0
  %v1197 = vadd.f32 0.0, %v1196
  %v1198 = vpop.f32.mrb[0].mxu0
  %v1199 = vadd.f32 0.0, %v1198
  %1200 = vmatprep.mubr.bf16.mxu0 0
  %1201 = vmatmul.mubr.bf16.gmra.mrb[0].mxu0 %v222
  %v1202 = vpop.f32.mrb[0].mxu0
  %v1203 = vadd.f32 0.0, %v1202
  %v1204 = vpop.f32.mrb[0].mxu0
  %v1205 = vadd.f32 0.0, %v1204
  %v1206 = vpop.f32.mrb[0].mxu0
  %v1207 = vadd.f32 0.0, %v1206
  %v1208 = vpop.f32.mrb[0].mxu0
  %v1209 = vadd.f32 0.0, %v1208
  %1210 = vmatprep.mubr.bf16.mxu0 0
  %1211 = vmatmul.mubr.bf16.gmra.mrb[0].mxu0 %v223
  %v1212 = vpop.f32.mrb[0].mxu0
  %v1213 = vadd.f32 0.0, %v1212
  %v1214 = vpop.f32.mrb[0].mxu0
  %v1215 = vadd.f32 0.0, %v1214
  %v1216 = vpop.f32.mrb[0].mxu0
  %v1217 = vadd.f32 0.0, %v1216
  %v1218 = vpop.f32.mrb[0].mxu0
  %v1219 = vadd.f32 0.0, %v1218
  %1220 = vmatprep.mubr.bf16.mxu0 0
  %1221 = vmatmul.mubr.bf16.gmra.mrb[0].mxu0 %v224
  %v1222 = vpop.f32.mrb[0].mxu0
  %v1223 = vadd.f32 0.0, %v1222
  %v1224 = vpop.f32.mrb[0].mxu0
  %v1225 = vadd.f32 0.0, %v1224
  %v1226 = vpop.f32.mrb[0].mxu0
  %v1227 = vadd.f32 0.0, %v1226
  %v1228 = vpop.f32.mrb[0].mxu0
  %v1229 = vadd.f32 0.0, %v1228
  %1230 = vmatprep.mubr.bf16.mxu0 0
  %1231 = vmatmul.mubr.bf16.gmra.mrb[0].mxu0 %v225
  %v1232 = vpop.f32.mrb[0].mxu0
  %v1233 = vadd.f32 0.0, %v1232
  %v1234 = vpop.f32.mrb[0].mxu0
  %v1235 = vadd.f32 0.0, %v1234
  %v1236 = vpop.f32.mrb[0].mxu0
  %v1237 = vadd.f32 0.0, %v1236
  %v1238 = vpop.f32.mrb[0].mxu0
  %v1239 = vadd.f32 0.0, %v1238
  %1240 = vmatprep.mubr.bf16.mxu0 0
  %1241 = vmatmul.mubr.bf16.gmra.mrb[0].mxu0 %v226
  %v1242 = vpop.f32.mrb[0].mxu0
  %v1243 = vadd.f32 0.0, %v1242
  %v1244 = vpop.f32.mrb[0].mxu0
  %v1245 = vadd.f32 0.0, %v1244
  %v1246 = vpop.f32.mrb[0].mxu0
  %v1247 = vadd.f32 0.0, %v1246
  %v1248 = vpop.f32.mrb[0].mxu0
  %v1249 = vadd.f32 0.0, %v1248
  %1250 = vmatprep.mubr.bf16.mxu0 0
  %1251 = vmatmul.mubr.bf16.gmra.mrb[0].mxu0 %v227
  %v1252 = vpop.f32.mrb[0].mxu0
  %v1253 = vadd.f32 0.0, %v1252
  %v1254 = vpop.f32.mrb[0].mxu0
  %v1255 = vadd.f32 0.0, %v1254
  %v1256 = vpop.f32.mrb[0].mxu0
  %v1257 = vadd.f32 0.0, %v1256
  %v1258 = vpop.f32.mrb[0].mxu0
  %v1259 = vadd.f32 0.0, %v1258
  %1260 = vmatprep.mubr.bf16.mxu0 0
  %1261 = vmatmul.mubr.bf16.gmra.mrb[0].mxu0 %v228
  %v1262 = vpop.f32.mrb[0].mxu0
  %v1263 = vadd.f32 0.0, %v1262
  %v1264 = vpop.f32.mrb[0].mxu0
  %v1265 = vadd.f32 0.0, %v1264
  %v1266 = vpop.f32.mrb[0].mxu0
  %v1267 = vadd.f32 0.0, %v1266
  %v1268 = vpop.f32.mrb[0].mxu0
  %v1269 = vadd.f32 0.0, %v1268
  %1270 = vmatprep.mubr.bf16.mxu0 0
  %1271 = vmatmul.mubr.bf16.gmra.mrb[0].mxu0 %v229
  %v1272 = vpop.f32.mrb[0].mxu0
  %v1273 = vadd.f32 0.0, %v1272
  %v1274 = vpop.f32.mrb[0].mxu0
  %v1275 = vadd.f32 0.0, %v1274
  %v1276 = vpop.f32.mrb[0].mxu0
  %v1277 = vadd.f32 0.0, %v1276
  %v1278 = vpop.f32.mrb[0].mxu0
  %v1279 = vadd.f32 0.0, %v1278
  %1280 = vmatprep.mubr.bf16.mxu0 0
  %1281 = vmatmul.mubr.bf16.gmra.mrb[0].mxu0 %v230
  %v1282 = vpop.f32.mrb[0].mxu0
  %v1283 = vadd.f32 0.0, %v1282
  %v1284 = vpop.f32.mrb[0].mxu0
  %v1285 = vadd.f32 0.0, %v1284
  %v1286 = vpop.f32.mrb[0].mxu0
  %v1287 = vadd.f32 0.0, %v1286
  %v1288 = vpop.f32.mrb[0].mxu0
  %v1289 = vadd.f32 0.0, %v1288
  %1290 = vmatprep.mubr.bf16.mxu0 0
  %1291 = vmatmul.mubr.bf16.gmra.mrb[0].mxu0 %v231
  %v1292 = vpop.f32.mrb[0].mxu0
  %v1293 = vadd.f32 0.0, %v1292
  %v1294 = vpop.f32.mrb[0].mxu0
  %v1295 = vadd.f32 0.0, %v1294
  %v1296 = vpop.f32.mrb[0].mxu0
  %v1297 = vadd.f32 0.0, %v1296
  %v1298 = vpop.f32.mrb[0].mxu0
  %v1299 = vadd.f32 0.0, %v1298
  %1300 = vmatprep.mubr.bf16.mxu0 0
  %1301 = vmatmul.mubr.bf16.gmra.mrb[0].mxu0 %v232
  %v1302 = vpop.f32.mrb[0].mxu0
  %v1303 = vadd.f32 0.0, %v1302
  %v1304 = vpop.f32.mrb[0].mxu0
  %v1305 = vadd.f32 0.0, %v1304
  %v1306 = vpop.f32.mrb[0].mxu0
  %v1307 = vadd.f32 0.0, %v1306
  %v1308 = vpop.f32.mrb[0].mxu0
  %v1309 = vadd.f32 0.0, %v1308
  %1310 = vmatprep.mubr.bf16.mxu0 0
  %1311 = vmatmul.mubr.bf16.gmra.mrb[0].mxu0 %v233
  %v1312 = vpop.f32.mrb[0].mxu0
  %v1313 = vadd.f32 0.0, %v1312
  %v1314 = vpop.f32.mrb[0].mxu0
  %v1315 = vadd.f32 0.0, %v1314
  %v1316 = vpop.f32.mrb[0].mxu0
  %v1317 = vadd.f32 0.0, %v1316
  %v1318 = vpop.f32.mrb[0].mxu0
  %v1319 = vadd.f32 0.0, %v1318
  %1320 = vmatprep.mubr.bf16.mxu0 0
  %1321 = vmatmul.mubr.bf16.gmra.mrb[0].mxu0 %v234
  %v1322 = vpop.f32.mrb[0].mxu0
  %v1323 = vadd.f32 0.0, %v1322
  %v1324 = vpop.f32.mrb[0].mxu0
  %v1325 = vadd.f32 0.0, %v1324
  %v1326 = vpop.f32.mrb[0].mxu0
  %v1327 = vadd.f32 0.0, %v1326
  %v1328 = vpop.f32.mrb[0].mxu0
  %v1329 = vadd.f32 0.0, %v1328
  %1330 = vmatprep.mubr.bf16.mxu0 0
  %1331 = vmatmul.mubr.bf16.gmra.mrb[0].mxu0 %v235
  %v1332 = vpop.f32.mrb[0].mxu0
  %v1333 = vadd.f32 0.0, %v1332
  %v1334 = vpop.f32.mrb[0].mxu0
  %v1335 = vadd.f32 0.0, %v1334
  %v1336 = vpop.f32.mrb[0].mxu0
  %v1337 = vadd.f32 0.0, %v1336
  %v1338 = vpop.f32.mrb[0].mxu0
  %v1339 = vadd.f32 0.0, %v1338
  %1340 = vmatprep.mubr.bf16.mxu0 0
  %1341 = vmatmul.mubr.bf16.gmra.mrb[0].mxu0 %v236
  %v1342 = vpop.f32.mrb[0].mxu0
  %v1343 = vadd.f32 0.0, %v1342
  %v1344 = vpop.f32.mrb[0].mxu0
  %v1345 = vadd.f32 0.0, %v1344
  %v1346 = vpop.f32.mrb[0].mxu0
  %v1347 = vadd.f32 0.0, %v1346
  %v1348 = vpop.f32.mrb[0].mxu0
  %v1349 = vadd.f32 0.0, %v1348
  %1350 = vdwg.mxu0
  %v1351 = vadd.f32 %v537, %v541
  %v1352 = vadd.f32 %v1351, %v547
  %v1353 = vadd.f32 %v1352, %v551
  %v1354 = vadd.f32 %v1353, %v557
  %v1355 = vadd.f32 %v1354, %v561
  %v1356 = vadd.f32 %v1355, %v567
  %v1357 = vadd.f32 %v1356, %v571
  %v1358 = vadd.f32 %v1357, %v577
  %v1359 = vadd.f32 %v1358, %v581
  %v1360 = vadd.f32 %v1359, %v587
  %v1361 = vadd.f32 %v1360, %v591
  %v1362 = vadd.f32 %v1361, %v597
  %v1363 = vadd.f32 %v1362, %v601
  %v1364 = vadd.f32 %v1363, %v607
  %v1365 = vadd.f32 %v1364, %v611
  %v1366 = vadd.f32 %v1365, %v617
  %v1367 = vadd.f32 %v1366, %v621
  %v1368 = vadd.f32 %v1367, %v627
  %v1369 = vadd.f32 %v1368, %v631
  %v1370 = vadd.f32 %v1369, %v637
  %v1371 = vadd.f32 %v1370, %v641
  %v1372 = vadd.f32 %v1371, %v647
  %v1373 = vadd.f32 %v1372, %v651
  %v1374 = vadd.f32 %v1373, %v657
  %v1375 = vadd.f32 %v1374, %v661
  %v1376 = vadd.f32 %v1375, %v667
  %v1377 = vadd.f32 %v1376, %v671
  %v1378 = vadd.f32 %v1377, %v677
  %v1379 = vadd.f32 %v1378, %v681
  %v1380 = vadd.f32 %v1379, %v687
  %v1381 = vadd.f32 %v1380, %v691
  %v1382 = vadd.f32 %v1381, %v697
  %v1383 = vadd.f32 %v1382, %v701
  %v1384 = vadd.f32 %v1383, %v707
  %v1385 = vadd.f32 %v1384, %v711
  %v1386 = vadd.f32 %v1385, %v717
  %v1387 = vadd.f32 %v1386, %v721
  %v1388 = vadd.f32 %v1387, %v727
  %v1389 = vadd.f32 %v1388, %v731
  %v1390 = vadd.f32 %v1389, %v737
  %v1391 = vadd.f32 %v1390, %v741
  %v1392 = vadd.f32 %v1391, %v747
  %v1393 = vadd.f32 %v1392, %v751
  %v1394 = vadd.f32 %v1393, %v757
  %v1395 = vadd.f32 %v1394, %v761
  %v1396 = vadd.f32 %v1395, %v767
  %v1397 = vadd.f32 %v1396, %v771
  %v1398 = vadd.f32 %v1397, %v777
  %v1399 = vadd.f32 %v1398, %v781
  %v1400 = vadd.f32 %v539, %v543
  %v1401 = vadd.f32 %v1400, %v549
  %v1402 = vadd.f32 %v1401, %v553
  %v1403 = vadd.f32 %v1402, %v559
  %v1404 = vadd.f32 %v1403, %v563
  %v1405 = vadd.f32 %v1404, %v569
  %v1406 = vadd.f32 %v1405, %v573
  %v1407 = vadd.f32 %v1406, %v579
  %v1408 = vadd.f32 %v1407, %v583
  %v1409 = vadd.f32 %v1408, %v589
  %v1410 = vadd.f32 %v1409, %v593
  %v1411 = vadd.f32 %v1410, %v599
  %v1412 = vadd.f32 %v1411, %v603
  %v1413 = vadd.f32 %v1412, %v609
  %v1414 = vadd.f32 %v1413, %v613
  %v1415 = vadd.f32 %v1414, %v619
  %v1416 = vadd.f32 %v1415, %v623
  %v1417 = vadd.f32 %v1416, %v629
  %v1418 = vadd.f32 %v1417, %v633
  %v1419 = vadd.f32 %v1418, %v639
  %v1420 = vadd.f32 %v1419, %v643
  %v1421 = vadd.f32 %v1420, %v649
  %v1422 = vadd.f32 %v1421, %v653
  %v1423 = vadd.f32 %v1422, %v659
  %v1424 = vadd.f32 %v1423, %v663
  %v1425 = vadd.f32 %v1424, %v669
  %v1426 = vadd.f32 %v1425, %v673
  %v1427 = vadd.f32 %v1426, %v679
  %v1428 = vadd.f32 %v1427, %v683
  %v1429 = vadd.f32 %v1428, %v689
  %v1430 = vadd.f32 %v1429, %v693
  %v1431 = vadd.f32 %v1430, %v699
  %v1432 = vadd.f32 %v1431, %v703
  %v1433 = vadd.f32 %v1432, %v709
  %v1434 = vadd.f32 %v1433, %v713
  %v1435 = vadd.f32 %v1434, %v719
  %v1436 = vadd.f32 %v1435, %v723
  %v1437 = vadd.f32 %v1436, %v729
  %v1438 = vadd.f32 %v1437, %v733
  %v1439 = vadd.f32 %v1438, %v739
  %v1440 = vadd.f32 %v1439, %v743
  %v1441 = vadd.f32 %v1440, %v749
  %v1442 = vadd.f32 %v1441, %v753
  %v1443 = vadd.f32 %v1442, %v759
  %v1444 = vadd.f32 %v1443, %v763
  %v1445 = vadd.f32 %v1444, %v769
  %v1446 = vadd.f32 %v1445, %v773
  %v1447 = vadd.f32 %v1446, %v779
  %v1448 = vadd.f32 %v1447, %v783
  %v1449 = vadd.f32 %v820, %v824
  %v1450 = vadd.f32 %v1449, %v830
  %v1451 = vadd.f32 %v1450, %v834
  %v1452 = vadd.f32 %v1451, %v840
  %v1453 = vadd.f32 %v1452, %v844
  %v1454 = vadd.f32 %v1453, %v850
  %v1455 = vadd.f32 %v1454, %v854
  %v1456 = vadd.f32 %v1455, %v860
  %v1457 = vadd.f32 %v1456, %v864
  %v1458 = vadd.f32 %v1457, %v870
  %v1459 = vadd.f32 %v1458, %v874
  %v1460 = vadd.f32 %v1459, %v880
  %v1461 = vadd.f32 %v1460, %v884
  %v1462 = vadd.f32 %v1461, %v890
  %v1463 = vadd.f32 %v1462, %v894
  %v1464 = vadd.f32 %v1463, %v900
  %v1465 = vadd.f32 %v1464, %v904
  %v1466 = vadd.f32 %v1465, %v910
  %v1467 = vadd.f32 %v1466, %v914
  %v1468 = vadd.f32 %v1467, %v920
  %v1469 = vadd.f32 %v1468, %v924
  %v1470 = vadd.f32 %v1469, %v930
  %v1471 = vadd.f32 %v1470, %v934
  %v1472 = vadd.f32 %v1471, %v940
  %v1473 = vadd.f32 %v1472, %v944
  %v1474 = vadd.f32 %v1473, %v950
  %v1475 = vadd.f32 %v1474, %v954
  %v1476 = vadd.f32 %v1475, %v960
  %v1477 = vadd.f32 %v1476, %v964
  %v1478 = vadd.f32 %v1477, %v970
  %v1479 = vadd.f32 %v1478, %v974
  %v1480 = vadd.f32 %v1479, %v980
  %v1481 = vadd.f32 %v1480, %v984
  %v1482 = vadd.f32 %v1481, %v990
  %v1483 = vadd.f32 %v1482, %v994
  %v1484 = vadd.f32 %v1483, %v1000
  %v1485 = vadd.f32 %v1484, %v1004
  %v1486 = vadd.f32 %v1485, %v1010
  %v1487 = vadd.f32 %v1486, %v1014
  %v1488 = vadd.f32 %v1487, %v1020
  %v1489 = vadd.f32 %v1488, %v1024
  %v1490 = vadd.f32 %v1489, %v1030
  %v1491 = vadd.f32 %v1490, %v1034
  %v1492 = vadd.f32 %v1491, %v1040
  %v1493 = vadd.f32 %v1492, %v1044
  %v1494 = vadd.f32 %v1493, %v1050
  %v1495 = vadd.f32 %v1494, %v1054
  %v1496 = vadd.f32 %v1495, %v1060
  %v1497 = vadd.f32 %v1496, %v1064
  %v1498 = vadd.f32 %v822, %v826
  %v1499 = vadd.f32 %v1498, %v832
  %v1500 = vadd.f32 %v1499, %v836
  %v1501 = vadd.f32 %v1500, %v842
  %v1502 = vadd.f32 %v1501, %v846
  %v1503 = vadd.f32 %v1502, %v852
  %v1504 = vadd.f32 %v1503, %v856
  %v1505 = vadd.f32 %v1504, %v862
  %v1506 = vadd.f32 %v1505, %v866
  %v1507 = vadd.f32 %v1506, %v872
  %v1508 = vadd.f32 %v1507, %v876
  %v1509 = vadd.f32 %v1508, %v882
  %v1510 = vadd.f32 %v1509, %v886
  %v1511 = vadd.f32 %v1510, %v892
  %v1512 = vadd.f32 %v1511, %v896
  %v1513 = vadd.f32 %v1512, %v902
  %v1514 = vadd.f32 %v1513, %v906
  %v1515 = vadd.f32 %v1514, %v912
  %v1516 = vadd.f32 %v1515, %v916
  %v1517 = vadd.f32 %v1516, %v922
  %v1518 = vadd.f32 %v1517, %v926
  %v1519 = vadd.f32 %v1518, %v932
  %v1520 = vadd.f32 %v1519, %v936
  %v1521 = vadd.f32 %v1520, %v942
  %v1522 = vadd.f32 %v1521, %v946
  %v1523 = vadd.f32 %v1522, %v952
  %v1524 = vadd.f32 %v1523, %v956
  %v1525 = vadd.f32 %v1524, %v962
  %v1526 = vadd.f32 %v1525, %v966
  %v1527 = vadd.f32 %v1526, %v972
  %v1528 = vadd.f32 %v1527, %v976
  %v1529 = vadd.f32 %v1528, %v982
  %v1530 = vadd.f32 %v1529, %v986
  %v1531 = vadd.f32 %v1530, %v992
  %v1532 = vadd.f32 %v1531, %v996
  %v1533 = vadd.f32 %v1532, %v1002
  %v1534 = vadd.f32 %v1533, %v1006
  %v1535 = vadd.f32 %v1534, %v1012
  %v1536 = vadd.f32 %v1535, %v1016
  %v1537 = vadd.f32 %v1536, %v1022
  %v1538 = vadd.f32 %v1537, %v1026
  %v1539 = vadd.f32 %v1538, %v1032
  %v1540 = vadd.f32 %v1539, %v1036
  %v1541 = vadd.f32 %v1540, %v1042
  %v1542 = vadd.f32 %v1541, %v1046
  %v1543 = vadd.f32 %v1542, %v1052
  %v1544 = vadd.f32 %v1543, %v1056
  %v1545 = vadd.f32 %v1544, %v1062
  %v1546 = vadd.f32 %v1545, %v1066
  %v1547 = vadd.f32 %v1103, %v1107
  %v1548 = vadd.f32 %v1547, %v1113
  %v1549 = vadd.f32 %v1548, %v1117
  %v1550 = vadd.f32 %v1549, %v1123
  %v1551 = vadd.f32 %v1550, %v1127
  %v1552 = vadd.f32 %v1551, %v1133
  %v1553 = vadd.f32 %v1552, %v1137
  %v1554 = vadd.f32 %v1553, %v1143
  %v1555 = vadd.f32 %v1554, %v1147
  %v1556 = vadd.f32 %v1555, %v1153
  %v1557 = vadd.f32 %v1556, %v1157
  %v1558 = vadd.f32 %v1557, %v1163
  %v1559 = vadd.f32 %v1558, %v1167
  %v1560 = vadd.f32 %v1559, %v1173
  %v1561 = vadd.f32 %v1560, %v1177
  %v1562 = vadd.f32 %v1561, %v1183
  %v1563 = vadd.f32 %v1562, %v1187
  %v1564 = vadd.f32 %v1563, %v1193
  %v1565 = vadd.f32 %v1564, %v1197
  %v1566 = vadd.f32 %v1565, %v1203
  %v1567 = vadd.f32 %v1566, %v1207
  %v1568 = vadd.f32 %v1567, %v1213
  %v1569 = vadd.f32 %v1568, %v1217
  %v1570 = vadd.f32 %v1569, %v1223
  %v1571 = vadd.f32 %v1570, %v1227
  %v1572 = vadd.f32 %v1571, %v1233
  %v1573 = vadd.f32 %v1572, %v1237
  %v1574 = vadd.f32 %v1573, %v1243
  %v1575 = vadd.f32 %v1574, %v1247
  %v1576 = vadd.f32 %v1575, %v1253
  %v1577 = vadd.f32 %v1576, %v1257
  %v1578 = vadd.f32 %v1577, %v1263
  %v1579 = vadd.f32 %v1578, %v1267
  %v1580 = vadd.f32 %v1579, %v1273
  %v1581 = vadd.f32 %v1580, %v1277
  %v1582 = vadd.f32 %v1581, %v1283
  %v1583 = vadd.f32 %v1582, %v1287
  %v1584 = vadd.f32 %v1583, %v1293
  %v1585 = vadd.f32 %v1584, %v1297
  %v1586 = vadd.f32 %v1585, %v1303
  %v1587 = vadd.f32 %v1586, %v1307
  %v1588 = vadd.f32 %v1587, %v1313
  %v1589 = vadd.f32 %v1588, %v1317
  %v1590 = vadd.f32 %v1589, %v1323
  %v1591 = vadd.f32 %v1590, %v1327
  %v1592 = vadd.f32 %v1591, %v1333
  %v1593 = vadd.f32 %v1592, %v1337
  %v1594 = vadd.f32 %v1593, %v1343
  %v1595 = vadd.f32 %v1594, %v1347
  %v1596 = vadd.f32 %v1105, %v1109
  %v1597 = vadd.f32 %v1596, %v1115
  %v1598 = vadd.f32 %v1597, %v1119
  %v1599 = vadd.f32 %v1598, %v1125
  %v1600 = vadd.f32 %v1599, %v1129
  %v1601 = vadd.f32 %v1600, %v1135
  %v1602 = vadd.f32 %v1601, %v1139
  %v1603 = vadd.f32 %v1602, %v1145
  %v1604 = vadd.f32 %v1603, %v1149
  %v1605 = vadd.f32 %v1604, %v1155
  %v1606 = vadd.f32 %v1605, %v1159
  %v1607 = vadd.f32 %v1606, %v1165
  %v1608 = vadd.f32 %v1607, %v1169
  %v1609 = vadd.f32 %v1608, %v1175
  %v1610 = vadd.f32 %v1609, %v1179
  %v1611 = vadd.f32 %v1610, %v1185
  %v1612 = vadd.f32 %v1611, %v1189
  %v1613 = vadd.f32 %v1612, %v1195
  %v1614 = vadd.f32 %v1613, %v1199
  %v1615 = vadd.f32 %v1614, %v1205
  %v1616 = vadd.f32 %v1615, %v1209
  %v1617 = vadd.f32 %v1616, %v1215
  %v1618 = vadd.f32 %v1617, %v1219
  %v1619 = vadd.f32 %v1618, %v1225
  %v1620 = vadd.f32 %v1619, %v1229
  %v1621 = vadd.f32 %v1620, %v1235
  %v1622 = vadd.f32 %v1621, %v1239
  %v1623 = vadd.f32 %v1622, %v1245
  %v1624 = vadd.f32 %v1623, %v1249
  %v1625 = vadd.f32 %v1624, %v1255
  %v1626 = vadd.f32 %v1625, %v1259
  %v1627 = vadd.f32 %v1626, %v1265
  %v1628 = vadd.f32 %v1627, %v1269
  %v1629 = vadd.f32 %v1628, %v1275
  %v1630 = vadd.f32 %v1629, %v1279
  %v1631 = vadd.f32 %v1630, %v1285
  %v1632 = vadd.f32 %v1631, %v1289
  %v1633 = vadd.f32 %v1632, %v1295
  %v1634 = vadd.f32 %v1633, %v1299
  %v1635 = vadd.f32 %v1634, %v1305
  %v1636 = vadd.f32 %v1635, %v1309
  %v1637 = vadd.f32 %v1636, %v1315
  %v1638 = vadd.f32 %v1637, %v1319
  %v1639 = vadd.f32 %v1638, %v1325
  %v1640 = vadd.f32 %v1639, %v1329
  %v1641 = vadd.f32 %v1640, %v1335
  %v1642 = vadd.f32 %v1641, %v1339
  %v1643 = vadd.f32 %v1642, %v1345
  %v1644 = vadd.f32 %v1643, %v1349
  %1645 = vst [vmem:[%s2] sm:$0xff] %v1399
  %1646 = vst [vmem:[%s2 + $0x8] sm:$0xff] %v1448
  %1647 = vst [vmem:[%s2 + $0x10] sm:$0xff] %v1497
  %1648 = vst [vmem:[%s2 + $0x18] sm:$0xff] %v1546
  %1649 = vst [vmem:[%s2 + $0x20] sm:$0xff] %v1595
  %1650 = vst [vmem:[%s2 + $0x28] sm:$0xff] %v1644
  %v1651 = vmul.f32 %v537, %v537
  %v1652 = vmul.f32 %v539, %v539
  %v1653 = vmul.f32 %v820, %v820
  %v1654 = vmul.f32 %v822, %v822
  %v1655 = vmul.f32 %v1103, %v1103
  %v1656 = vmul.f32 %v1105, %v1105
  %v1657 = vmul.f32 %v541, %v541
  %v1658 = vmul.f32 %v543, %v543
  %v1659 = vmul.f32 %v824, %v824
  %v1660 = vmul.f32 %v826, %v826
  %v1661 = vmul.f32 %v1107, %v1107
  %v1662 = vmul.f32 %v1109, %v1109
  %v1663 = vmul.f32 %v547, %v547
  %v1664 = vmul.f32 %v549, %v549
  %v1665 = vmul.f32 %v830, %v830
  %v1666 = vmul.f32 %v832, %v832
  %v1667 = vmul.f32 %v1113, %v1113
  %v1668 = vmul.f32 %v1115, %v1115
  %v1669 = vmul.f32 %v551, %v551
  %v1670 = vmul.f32 %v553, %v553
  %v1671 = vmul.f32 %v834, %v834
  %v1672 = vmul.f32 %v836, %v836
  %v1673 = vmul.f32 %v1117, %v1117
  %v1674 = vmul.f32 %v1119, %v1119
  %v1675 = vmul.f32 %v557, %v557
  %v1676 = vmul.f32 %v559, %v559
  %v1677 = vmul.f32 %v840, %v840
  %v1678 = vmul.f32 %v842, %v842
  %v1679 = vmul.f32 %v1123, %v1123
  %v1680 = vmul.f32 %v1125, %v1125
  %v1681 = vmul.f32 %v561, %v561
  %v1682 = vmul.f32 %v563, %v563
  %v1683 = vmul.f32 %v844, %v844
  %v1684 = vmul.f32 %v846, %v846
  %v1685 = vmul.f32 %v1127, %v1127
  %v1686 = vmul.f32 %v1129, %v1129
  %v1687 = vmul.f32 %v567, %v567
  %v1688 = vmul.f32 %v569, %v569
  %v1689 = vmul.f32 %v850, %v850
  %v1690 = vmul.f32 %v852, %v852
  %v1691 = vmul.f32 %v1133, %v1133
  %v1692 = vmul.f32 %v1135, %v1135
  %v1693 = vmul.f32 %v571, %v571
  %v1694 = vmul.f32 %v573, %v573
  %v1695 = vmul.f32 %v854, %v854
  %v1696 = vmul.f32 %v856, %v856
  %v1697 = vmul.f32 %v1137, %v1137
  %v1698 = vmul.f32 %v1139, %v1139
  %v1699 = vmul.f32 %v577, %v577
  %v1700 = vmul.f32 %v579, %v579
  %v1701 = vmul.f32 %v860, %v860
  %v1702 = vmul.f32 %v862, %v862
  %v1703 = vmul.f32 %v1143, %v1143
  %v1704 = vmul.f32 %v1145, %v1145
  %v1705 = vmul.f32 %v581, %v581
  %v1706 = vmul.f32 %v583, %v583
  %v1707 = vmul.f32 %v864, %v864
  %v1708 = vmul.f32 %v866, %v866
  %v1709 = vmul.f32 %v1147, %v1147
  %v1710 = vmul.f32 %v1149, %v1149
  %v1711 = vmul.f32 %v587, %v587
  %v1712 = vmul.f32 %v589, %v589
  %v1713 = vmul.f32 %v870, %v870
  %v1714 = vmul.f32 %v872, %v872
  %v1715 = vmul.f32 %v1153, %v1153
  %v1716 = vmul.f32 %v1155, %v1155
  %v1717 = vmul.f32 %v591, %v591
  %v1718 = vmul.f32 %v593, %v593
  %v1719 = vmul.f32 %v874, %v874
  %v1720 = vmul.f32 %v876, %v876
  %v1721 = vmul.f32 %v1157, %v1157
  %v1722 = vmul.f32 %v1159, %v1159
  %v1723 = vmul.f32 %v597, %v597
  %v1724 = vmul.f32 %v599, %v599
  %v1725 = vmul.f32 %v880, %v880
  %v1726 = vmul.f32 %v882, %v882
  %v1727 = vmul.f32 %v1163, %v1163
  %v1728 = vmul.f32 %v1165, %v1165
  %v1729 = vmul.f32 %v601, %v601
  %v1730 = vmul.f32 %v603, %v603
  %v1731 = vmul.f32 %v884, %v884
  %v1732 = vmul.f32 %v886, %v886
  %v1733 = vmul.f32 %v1167, %v1167
  %v1734 = vmul.f32 %v1169, %v1169
  %v1735 = vmul.f32 %v607, %v607
  %v1736 = vmul.f32 %v609, %v609
  %v1737 = vmul.f32 %v890, %v890
  %v1738 = vmul.f32 %v892, %v892
  %v1739 = vmul.f32 %v1173, %v1173
  %v1740 = vmul.f32 %v1175, %v1175
  %v1741 = vmul.f32 %v611, %v611
  %v1742 = vmul.f32 %v613, %v613
  %v1743 = vmul.f32 %v894, %v894
  %v1744 = vmul.f32 %v896, %v896
  %v1745 = vmul.f32 %v1177, %v1177
  %v1746 = vmul.f32 %v1179, %v1179
  %v1747 = vmul.f32 %v617, %v617
  %v1748 = vmul.f32 %v619, %v619
  %v1749 = vmul.f32 %v900, %v900
  %v1750 = vmul.f32 %v902, %v902
  %v1751 = vmul.f32 %v1183, %v1183
  %v1752 = vmul.f32 %v1185, %v1185
  %v1753 = vmul.f32 %v621, %v621
  %v1754 = vmul.f32 %v623, %v623
  %v1755 = vmul.f32 %v904, %v904
  %v1756 = vmul.f32 %v906, %v906
  %v1757 = vmul.f32 %v1187, %v1187
  %v1758 = vmul.f32 %v1189, %v1189
  %v1759 = vmul.f32 %v627, %v627
  %v1760 = vmul.f32 %v629, %v629
  %v1761 = vmul.f32 %v910, %v910
  %v1762 = vmul.f32 %v912, %v912
  %v1763 = vmul.f32 %v1193, %v1193
  %v1764 = vmul.f32 %v1195, %v1195
  %v1765 = vmul.f32 %v631, %v631
  %v1766 = vmul.f32 %v633, %v633
  %v1767 = vmul.f32 %v914, %v914
  %v1768 = vmul.f32 %v916, %v916
  %v1769 = vmul.f32 %v1197, %v1197
  %v1770 = vmul.f32 %v1199, %v1199
  %v1771 = vmul.f32 %v637, %v637
  %v1772 = vmul.f32 %v639, %v639
  %v1773 = vmul.f32 %v920, %v920
  %v1774 = vmul.f32 %v922, %v922
  %v1775 = vmul.f32 %v1203, %v1203
  %v1776 = vmul.f32 %v1205, %v1205
  %v1777 = vmul.f32 %v641, %v641
  %v1778 = vmul.f32 %v643, %v643
  %v1779 = vmul.f32 %v924, %v924
  %v1780 = vmul.f32 %v926, %v926
  %v1781 = vmul.f32 %v1207, %v1207
  %v1782 = vmul.f32 %v1209, %v1209
  %v1783 = vmul.f32 %v647, %v647
  %v1784 = vmul.f32 %v649, %v649
  %v1785 = vmul.f32 %v930, %v930
  %v1786 = vmul.f32 %v932, %v932
  %v1787 = vmul.f32 %v1213, %v1213
  %v1788 = vmul.f32 %v1215, %v1215
  %v1789 = vmul.f32 %v651, %v651
  %v1790 = vmul.f32 %v653, %v653
  %v1791 = vmul.f32 %v934, %v934
  %v1792 = vmul.f32 %v936, %v936
  %v1793 = vmul.f32 %v1217, %v1217
  %v1794 = vmul.f32 %v1219, %v1219
  %v1795 = vmul.f32 %v657, %v657
  %v1796 = vmul.f32 %v659, %v659
  %v1797 = vmul.f32 %v940, %v940
  %v1798 = vmul.f32 %v942, %v942
  %v1799 = vmul.f32 %v1223, %v1223
  %v1800 = vmul.f32 %v1225, %v1225
  %v1801 = vmul.f32 %v661, %v661
  %v1802 = vmul.f32 %v663, %v663
  %v1803 = vmul.f32 %v944, %v944
  %v1804 = vmul.f32 %v946, %v946
  %v1805 = vmul.f32 %v1227, %v1227
  %v1806 = vmul.f32 %v1229, %v1229
  %v1807 = vmul.f32 %v667, %v667
  %v1808 = vmul.f32 %v669, %v669
  %v1809 = vmul.f32 %v950, %v950
  %v1810 = vmul.f32 %v952, %v952
  %v1811 = vmul.f32 %v1233, %v1233
  %v1812 = vmul.f32 %v1235, %v1235
  %v1813 = vmul.f32 %v671, %v671
  %v1814 = vmul.f32 %v673, %v673
  %v1815 = vmul.f32 %v954, %v954
  %v1816 = vmul.f32 %v956, %v956
  %v1817 = vmul.f32 %v1237, %v1237
  %v1818 = vmul.f32 %v1239, %v1239
  %v1819 = vmul.f32 %v677, %v677
  %v1820 = vmul.f32 %v679, %v679
  %v1821 = vmul.f32 %v960, %v960
  %v1822 = vmul.f32 %v962, %v962
  %v1823 = vmul.f32 %v1243, %v1243
  %v1824 = vmul.f32 %v1245, %v1245
  %v1825 = vmul.f32 %v681, %v681
  %v1826 = vmul.f32 %v683, %v683
  %v1827 = vmul.f32 %v964, %v964
  %v1828 = vmul.f32 %v966, %v966
  %v1829 = vmul.f32 %v1247, %v1247
  %v1830 = vmul.f32 %v1249, %v1249
  %v1831 = vmul.f32 %v687, %v687
  %v1832 = vmul.f32 %v689, %v689
  %v1833 = vmul.f32 %v970, %v970
  %v1834 = vmul.f32 %v972, %v972
  %v1835 = vmul.f32 %v1253, %v1253
  %v1836 = vmul.f32 %v1255, %v1255
  %v1837 = vmul.f32 %v691, %v691
  %v1838 = vmul.f32 %v693, %v693
  %v1839 = vmul.f32 %v974, %v974
  %v1840 = vmul.f32 %v976, %v976
  %v1841 = vmul.f32 %v1257, %v1257
  %v1842 = vmul.f32 %v1259, %v1259
  %v1843 = vmul.f32 %v697, %v697
  %v1844 = vmul.f32 %v699, %v699
  %v1845 = vmul.f32 %v980, %v980
  %v1846 = vmul.f32 %v982, %v982
  %v1847 = vmul.f32 %v1263, %v1263
  %v1848 = vmul.f32 %v1265, %v1265
  %v1849 = vmul.f32 %v701, %v701
  %v1850 = vmul.f32 %v703, %v703
  %v1851 = vmul.f32 %v984, %v984
  %v1852 = vmul.f32 %v986, %v986
  %v1853 = vmul.f32 %v1267, %v1267
  %v1854 = vmul.f32 %v1269, %v1269
  %v1855 = vmul.f32 %v707, %v707
  %v1856 = vmul.f32 %v709, %v709
  %v1857 = vmul.f32 %v990, %v990
  %v1858 = vmul.f32 %v992, %v992
  %v1859 = vmul.f32 %v1273, %v1273
  %v1860 = vmul.f32 %v1275, %v1275
  %v1861 = vmul.f32 %v711, %v711
  %v1862 = vmul.f32 %v713, %v713
  %v1863 = vmul.f32 %v994, %v994
  %v1864 = vmul.f32 %v996, %v996
  %v1865 = vmul.f32 %v1277, %v1277
  %v1866 = vmul.f32 %v1279, %v1279
  %v1867 = vmul.f32 %v717, %v717
  %v1868 = vmul.f32 %v719, %v719
  %v1869 = vmul.f32 %v1000, %v1000
  %v1870 = vmul.f32 %v1002, %v1002
  %v1871 = vmul.f32 %v1283, %v1283
  %v1872 = vmul.f32 %v1285, %v1285
  %v1873 = vmul.f32 %v721, %v721
  %v1874 = vmul.f32 %v723, %v723
  %v1875 = vmul.f32 %v1004, %v1004
  %v1876 = vmul.f32 %v1006, %v1006
  %v1877 = vmul.f32 %v1287, %v1287
  %v1878 = vmul.f32 %v1289, %v1289
  %v1879 = vmul.f32 %v727, %v727
  %v1880 = vmul.f32 %v729, %v729
  %v1881 = vmul.f32 %v1010, %v1010
  %v1882 = vmul.f32 %v1012, %v1012
  %v1883 = vmul.f32 %v1293, %v1293
  %v1884 = vmul.f32 %v1295, %v1295
  %v1885 = vmul.f32 %v731, %v731
  %v1886 = vmul.f32 %v733, %v733
  %v1887 = vmul.f32 %v1014, %v1014
  %v1888 = vmul.f32 %v1016, %v1016
  %v1889 = vmul.f32 %v1297, %v1297
  %v1890 = vmul.f32 %v1299, %v1299
  %v1891 = vmul.f32 %v737, %v737
  %v1892 = vmul.f32 %v739, %v739
  %v1893 = vmul.f32 %v1020, %v1020
  %v1894 = vmul.f32 %v1022, %v1022
  %v1895 = vmul.f32 %v1303, %v1303
  %v1896 = vmul.f32 %v1305, %v1305
  %v1897 = vmul.f32 %v741, %v741
  %v1898 = vmul.f32 %v743, %v743
  %v1899 = vmul.f32 %v1024, %v1024
  %v1900 = vmul.f32 %v1026, %v1026
  %v1901 = vmul.f32 %v1307, %v1307
  %v1902 = vmul.f32 %v1309, %v1309
  %v1903 = vmul.f32 %v747, %v747
  %v1904 = vmul.f32 %v749, %v749
  %v1905 = vmul.f32 %v1030, %v1030
  %v1906 = vmul.f32 %v1032, %v1032
  %v1907 = vmul.f32 %v1313, %v1313
  %v1908 = vmul.f32 %v1315, %v1315
  %v1909 = vmul.f32 %v751, %v751
  %v1910 = vmul.f32 %v753, %v753
  %v1911 = vmul.f32 %v1034, %v1034
  %v1912 = vmul.f32 %v1036, %v1036
  %v1913 = vmul.f32 %v1317, %v1317
  %v1914 = vmul.f32 %v1319, %v1319
  %v1915 = vmul.f32 %v757, %v757
  %v1916 = vmul.f32 %v759, %v759
  %v1917 = vmul.f32 %v1040, %v1040
  %v1918 = vmul.f32 %v1042, %v1042
  %v1919 = vmul.f32 %v1323, %v1323
  %v1920 = vmul.f32 %v1325, %v1325
  %v1921 = vmul.f32 %v761, %v761
  %v1922 = vmul.f32 %v763, %v763
  %v1923 = vmul.f32 %v1044, %v1044
  %v1924 = vmul.f32 %v1046, %v1046
  %v1925 = vmul.f32 %v1327, %v1327
  %v1926 = vmul.f32 %v1329, %v1329
  %v1927 = vmul.f32 %v767, %v767
  %v1928 = vmul.f32 %v769, %v769
  %v1929 = vmul.f32 %v1050, %v1050
  %v1930 = vmul.f32 %v1052, %v1052
  %v1931 = vmul.f32 %v1333, %v1333
  %v1932 = vmul.f32 %v1335, %v1335
  %v1933 = vmul.f32 %v771, %v771
  %v1934 = vmul.f32 %v773, %v773
  %v1935 = vmul.f32 %v1054, %v1054
  %v1936 = vmul.f32 %v1056, %v1056
  %v1937 = vmul.f32 %v1337, %v1337
  %v1938 = vmul.f32 %v1339, %v1339
  %v1939 = vmul.f32 %v777, %v777
  %v1940 = vmul.f32 %v779, %v779
  %v1941 = vmul.f32 %v1060, %v1060
  %v1942 = vmul.f32 %v1062, %v1062
  %v1943 = vmul.f32 %v1343, %v1343
  %v1944 = vmul.f32 %v1345, %v1345
  %v1945 = vmul.f32 %v781, %v781
  %v1946 = vmul.f32 %v783, %v783
  %v1947 = vmul.f32 %v1064, %v1064
  %v1948 = vmul.f32 %v1066, %v1066
  %v1949 = vmul.f32 %v1347, %v1347
  %v1950 = vmul.f32 %v1349, %v1349
  %v1951 = vadd.f32 %v1651, %v1657
  %v1952 = vadd.f32 %v1951, %v1663
  %v1953 = vadd.f32 %v1952, %v1669
  %v1954 = vadd.f32 %v1953, %v1675
  %v1955 = vadd.f32 %v1954, %v1681
  %v1956 = vadd.f32 %v1955, %v1687
  %v1957 = vadd.f32 %v1956, %v1693
  %v1958 = vadd.f32 %v1957, %v1699
  %v1959 = vadd.f32 %v1958, %v1705
  %v1960 = vadd.f32 %v1959, %v1711
  %v1961 = vadd.f32 %v1960, %v1717
  %v1962 = vadd.f32 %v1961, %v1723
  %v1963 = vadd.f32 %v1962, %v1729
  %v1964 = vadd.f32 %v1963, %v1735
  %v1965 = vadd.f32 %v1964, %v1741
  %v1966 = vadd.f32 %v1965, %v1747
  %v1967 = vadd.f32 %v1966, %v1753
  %v1968 = vadd.f32 %v1967, %v1759
  %v1969 = vadd.f32 %v1968, %v1765
  %v1970 = vadd.f32 %v1969, %v1771
  %v1971 = vadd.f32 %v1970, %v1777
  %v1972 = vadd.f32 %v1971, %v1783
  %v1973 = vadd.f32 %v1972, %v1789
  %v1974 = vadd.f32 %v1973, %v1795
  %v1975 = vadd.f32 %v1974, %v1801
  %v1976 = vadd.f32 %v1975, %v1807
  %v1977 = vadd.f32 %v1976, %v1813
  %v1978 = vadd.f32 %v1977, %v1819
  %v1979 = vadd.f32 %v1978, %v1825
  %v1980 = vadd.f32 %v1979, %v1831
  %v1981 = vadd.f32 %v1980, %v1837
  %v1982 = vadd.f32 %v1981, %v1843
  %v1983 = vadd.f32 %v1982, %v1849
  %v1984 = vadd.f32 %v1983, %v1855
  %v1985 = vadd.f32 %v1984, %v1861
  %v1986 = vadd.f32 %v1985, %v1867
  %v1987 = vadd.f32 %v1986, %v1873
  %v1988 = vadd.f32 %v1987, %v1879
  %v1989 = vadd.f32 %v1988, %v1885
  %v1990 = vadd.f32 %v1989, %v1891
  %v1991 = vadd.f32 %v1990, %v1897
  %v1992 = vadd.f32 %v1991, %v1903
  %v1993 = vadd.f32 %v1992, %v1909
  %v1994 = vadd.f32 %v1993, %v1915
  %v1995 = vadd.f32 %v1994, %v1921
  %v1996 = vadd.f32 %v1995, %v1927
  %v1997 = vadd.f32 %v1996, %v1933
  %v1998 = vadd.f32 %v1997, %v1939
  %v1999 = vadd.f32 %v1998, %v1945
  %v2000 = vadd.f32 %v1652, %v1658
  %v2001 = vadd.f32 %v2000, %v1664
  %v2002 = vadd.f32 %v2001, %v1670
  %v2003 = vadd.f32 %v2002, %v1676
  %v2004 = vadd.f32 %v2003, %v1682
  %v2005 = vadd.f32 %v2004, %v1688
  %v2006 = vadd.f32 %v2005, %v1694
  %v2007 = vadd.f32 %v2006, %v1700
  %v2008 = vadd.f32 %v2007, %v1706
  %v2009 = vadd.f32 %v2008, %v1712
  %v2010 = vadd.f32 %v2009, %v1718
  %v2011 = vadd.f32 %v2010, %v1724
  %v2012 = vadd.f32 %v2011, %v1730
  %v2013 = vadd.f32 %v2012, %v1736
  %v2014 = vadd.f32 %v2013, %v1742
  %v2015 = vadd.f32 %v2014, %v1748
  %v2016 = vadd.f32 %v2015, %v1754
  %v2017 = vadd.f32 %v2016, %v1760
  %v2018 = vadd.f32 %v2017, %v1766
  %v2019 = vadd.f32 %v2018, %v1772
  %v2020 = vadd.f32 %v2019, %v1778
  %v2021 = vadd.f32 %v2020, %v1784
  %v2022 = vadd.f32 %v2021, %v1790
  %v2023 = vadd.f32 %v2022, %v1796
  %v2024 = vadd.f32 %v2023, %v1802
  %v2025 = vadd.f32 %v2024, %v1808
  %v2026 = vadd.f32 %v2025, %v1814
  %v2027 = vadd.f32 %v2026, %v1820
  %v2028 = vadd.f32 %v2027, %v1826
  %v2029 = vadd.f32 %v2028, %v1832
  %v2030 = vadd.f32 %v2029, %v1838
  %v2031 = vadd.f32 %v2030, %v1844
  %v2032 = vadd.f32 %v2031, %v1850
  %v2033 = vadd.f32 %v2032, %v1856
  %v2034 = vadd.f32 %v2033, %v1862
  %v2035 = vadd.f32 %v2034, %v1868
  %v2036 = vadd.f32 %v2035, %v1874
  %v2037 = vadd.f32 %v2036, %v1880
  %v2038 = vadd.f32 %v2037, %v1886
  %v2039 = vadd.f32 %v2038, %v1892
  %v2040 = vadd.f32 %v2039, %v1898
  %v2041 = vadd.f32 %v2040, %v1904
  %v2042 = vadd.f32 %v2041, %v1910
  %v2043 = vadd.f32 %v2042, %v1916
  %v2044 = vadd.f32 %v2043, %v1922
  %v2045 = vadd.f32 %v2044, %v1928
  %v2046 = vadd.f32 %v2045, %v1934
  %v2047 = vadd.f32 %v2046, %v1940
  %v2048 = vadd.f32 %v2047, %v1946
  %v2049 = vadd.f32 %v1653, %v1659
  %v2050 = vadd.f32 %v2049, %v1665
  %v2051 = vadd.f32 %v2050, %v1671
  %v2052 = vadd.f32 %v2051, %v1677
  %v2053 = vadd.f32 %v2052, %v1683
  %v2054 = vadd.f32 %v2053, %v1689
  %v2055 = vadd.f32 %v2054, %v1695
  %v2056 = vadd.f32 %v2055, %v1701
  %v2057 = vadd.f32 %v2056, %v1707
  %v2058 = vadd.f32 %v2057, %v1713
  %v2059 = vadd.f32 %v2058, %v1719
  %v2060 = vadd.f32 %v2059, %v1725
  %v2061 = vadd.f32 %v2060, %v1731
  %v2062 = vadd.f32 %v2061, %v1737
  %v2063 = vadd.f32 %v2062, %v1743
  %v2064 = vadd.f32 %v2063, %v1749
  %v2065 = vadd.f32 %v2064, %v1755
  %v2066 = vadd.f32 %v2065, %v1761
  %v2067 = vadd.f32 %v2066, %v1767
  %v2068 = vadd.f32 %v2067, %v1773
  %v2069 = vadd.f32 %v2068, %v1779
  %v2070 = vadd.f32 %v2069, %v1785
  %v2071 = vadd.f32 %v2070, %v1791
  %v2072 = vadd.f32 %v2071, %v1797
  %v2073 = vadd.f32 %v2072, %v1803
  %v2074 = vadd.f32 %v2073, %v1809
  %v2075 = vadd.f32 %v2074, %v1815
  %v2076 = vadd.f32 %v2075, %v1821
  %v2077 = vadd.f32 %v2076, %v1827
  %v2078 = vadd.f32 %v2077, %v1833
  %v2079 = vadd.f32 %v2078, %v1839
  %v2080 = vadd.f32 %v2079, %v1845
  %v2081 = vadd.f32 %v2080, %v1851
  %v2082 = vadd.f32 %v2081, %v1857
  %v2083 = vadd.f32 %v2082, %v1863
  %v2084 = vadd.f32 %v2083, %v1869
  %v2085 = vadd.f32 %v2084, %v1875
  %v2086 = vadd.f32 %v2085, %v1881
  %v2087 = vadd.f32 %v2086, %v1887
  %v2088 = vadd.f32 %v2087, %v1893
  %v2089 = vadd.f32 %v2088, %v1899
  %v2090 = vadd.f32 %v2089, %v1905
  %v2091 = vadd.f32 %v2090, %v1911
  %v2092 = vadd.f32 %v2091, %v1917
  %v2093 = vadd.f32 %v2092, %v1923
  %v2094 = vadd.f32 %v2093, %v1929
  %v2095 = vadd.f32 %v2094, %v1935
  %v2096 = vadd.f32 %v2095, %v1941
  %v2097 = vadd.f32 %v2096, %v1947
  %v2098 = vadd.f32 %v1654, %v1660
  %v2099 = vadd.f32 %v2098, %v1666
  %v2100 = vadd.f32 %v2099, %v1672
  %v2101 = vadd.f32 %v2100, %v1678
  %v2102 = vadd.f32 %v2101, %v1684
  %v2103 = vadd.f32 %v2102, %v1690
  %v2104 = vadd.f32 %v2103, %v1696
  %v2105 = vadd.f32 %v2104, %v1702
  %v2106 = vadd.f32 %v2105, %v1708
  %v2107 = vadd.f32 %v2106, %v1714
  %v2108 = vadd.f32 %v2107, %v1720
  %v2109 = vadd.f32 %v2108, %v1726
  %v2110 = vadd.f32 %v2109, %v1732
  %v2111 = vadd.f32 %v2110, %v1738
  %v2112 = vadd.f32 %v2111, %v1744
  %v2113 = vadd.f32 %v2112, %v1750
  %v2114 = vadd.f32 %v2113, %v1756
  %v2115 = vadd.f32 %v2114, %v1762
  %v2116 = vadd.f32 %v2115, %v1768
  %v2117 = vadd.f32 %v2116, %v1774
  %v2118 = vadd.f32 %v2117, %v1780
  %v2119 = vadd.f32 %v2118, %v1786
  %v2120 = vadd.f32 %v2119, %v1792
  %v2121 = vadd.f32 %v2120, %v1798
  %v2122 = vadd.f32 %v2121, %v1804
  %v2123 = vadd.f32 %v2122, %v1810
  %v2124 = vadd.f32 %v2123, %v1816
  %v2125 = vadd.f32 %v2124, %v1822
  %v2126 = vadd.f32 %v2125, %v1828
  %v2127 = vadd.f32 %v2126, %v1834
  %v2128 = vadd.f32 %v2127, %v1840
  %v2129 = vadd.f32 %v2128, %v1846
  %v2130 = vadd.f32 %v2129, %v1852
  %v2131 = vadd.f32 %v2130, %v1858
  %v2132 = vadd.f32 %v2131, %v1864
  %v2133 = vadd.f32 %v2132, %v1870
  %v2134 = vadd.f32 %v2133, %v1876
  %v2135 = vadd.f32 %v2134, %v1882
  %v2136 = vadd.f32 %v2135, %v1888
  %v2137 = vadd.f32 %v2136, %v1894
  %v2138 = vadd.f32 %v2137, %v1900
  %v2139 = vadd.f32 %v2138, %v1906
  %v2140 = vadd.f32 %v2139, %v1912
  %v2141 = vadd.f32 %v2140, %v1918
  %v2142 = vadd.f32 %v2141, %v1924
  %v2143 = vadd.f32 %v2142, %v1930
  %v2144 = vadd.f32 %v2143, %v1936
  %v2145 = vadd.f32 %v2144, %v1942
  %v2146 = vadd.f32 %v2145, %v1948
  %v2147 = vadd.f32 %v1655, %v1661
  %v2148 = vadd.f32 %v2147, %v1667
  %v2149 = vadd.f32 %v2148, %v1673
  %v2150 = vadd.f32 %v2149, %v1679
  %v2151 = vadd.f32 %v2150, %v1685
  %v2152 = vadd.f32 %v2151, %v1691
  %v2153 = vadd.f32 %v2152, %v1697
  %v2154 = vadd.f32 %v2153, %v1703
  %v2155 = vadd.f32 %v2154, %v1709
  %v2156 = vadd.f32 %v2155, %v1715
  %v2157 = vadd.f32 %v2156, %v1721
  %v2158 = vadd.f32 %v2157, %v1727
  %v2159 = vadd.f32 %v2158, %v1733
  %v2160 = vadd.f32 %v2159, %v1739
  %v2161 = vadd.f32 %v2160, %v1745
  %v2162 = vadd.f32 %v2161, %v1751
  %v2163 = vadd.f32 %v2162, %v1757
  %v2164 = vadd.f32 %v2163, %v1763
  %v2165 = vadd.f32 %v2164, %v1769
  %v2166 = vadd.f32 %v2165, %v1775
  %v2167 = vadd.f32 %v2166, %v1781
  %v2168 = vadd.f32 %v2167, %v1787
  %v2169 = vadd.f32 %v2168, %v1793
  %v2170 = vadd.f32 %v2169, %v1799
  %v2171 = vadd.f32 %v2170, %v1805
  %v2172 = vadd.f32 %v2171, %v1811
  %v2173 = vadd.f32 %v2172, %v1817
  %v2174 = vadd.f32 %v2173, %v1823
  %v2175 = vadd.f32 %v2174, %v1829
  %v2176 = vadd.f32 %v2175, %v1835
  %v2177 = vadd.f32 %v2176, %v1841
  %v2178 = vadd.f32 %v2177, %v1847
  %v2179 = vadd.f32 %v2178, %v1853
  %v2180 = vadd.f32 %v2179, %v1859
  %v2181 = vadd.f32 %v2180, %v1865
  %v2182 = vadd.f32 %v2181, %v1871
  %v2183 = vadd.f32 %v2182, %v1877
  %v2184 = vadd.f32 %v2183, %v1883
  %v2185 = vadd.f32 %v2184, %v1889
  %v2186 = vadd.f32 %v2185, %v1895
  %v2187 = vadd.f32 %v2186, %v1901
  %v2188 = vadd.f32 %v2187, %v1907
  %v2189 = vadd.f32 %v2188, %v1913
  %v2190 = vadd.f32 %v2189, %v1919
  %v2191 = vadd.f32 %v2190, %v1925
  %v2192 = vadd.f32 %v2191, %v1931
  %v2193 = vadd.f32 %v2192, %v1937
  %v2194 = vadd.f32 %v2193, %v1943
  %v2195 = vadd.f32 %v2194, %v1949
  %v2196 = vadd.f32 %v1656, %v1662
  %v2197 = vadd.f32 %v2196, %v1668
  %v2198 = vadd.f32 %v2197, %v1674
  %v2199 = vadd.f32 %v2198, %v1680
  %v2200 = vadd.f32 %v2199, %v1686
  %v2201 = vadd.f32 %v2200, %v1692
  %v2202 = vadd.f32 %v2201, %v1698
  %v2203 = vadd.f32 %v2202, %v1704
  %v2204 = vadd.f32 %v2203, %v1710
  %v2205 = vadd.f32 %v2204, %v1716
  %v2206 = vadd.f32 %v2205, %v1722
  %v2207 = vadd.f32 %v2206, %v1728
  %v2208 = vadd.f32 %v2207, %v1734
  %v2209 = vadd.f32 %v2208, %v1740
  %v2210 = vadd.f32 %v2209, %v1746
  %v2211 = vadd.f32 %v2210, %v1752
  %v2212 = vadd.f32 %v2211, %v1758
  %v2213 = vadd.f32 %v2212, %v1764
  %v2214 = vadd.f32 %v2213, %v1770
  %v2215 = vadd.f32 %v2214, %v1776
  %v2216 = vadd.f32 %v2215, %v1782
  %v2217 = vadd.f32 %v2216, %v1788
  %v2218 = vadd.f32 %v2217, %v1794
  %v2219 = vadd.f32 %v2218, %v1800
  %v2220 = vadd.f32 %v2219, %v1806
  %v2221 = vadd.f32 %v2220, %v1812
  %v2222 = vadd.f32 %v2221, %v1818
  %v2223 = vadd.f32 %v2222, %v1824
  %v2224 = vadd.f32 %v2223, %v1830
  %v2225 = vadd.f32 %v2224, %v1836
  %v2226 = vadd.f32 %v2225, %v1842
  %v2227 = vadd.f32 %v2226, %v1848
  %v2228 = vadd.f32 %v2227, %v1854
  %v2229 = vadd.f32 %v2228, %v1860
  %v2230 = vadd.f32 %v2229, %v1866
  %v2231 = vadd.f32 %v2230, %v1872
  %v2232 = vadd.f32 %v2231, %v1878
  %v2233 = vadd.f32 %v2232, %v1884
  %v2234 = vadd.f32 %v2233, %v1890
  %v2235 = vadd.f32 %v2234, %v1896
  %v2236 = vadd.f32 %v2235, %v1902
  %v2237 = vadd.f32 %v2236, %v1908
  %v2238 = vadd.f32 %v2237, %v1914
  %v2239 = vadd.f32 %v2238, %v1920
  %v2240 = vadd.f32 %v2239, %v1926
  %v2241 = vadd.f32 %v2240, %v1932
  %v2242 = vadd.f32 %v2241, %v1938
  %v2243 = vadd.f32 %v2242, %v1944
  %v2244 = vadd.f32 %v2243, %v1950
  %2245 = vst [vmem:[%s3] sm:$0xff] %v1999
  %2246 = vst [vmem:[%s3 + $0x8] sm:$0xff] %v2048
  %2247 = vst [vmem:[%s3 + $0x10] sm:$0xff] %v2097
  %2248 = vst [vmem:[%s3 + $0x18] sm:$0xff] %v2146
  %2249 = vst [vmem:[%s3 + $0x20] sm:$0xff] %v2195
  %2250 = vst [vmem:[%s3 + $0x28] sm:$0xff] %v2244
  // Predicated region
  $region10: #{rede_legal_forward.2} parent=0 // pred_check
    _
  $region11: #{rede_legal_forward.2} parent=0 // pred_check_branch
    %2252 = sbr.rel (0) target = $region13
  $region12: #{rede_legal_forward.2} parent=0 // pred_region
    _
  $region13: #{rede_legal_forward.2} parent=0 // pred_fallthru
    _
  // Predicated region
  $region14: #{rede_legal_forward.2} parent=0 // pred_check
    _
  $region15: #{rede_legal_forward.2} parent=0 // pred_check_branch
    %2254 = sbr.rel (0) target = $region17
  $region16: #{rede_legal_forward.2} parent=0 // pred_region
    _
  $region17: #{rede_legal_forward.2} parent=0 // pred_fallthru
    _
  // Predicated region
  $region18: #{rede_legal_forward.2} parent=0 // pred_check
    _
  $region19: #{rede_legal_forward.2} parent=0 // pred_check_branch
    %2256 = sbr.rel (0) target = $region21
  $region20: #{rede_legal_forward.2} parent=0 // pred_region
    _
  $region21: #{rede_legal_forward.2} parent=0 // pred_fallthru
    _
  // Predicated region
  $region22: #{rede_legal_forward.2} parent=0 // pred_check
    _
  $region23: #{rede_legal_forward.2} parent=0 // pred_check_branch
    %2258 = sbr.rel (0) target = $region25
  $region24: #{rede_legal_forward.2} parent=0 // pred_region
    _
  $region25: #{rede_legal_forward.2} parent=0 // pred_fallthru
    _

// kernel: rede_legal_forward.3
$region0: #{rede_legal_forward.3}
  #allocation0 [shape = 'u32[]', space=smem, size = 0x4, offset = 0x4, fixed_abs, tag = 'smem constant byte address 0x4 - core index']
  #allocation1 [shape = 'u32[144,128]{1,0:T(1,128)}', space=vmem, size = 0x12000, scoped, tag = 'internal scratch']
  %s0 = inlined_call_operand.vmem [shape: bf16[400,128], index: 0, kind: input, shape index: {}]
  %s1 = inlined_call_operand.vmem [shape: bf16[128,768], index: 1, kind: input, shape index: {}]
  %s2 = inlined_call_operand.vmem [shape: f32[1,768], index: 2, kind: input, shape index: {}]
  %s3 = inlined_call_operand.vmem [shape: f32[1,768], index: 3, kind: input, shape index: {}]
  %s4 = inlined_call_operand.vmem [shape: bf16[2,16,400], index: 4, kind: input, shape index: {}]
  %s5 = inlined_call_operand.vmem [shape: bf16[2,768,128], index: 5, kind: input, shape index: {}]
  %s6 = inlined_call_operand.vmem [shape: f32[1,128], index: 6, kind: input, shape index: {}]
  %s7 = inlined_call_operand.vmem [shape: f32[16,128], index: 7, kind: output, shape index: {}]
  %s8 = sld [smem:[#allocation0]]
  $region38: #{rede_legal_forward.3} parent=0
    _
  %s10 = ssub.s32 1, %s8
  %s11 = scalar_select 0, %s10, %s8
  // Predicated region
  $region2: #{rede_legal_forward.3} parent=0 // pred_check
    _
  $region3: #{rede_legal_forward.3} parent=0 // pred_check_branch
    %13 = sbr.rel (0) target = $region5
  $region4: #{rede_legal_forward.3} parent=0 // pred_region
    _
  $region5: #{rede_legal_forward.3} parent=0 // pred_fallthru
    _
  // Predicated region
  $region6: #{rede_legal_forward.3} parent=0 // pred_check
    _
  $region7: #{rede_legal_forward.3} parent=0 // pred_check_branch
    %15 = sbr.rel (0) target = $region9
  $region8: #{rede_legal_forward.3} parent=0 // pred_region
    _
  $region9: #{rede_legal_forward.3} parent=0 // pred_fallthru
    _
  // Predicated region
  $region10: #{rede_legal_forward.3} parent=0 // pred_check
    _
  $region11: #{rede_legal_forward.3} parent=0 // pred_check_branch
    %17 = sbr.rel (0) target = $region13
  $region12: #{rede_legal_forward.3} parent=0 // pred_region
    _
  $region13: #{rede_legal_forward.3} parent=0 // pred_fallthru
    _
  // Predicated region
  $region14: #{rede_legal_forward.3} parent=0 // pred_check
    _
  $region15: #{rede_legal_forward.3} parent=0 // pred_check_branch
    %19 = sbr.rel (0) target = $region17
  $region16: #{rede_legal_forward.3} parent=0 // pred_region
    _
  $region17: #{rede_legal_forward.3} parent=0 // pred_fallthru
    _
  // Predicated region
  $region18: #{rede_legal_forward.3} parent=0 // pred_check
    _
  $region19: #{rede_legal_forward.3} parent=0 // pred_check_branch
    %21 = sbr.rel (0) target = $region21
  $region20: #{rede_legal_forward.3} parent=0 // pred_region
    _
  $region21: #{rede_legal_forward.3} parent=0 // pred_fallthru
    _
  // Predicated region
  $region22: #{rede_legal_forward.3} parent=0 // pred_check
    _
  $region23: #{rede_legal_forward.3} parent=0 // pred_check_branch
    %23 = sbr.rel (0) target = $region25
  $region24: #{rede_legal_forward.3} parent=0 // pred_region
    _
  $region25: #{rede_legal_forward.3} parent=0 // pred_fallthru
    _
  // Predicated region
  $region26: #{rede_legal_forward.3} parent=0 // pred_check
    _
  $region27: #{rede_legal_forward.3} parent=0 // pred_check_branch
    %25 = sbr.rel (0) target = $region29
  $region28: #{rede_legal_forward.3} parent=0 // pred_region
    _
  $region29: #{rede_legal_forward.3} parent=0 // pred_fallthru
    _
  %v27 = vld [vmem:[%s0] sm:$0xf]
  %v28 = vld [vmem:[%s0 + $0x4] sm:$0xf]
  %v29 = vld [vmem:[%s0 + $0x8] sm:$0xf]
  %v30 = vld [vmem:[%s0 + $0xc] sm:$0xf]
  %v31 = vld [vmem:[%s0 + $0x10] sm:$0xf]
  %v32 = vld [vmem:[%s0 + $0x14] sm:$0xf]
  %v33 = vld [vmem:[%s0 + $0x18] sm:$0xf]
  %v34 = vld [vmem:[%s0 + $0x1c] sm:$0xf]
  %v35 = vld [vmem:[%s0 + $0x20] sm:$0xf]
  %v36 = vld [vmem:[%s0 + $0x24] sm:$0xf]
  %v37 = vld [vmem:[%s0 + $0x28] sm:$0xf]
  %v38 = vld [vmem:[%s0 + $0x2c] sm:$0xf]
  %v39 = vld [vmem:[%s0 + $0x30] sm:$0xf]
  %v40 = vld [vmem:[%s0 + $0x34] sm:$0xf]
  %v41 = vld [vmem:[%s0 + $0x38] sm:$0xf]
  %v42 = vld [vmem:[%s0 + $0x3c] sm:$0xf]
  %v43 = vld [vmem:[%s0 + $0x40] sm:$0xf]
  %v44 = vld [vmem:[%s0 + $0x44] sm:$0xf]
  %v45 = vld [vmem:[%s0 + $0x48] sm:$0xf]
  %v46 = vld [vmem:[%s0 + $0x4c] sm:$0xf]
  %v47 = vld [vmem:[%s0 + $0x50] sm:$0xf]
  %v48 = vld [vmem:[%s0 + $0x54] sm:$0xf]
  %v49 = vld [vmem:[%s0 + $0x58] sm:$0xf]
  %v50 = vld [vmem:[%s0 + $0x5c] sm:$0xf]
  %v51 = vld [vmem:[%s0 + $0x60] sm:$0xf]
  %v52 = vld [vmem:[%s0 + $0x64] sm:$0xf]
  %v53 = vld [vmem:[%s0 + $0x68] sm:$0xf]
  %v54 = vld [vmem:[%s0 + $0x6c] sm:$0xf]
  %v55 = vld [vmem:[%s0 + $0x70] sm:$0xf]
  %v56 = vld [vmem:[%s0 + $0x74] sm:$0xf]
  %v57 = vld [vmem:[%s0 + $0x78] sm:$0xf]
  %v58 = vld [vmem:[%s0 + $0x7c] sm:$0xf]
  %v59 = vld [vmem:[%s0 + $0x80] sm:$0xf]
  %v60 = vld [vmem:[%s0 + $0x84] sm:$0xf]
  %v61 = vld [vmem:[%s0 + $0x88] sm:$0xf]
  %v62 = vld [vmem:[%s0 + $0x8c] sm:$0xf]
  %v63 = vld [vmem:[%s0 + $0x90] sm:$0xf]
  %v64 = vld [vmem:[%s0 + $0x94] sm:$0xf]
  %v65 = vld [vmem:[%s0 + $0x98] sm:$0xf]
  %v66 = vld [vmem:[%s0 + $0x9c] sm:$0xf]
  %v67 = vld [vmem:[%s0 + $0xa0] sm:$0xf]
  %v68 = vld [vmem:[%s0 + $0xa4] sm:$0xf]
  %v69 = vld [vmem:[%s0 + $0xa8] sm:$0xf]
  %v70 = vld [vmem:[%s0 + $0xac] sm:$0xf]
  %v71 = vld [vmem:[%s0 + $0xb0] sm:$0xf]
  %v72 = vld [vmem:[%s0 + $0xb4] sm:$0xf]
  %v73 = vld [vmem:[%s0 + $0xb8] sm:$0xf]
  %v74 = vld [vmem:[%s0 + $0xbc] sm:$0xf]
  %v75 = vld [vmem:[%s0 + $0xc0] sm:$0xf]
  %v76 = vld [vmem:[%s0 + $0xc4] sm:$0xf]
  %v77 = vld [vmem:[%s1] sm:$0xff]
  %v78 = vld [vmem:[%s1 + $0x8] sm:$0xff]
  %v79 = vld [vmem:[%s1 + $0x10] sm:$0xff]
  %v80 = vld [vmem:[%s1 + $0x18] sm:$0xff]
  %v81 = vld [vmem:[%s1 + $0x20] sm:$0xff]
  %v82 = vld [vmem:[%s1 + $0x28] sm:$0xff]
  %v83 = vld [vmem:[%s1 + $0x30] sm:$0xff]
  %v84 = vld [vmem:[%s1 + $0x38] sm:$0xff]
  %v85 = vld [vmem:[%s1 + $0x40] sm:$0xff]
  %v86 = vld [vmem:[%s1 + $0x48] sm:$0xff]
  %v87 = vld [vmem:[%s1 + $0x50] sm:$0xff]
  %v88 = vld [vmem:[%s1 + $0x58] sm:$0xff]
  %v89 = vld [vmem:[%s1 + $0x60] sm:$0xff]
  %v90 = vld [vmem:[%s1 + $0x68] sm:$0xff]
  %v91 = vld [vmem:[%s1 + $0x70] sm:$0xff]
  %v92 = vld [vmem:[%s1 + $0x78] sm:$0xff]
  %v93 = vld [vmem:[%s1 + $0x80] sm:$0xff]
  %v94 = vld [vmem:[%s1 + $0x88] sm:$0xff]
  %v95 = vld [vmem:[%s1 + $0x90] sm:$0xff]
  %v96 = vld [vmem:[%s1 + $0x98] sm:$0xff]
  %v97 = vld [vmem:[%s1 + $0xa0] sm:$0xff]
  %v98 = vld [vmem:[%s1 + $0xa8] sm:$0xff]
  %v99 = vld [vmem:[%s1 + $0xb0] sm:$0xff]
  %v100 = vld [vmem:[%s1 + $0xb8] sm:$0xff]
  %v101 = vld [vmem:[%s1 + $0xc0] sm:$0xff]
  %v102 = vld [vmem:[%s1 + $0xc8] sm:$0xff]
  %v103 = vld [vmem:[%s1 + $0xd0] sm:$0xff]
  %v104 = vld [vmem:[%s1 + $0xd8] sm:$0xff]
  %v105 = vld [vmem:[%s1 + $0xe0] sm:$0xff]
  %v106 = vld [vmem:[%s1 + $0xe8] sm:$0xff]
  %v107 = vld [vmem:[%s1 + $0xf0] sm:$0xff]
  %v108 = vld [vmem:[%s1 + $0xf8] sm:$0xff]
  %v109 = vld [vmem:[%s1 + $0x100] sm:$0xff]
  %v110 = vld [vmem:[%s1 + $0x108] sm:$0xff]
  %v111 = vld [vmem:[%s1 + $0x110] sm:$0xff]
  %v112 = vld [vmem:[%s1 + $0x118] sm:$0xff]
  %v113 = vld [vmem:[%s1 + $0x120] sm:$0xff]
  %v114 = vld [vmem:[%s1 + $0x128] sm:$0xff]
  %v115 = vld [vmem:[%s1 + $0x130] sm:$0xff]
  %v116 = vld [vmem:[%s1 + $0x138] sm:$0xff]
  %v117 = vld [vmem:[%s1 + $0x140] sm:$0xff]
  %v118 = vld [vmem:[%s1 + $0x148] sm:$0xff]
  %v119 = vld [vmem:[%s1 + $0x150] sm:$0xff]
  %v120 = vld [vmem:[%s1 + $0x158] sm:$0xff]
  %v121 = vld [vmem:[%s1 + $0x160] sm:$0xff]
  %v122 = vld [vmem:[%s1 + $0x168] sm:$0xff]
  %v123 = vld [vmem:[%s1 + $0x170] sm:$0xff]
  %v124 = vld [vmem:[%s1 + $0x178] sm:$0xff]
  %v175 = vunpack.c.l.b16 %v27
  %v176 = vunpack.c.l.b16 %v28
  %v177 = vunpack.c.l.b16 %v29
  %v178 = vunpack.c.l.b16 %v30
  %v179 = vunpack.c.l.b16 %v31
  %v180 = vunpack.c.l.b16 %v32
  %v181 = vunpack.c.l.b16 %v33
  %v182 = vunpack.c.l.b16 %v34
  %v183 = vunpack.c.l.b16 %v35
  %v184 = vunpack.c.l.b16 %v36
  %v185 = vunpack.c.l.b16 %v37
  %v186 = vunpack.c.l.b16 %v38
  %v187 = vunpack.c.l.b16 %v39
  %v188 = vunpack.c.l.b16 %v40
  %v189 = vunpack.c.l.b16 %v41
  %v190 = vunpack.c.l.b16 %v42
  %v191 = vunpack.c.l.b16 %v43
  %v192 = vunpack.c.l.b16 %v44
  %v193 = vunpack.c.l.b16 %v45
  %v194 = vunpack.c.l.b16 %v46
  %v195 = vunpack.c.l.b16 %v47
  %v196 = vunpack.c.l.b16 %v48
  %v197 = vunpack.c.l.b16 %v49
  %v198 = vunpack.c.l.b16 %v50
  %v199 = vunpack.c.l.b16 %v51
  %v200 = vunpack.c.l.b16 %v52
  %v201 = vunpack.c.l.b16 %v53
  %v202 = vunpack.c.l.b16 %v54
  %v203 = vunpack.c.l.b16 %v55
  %v204 = vunpack.c.l.b16 %v56
  %v205 = vunpack.c.l.b16 %v57
  %v206 = vunpack.c.l.b16 %v58
  %v207 = vunpack.c.l.b16 %v59
  %v208 = vunpack.c.l.b16 %v60
  %v209 = vunpack.c.l.b16 %v61
  %v210 = vunpack.c.l.b16 %v62
  %v211 = vunpack.c.l.b16 %v63
  %v212 = vunpack.c.l.b16 %v64
  %v213 = vunpack.c.l.b16 %v65
  %v214 = vunpack.c.l.b16 %v66
  %v215 = vunpack.c.l.b16 %v67
  %v216 = vunpack.c.l.b16 %v68
  %v217 = vunpack.c.l.b16 %v69
  %v218 = vunpack.c.l.b16 %v70
  %v219 = vunpack.c.l.b16 %v71
  %v220 = vunpack.c.l.b16 %v72
  %v221 = vunpack.c.l.b16 %v73
  %v222 = vunpack.c.l.b16 %v74
  %v223 = vunpack.c.l.b16 %v75
  %v224 = vunpack.c.l.b16 %v76
  %v225 = vpack.c.b16 %v176, %v175
  %v226 = vpack.c.b16 %v178, %v177
  %v227 = vpack.c.b16 %v180, %v179
  %v228 = vpack.c.b16 %v182, %v181
  %v229 = vpack.c.b16 %v184, %v183
  %v230 = vpack.c.b16 %v186, %v185
  %v231 = vpack.c.b16 %v188, %v187
  %v232 = vpack.c.b16 %v190, %v189
  %v233 = vpack.c.b16 %v192, %v191
  %v234 = vpack.c.b16 %v194, %v193
  %v235 = vpack.c.b16 %v196, %v195
  %v236 = vpack.c.b16 %v198, %v197
  %v237 = vpack.c.b16 %v200, %v199
  %v238 = vpack.c.b16 %v202, %v201
  %v239 = vpack.c.b16 %v204, %v203
  %v240 = vpack.c.b16 %v206, %v205
  %v241 = vpack.c.b16 %v208, %v207
  %v242 = vpack.c.b16 %v210, %v209
  %v243 = vpack.c.b16 %v212, %v211
  %v244 = vpack.c.b16 %v214, %v213
  %v245 = vpack.c.b16 %v216, %v215
  %v246 = vpack.c.b16 %v218, %v217
  %v247 = vpack.c.b16 %v220, %v219
  %v248 = vpack.c.b16 %v222, %v221
  %v249 = vpack.c.b16 %v224, %v223
  %v323 = vunpack.c.l.b16 %v77
  %v324 = vunpack.c.h.b16 %v77
  %v325 = vunpack.c.l.b16 %v78
  %v326 = vunpack.c.h.b16 %v78
  %v327 = vunpack.c.l.b16 %v79
  %v328 = vunpack.c.h.b16 %v79
  %v329 = vunpack.c.l.b16 %v80
  %v330 = vunpack.c.h.b16 %v80
  %v331 = vunpack.c.l.b16 %v81
  %v332 = vunpack.c.h.b16 %v81
  %v333 = vunpack.c.l.b16 %v82
  %v334 = vunpack.c.h.b16 %v82
  %v335 = vunpack.c.l.b16 %v83
  %v336 = vunpack.c.h.b16 %v83
  %v337 = vunpack.c.l.b16 %v84
  %v338 = vunpack.c.h.b16 %v84
  %v339 = vunpack.c.l.b16 %v85
  %v340 = vunpack.c.h.b16 %v85
  %v341 = vunpack.c.l.b16 %v86
  %v342 = vunpack.c.h.b16 %v86
  %v343 = vunpack.c.l.b16 %v87
  %v344 = vunpack.c.h.b16 %v87
  %v345 = vunpack.c.l.b16 %v88
  %v346 = vunpack.c.h.b16 %v88
  %v347 = vunpack.c.l.b16 %v89
  %v348 = vunpack.c.h.b16 %v89
  %v349 = vunpack.c.l.b16 %v90
  %v350 = vunpack.c.h.b16 %v90
  %v351 = vunpack.c.l.b16 %v91
  %v352 = vunpack.c.h.b16 %v91
  %v353 = vunpack.c.l.b16 %v92
  %v354 = vunpack.c.h.b16 %v92
  %v355 = vunpack.c.l.b16 %v93
  %v356 = vunpack.c.h.b16 %v93
  %v357 = vunpack.c.l.b16 %v94
  %v358 = vunpack.c.h.b16 %v94
  %v359 = vunpack.c.l.b16 %v95
  %v360 = vunpack.c.h.b16 %v95
  %v361 = vunpack.c.l.b16 %v96
  %v362 = vunpack.c.h.b16 %v96
  %v363 = vunpack.c.l.b16 %v97
  %v364 = vunpack.c.h.b16 %v97
  %v365 = vunpack.c.l.b16 %v98
  %v366 = vunpack.c.h.b16 %v98
  %v367 = vunpack.c.l.b16 %v99
  %v368 = vunpack.c.h.b16 %v99
  %v369 = vunpack.c.l.b16 %v100
  %v370 = vunpack.c.h.b16 %v100
  %v371 = vunpack.c.l.b16 %v101
  %v372 = vunpack.c.h.b16 %v101
  %v373 = vunpack.c.l.b16 %v102
  %v374 = vunpack.c.h.b16 %v102
  %v375 = vunpack.c.l.b16 %v103
  %v376 = vunpack.c.h.b16 %v103
  %v377 = vunpack.c.l.b16 %v104
  %v378 = vunpack.c.h.b16 %v104
  %v379 = vunpack.c.l.b16 %v105
  %v380 = vunpack.c.h.b16 %v105
  %v381 = vunpack.c.l.b16 %v106
  %v382 = vunpack.c.h.b16 %v106
  %v383 = vunpack.c.l.b16 %v107
  %v384 = vunpack.c.h.b16 %v107
  %v385 = vunpack.c.l.b16 %v108
  %v386 = vunpack.c.h.b16 %v108
  %v387 = vunpack.c.l.b16 %v109
  %v388 = vunpack.c.h.b16 %v109
  %v389 = vunpack.c.l.b16 %v110
  %v390 = vunpack.c.h.b16 %v110
  %v391 = vunpack.c.l.b16 %v111
  %v392 = vunpack.c.h.b16 %v111
  %v393 = vunpack.c.l.b16 %v112
  %v394 = vunpack.c.h.b16 %v112
  %v395 = vunpack.c.l.b16 %v113
  %v396 = vunpack.c.h.b16 %v113
  %v397 = vunpack.c.l.b16 %v114
  %v398 = vunpack.c.h.b16 %v114
  %v399 = vunpack.c.l.b16 %v115
  %v400 = vunpack.c.h.b16 %v115
  %v401 = vunpack.c.l.b16 %v116
  %v402 = vunpack.c.h.b16 %v116
  %v403 = vunpack.c.l.b16 %v117
  %v404 = vunpack.c.h.b16 %v117
  %v405 = vunpack.c.l.b16 %v118
  %v406 = vunpack.c.h.b16 %v118
  %v407 = vunpack.c.l.b16 %v119
  %v408 = vunpack.c.h.b16 %v119
  %v409 = vunpack.c.l.b16 %v120
  %v410 = vunpack.c.h.b16 %v120
  %v411 = vunpack.c.l.b16 %v121
  %v412 = vunpack.c.h.b16 %v121
  %v413 = vunpack.c.l.b16 %v122
  %v414 = vunpack.c.h.b16 %v122
  %v415 = vunpack.c.l.b16 %v123
  %v416 = vunpack.c.h.b16 %v123
  %v417 = vunpack.c.l.b16 %v124
  %v418 = vunpack.c.h.b16 %v124
  %v419 = vpack.c.b16 %v329, %v323
  %v420 = vpack.c.b16 %v330, %v324
  %v421 = vpack.c.b16 %v331, %v325
  %v422 = vpack.c.b16 %v332, %v326
  %v423 = vpack.c.b16 %v333, %v327
  %v424 = vpack.c.b16 %v334, %v328
  %v425 = vpack.c.b16 %v341, %v335
  %v426 = vpack.c.b16 %v342, %v336
  %v427 = vpack.c.b16 %v343, %v337
  %v428 = vpack.c.b16 %v344, %v338
  %v429 = vpack.c.b16 %v345, %v339
  %v430 = vpack.c.b16 %v346, %v340
  %v431 = vpack.c.b16 %v353, %v347
  %v432 = vpack.c.b16 %v354, %v348
  %v433 = vpack.c.b16 %v355, %v349
  %v434 = vpack.c.b16 %v356, %v350
  %v435 = vpack.c.b16 %v357, %v351
  %v436 = vpack.c.b16 %v358, %v352
  %v437 = vpack.c.b16 %v365, %v359
  %v438 = vpack.c.b16 %v366, %v360
  %v439 = vpack.c.b16 %v367, %v361
  %v440 = vpack.c.b16 %v368, %v362
  %v441 = vpack.c.b16 %v369, %v363
  %v442 = vpack.c.b16 %v370, %v364
  %v443 = vpack.c.b16 %v377, %v371
  %v444 = vpack.c.b16 %v378, %v372
  %v445 = vpack.c.b16 %v379, %v373
  %v446 = vpack.c.b16 %v380, %v374
  %v447 = vpack.c.b16 %v381, %v375
  %v448 = vpack.c.b16 %v382, %v376
  %v449 = vpack.c.b16 %v389, %v383
  %v450 = vpack.c.b16 %v390, %v384
  %v451 = vpack.c.b16 %v391, %v385
  %v452 = vpack.c.b16 %v392, %v386
  %v453 = vpack.c.b16 %v393, %v387
  %v454 = vpack.c.b16 %v394, %v388
  %v455 = vpack.c.b16 %v401, %v395
  %v456 = vpack.c.b16 %v402, %v396
  %v457 = vpack.c.b16 %v403, %v397
  %v458 = vpack.c.b16 %v404, %v398
  %v459 = vpack.c.b16 %v405, %v399
  %v460 = vpack.c.b16 %v406, %v400
  %v461 = vpack.c.b16 %v413, %v407
  %v462 = vpack.c.b16 %v414, %v408
  %v463 = vpack.c.b16 %v415, %v409
  %v464 = vpack.c.b16 %v416, %v410
  %v465 = vpack.c.b16 %v417, %v411
  %v466 = vpack.c.b16 %v418, %v412
  %515 = vmatprep.subr.bf16.mxu0 %v420
  %516 = vmatpush1.bf16.msra.mxu0 %v419
  %517 = vmatprep.subr.bf16.mxu0 %v426
  %518 = vmatpush1.bf16.msra.mxu0 %v425
  %519 = vmatprep.subr.bf16.mxu0 %v432
  %520 = vmatpush1.bf16.msra.mxu0 %v431
  %521 = vmatprep.subr.bf16.mxu0 %v438
  %522 = vmatpush1.bf16.msra.mxu0 %v437
  %523 = vmatprep.subr.bf16.mxu0 %v444
  %524 = vmatpush1.bf16.msra.mxu0 %v443
  %525 = vmatprep.subr.bf16.mxu0 %v450
  %526 = vmatpush1.bf16.msra.mxu0 %v449
  %527 = vmatprep.subr.bf16.mxu0 %v456
  %528 = vmatpush1.bf16.msra.mxu0 %v455
  %529 = vmatprep.subr.bf16.mxu0 %v462
  %530 = vmatpush1.bf16.msra.mxu0 %v461
  %531 = vmatprep.subr.bf16.mxu0 0
  %532 = vmatpush1.bf16.msra.mxu0 0
  %533 = vmatprep.subr.bf16.mxu0 0
  %534 = vmatpush1.bf16.msra.mxu0 0
  %535 = vmatprep.subr.bf16.mxu0 0
  %536 = vmatpush1.bf16.msra.mxu0 0
  %537 = vmatprep.subr.bf16.mxu0 0
  %538 = vmatpush1.bf16.msra.mxu0 0
  %539 = vmatprep.subr.bf16.mxu0 0
  %540 = vmatpush1.bf16.msra.mxu0 0
  %541 = vmatprep.subr.bf16.mxu0 0
  %542 = vmatpush1.bf16.msra.mxu0 0
  %543 = vmatprep.subr.bf16.mxu0 0
  %544 = vmatpush1.bf16.msra.mxu0 0
  %545 = vmatprep.subr.bf16.mxu0 0
  %546 = vmatpush1.bf16.msra.mxu0 0
  %547 = vmatprep.mubr.bf16.mxu0 0
  %548 = vmatmul.mubr.bf16.gmra.mrb[0].mxu0 %v225
  %v549 = vpop.f32.mrb[0].mxu0
  %v550 = vadd.f32 0.0, %v549
  %v551 = vpop.f32.mrb[0].mxu0
  %v552 = vadd.f32 0.0, %v551
  %v553 = vpop.f32.mrb[0].mxu0
  %v554 = vadd.f32 0.0, %v553
  %v555 = vpop.f32.mrb[0].mxu0
  %v556 = vadd.f32 0.0, %v555
  %557 = vmatprep.mubr.bf16.mxu0 0
  %558 = vmatmul.mubr.bf16.gmra.mrb[0].mxu0 %v226
  %v559 = vpop.f32.mrb[0].mxu0
  %v560 = vadd.f32 0.0, %v559
  %v561 = vpop.f32.mrb[0].mxu0
  %v562 = vadd.f32 0.0, %v561
  %v563 = vpop.f32.mrb[0].mxu0
  %v564 = vadd.f32 0.0, %v563
  %v565 = vpop.f32.mrb[0].mxu0
  %v566 = vadd.f32 0.0, %v565
  %567 = vmatprep.mubr.bf16.mxu0 0
  %568 = vmatmul.mubr.bf16.gmra.mrb[0].mxu0 %v227
  %v569 = vpop.f32.mrb[0].mxu0
  %v570 = vadd.f32 0.0, %v569
  %v571 = vpop.f32.mrb[0].mxu0
  %v572 = vadd.f32 0.0, %v571
  %v573 = vpop.f32.mrb[0].mxu0
  %v574 = vadd.f32 0.0, %v573
  %v575 = vpop.f32.mrb[0].mxu0
  %v576 = vadd.f32 0.0, %v575
  %577 = vmatprep.mubr.bf16.mxu0 0
  %578 = vmatmul.mubr.bf16.gmra.mrb[0].mxu0 %v228
  %v579 = vpop.f32.mrb[0].mxu0
  %v580 = vadd.f32 0.0, %v579
  %v581 = vpop.f32.mrb[0].mxu0
  %v582 = vadd.f32 0.0, %v581
  %v583 = vpop.f32.mrb[0].mxu0
  %v584 = vadd.f32 0.0, %v583
  %v585 = vpop.f32.mrb[0].mxu0
  %v586 = vadd.f32 0.0, %v585
  %587 = vmatprep.mubr.bf16.mxu0 0
  %588 = vmatmul.mubr.bf16.gmra.mrb[0].mxu0 %v229
  %v589 = vpop.f32.mrb[0].mxu0
  %v590 = vadd.f32 0.0, %v589
  %v591 = vpop.f32.mrb[0].mxu0
  %v592 = vadd.f32 0.0, %v591
  %v593 = vpop.f32.mrb[0].mxu0
  %v594 = vadd.f32 0.0, %v593
  %v595 = vpop.f32.mrb[0].mxu0
  %v596 = vadd.f32 0.0, %v595
  %597 = vmatprep.mubr.bf16.mxu0 0
  %598 = vmatmul.mubr.bf16.gmra.mrb[0].mxu0 %v230
  %v599 = vpop.f32.mrb[0].mxu0
  %v600 = vadd.f32 0.0, %v599
  %v601 = vpop.f32.mrb[0].mxu0
  %v602 = vadd.f32 0.0, %v601
  %v603 = vpop.f32.mrb[0].mxu0
  %v604 = vadd.f32 0.0, %v603
  %v605 = vpop.f32.mrb[0].mxu0
  %v606 = vadd.f32 0.0, %v605
  %607 = vmatprep.mubr.bf16.mxu0 0
  %608 = vmatmul.mubr.bf16.gmra.mrb[0].mxu0 %v231
  %v609 = vpop.f32.mrb[0].mxu0
  %v610 = vadd.f32 0.0, %v609
  %v611 = vpop.f32.mrb[0].mxu0
  %v612 = vadd.f32 0.0, %v611
  %v613 = vpop.f32.mrb[0].mxu0
  %v614 = vadd.f32 0.0, %v613
  %v615 = vpop.f32.mrb[0].mxu0
  %v616 = vadd.f32 0.0, %v615
  %617 = vmatprep.mubr.bf16.mxu0 0
  %618 = vmatmul.mubr.bf16.gmra.mrb[0].mxu0 %v232
  %v619 = vpop.f32.mrb[0].mxu0
  %v620 = vadd.f32 0.0, %v619
  %v621 = vpop.f32.mrb[0].mxu0
  %v622 = vadd.f32 0.0, %v621
  %v623 = vpop.f32.mrb[0].mxu0
  %v624 = vadd.f32 0.0, %v623
  %v625 = vpop.f32.mrb[0].mxu0
  %v626 = vadd.f32 0.0, %v625
  %627 = vmatprep.mubr.bf16.mxu0 0
  %628 = vmatmul.mubr.bf16.gmra.mrb[0].mxu0 %v233
  %v629 = vpop.f32.mrb[0].mxu0
  %v630 = vadd.f32 0.0, %v629
  %v631 = vpop.f32.mrb[0].mxu0
  %v632 = vadd.f32 0.0, %v631
  %v633 = vpop.f32.mrb[0].mxu0
  %v634 = vadd.f32 0.0, %v633
  %v635 = vpop.f32.mrb[0].mxu0
  %v636 = vadd.f32 0.0, %v635
  %637 = vmatprep.mubr.bf16.mxu0 0
  %638 = vmatmul.mubr.bf16.gmra.mrb[0].mxu0 %v234
  %v639 = vpop.f32.mrb[0].mxu0
  %v640 = vadd.f32 0.0, %v639
  %v641 = vpop.f32.mrb[0].mxu0
  %v642 = vadd.f32 0.0, %v641
  %v643 = vpop.f32.mrb[0].mxu0
  %v644 = vadd.f32 0.0, %v643
  %v645 = vpop.f32.mrb[0].mxu0
  %v646 = vadd.f32 0.0, %v645
  %647 = vmatprep.mubr.bf16.mxu0 0
  %648 = vmatmul.mubr.bf16.gmra.mrb[0].mxu0 %v235
  %v649 = vpop.f32.mrb[0].mxu0
  %v650 = vadd.f32 0.0, %v649
  %v651 = vpop.f32.mrb[0].mxu0
  %v652 = vadd.f32 0.0, %v651
  %v653 = vpop.f32.mrb[0].mxu0
  %v654 = vadd.f32 0.0, %v653
  %v655 = vpop.f32.mrb[0].mxu0
  %v656 = vadd.f32 0.0, %v655
  %657 = vmatprep.mubr.bf16.mxu0 0
  %658 = vmatmul.mubr.bf16.gmra.mrb[0].mxu0 %v236
  %v659 = vpop.f32.mrb[0].mxu0
  %v660 = vadd.f32 0.0, %v659
  %v661 = vpop.f32.mrb[0].mxu0
  %v662 = vadd.f32 0.0, %v661
  %v663 = vpop.f32.mrb[0].mxu0
  %v664 = vadd.f32 0.0, %v663
  %v665 = vpop.f32.mrb[0].mxu0
  %v666 = vadd.f32 0.0, %v665
  %667 = vmatprep.mubr.bf16.mxu0 0
  %668 = vmatmul.mubr.bf16.gmra.mrb[0].mxu0 %v237
  %v669 = vpop.f32.mrb[0].mxu0
  %v670 = vadd.f32 0.0, %v669
  %v671 = vpop.f32.mrb[0].mxu0
  %v672 = vadd.f32 0.0, %v671
  %v673 = vpop.f32.mrb[0].mxu0
  %v674 = vadd.f32 0.0, %v673
  %v675 = vpop.f32.mrb[0].mxu0
  %v676 = vadd.f32 0.0, %v675
  %677 = vmatprep.mubr.bf16.mxu0 0
  %678 = vmatmul.mubr.bf16.gmra.mrb[0].mxu0 %v238
  %v679 = vpop.f32.mrb[0].mxu0
  %v680 = vadd.f32 0.0, %v679
  %v681 = vpop.f32.mrb[0].mxu0
  %v682 = vadd.f32 0.0, %v681
  %v683 = vpop.f32.mrb[0].mxu0
  %v684 = vadd.f32 0.0, %v683
  %v685 = vpop.f32.mrb[0].mxu0
  %v686 = vadd.f32 0.0, %v685
  %687 = vmatprep.mubr.bf16.mxu0 0
  %688 = vmatmul.mubr.bf16.gmra.mrb[0].mxu0 %v239
  %v689 = vpop.f32.mrb[0].mxu0
  %v690 = vadd.f32 0.0, %v689
  %v691 = vpop.f32.mrb[0].mxu0
  %v692 = vadd.f32 0.0, %v691
  %v693 = vpop.f32.mrb[0].mxu0
  %v694 = vadd.f32 0.0, %v693
  %v695 = vpop.f32.mrb[0].mxu0
  %v696 = vadd.f32 0.0, %v695
  %697 = vmatprep.mubr.bf16.mxu0 0
  %698 = vmatmul.mubr.bf16.gmra.mrb[0].mxu0 %v240
  %v699 = vpop.f32.mrb[0].mxu0
  %v700 = vadd.f32 0.0, %v699
  %v701 = vpop.f32.mrb[0].mxu0
  %v702 = vadd.f32 0.0, %v701
  %v703 = vpop.f32.mrb[0].mxu0
  %v704 = vadd.f32 0.0, %v703
  %v705 = vpop.f32.mrb[0].mxu0
  %v706 = vadd.f32 0.0, %v705
  %707 = vmatprep.mubr.bf16.mxu0 0
  %708 = vmatmul.mubr.bf16.gmra.mrb[0].mxu0 %v241
  %v709 = vpop.f32.mrb[0].mxu0
  %v710 = vadd.f32 0.0, %v709
  %v711 = vpop.f32.mrb[0].mxu0
  %v712 = vadd.f32 0.0, %v711
  %v713 = vpop.f32.mrb[0].mxu0
  %v714 = vadd.f32 0.0, %v713
  %v715 = vpop.f32.mrb[0].mxu0
  %v716 = vadd.f32 0.0, %v715
  %717 = vmatprep.mubr.bf16.mxu0 0
  %718 = vmatmul.mubr.bf16.gmra.mrb[0].mxu0 %v242
  %v719 = vpop.f32.mrb[0].mxu0
  %v720 = vadd.f32 0.0, %v719
  %v721 = vpop.f32.mrb[0].mxu0
  %v722 = vadd.f32 0.0, %v721
  %v723 = vpop.f32.mrb[0].mxu0
  %v724 = vadd.f32 0.0, %v723
  %v725 = vpop.f32.mrb[0].mxu0
  %v726 = vadd.f32 0.0, %v725
  %727 = vmatprep.mubr.bf16.mxu0 0
  %728 = vmatmul.mubr.bf16.gmra.mrb[0].mxu0 %v243
  %v729 = vpop.f32.mrb[0].mxu0
  %v730 = vadd.f32 0.0, %v729
  %v731 = vpop.f32.mrb[0].mxu0
  %v732 = vadd.f32 0.0, %v731
  %v733 = vpop.f32.mrb[0].mxu0
  %v734 = vadd.f32 0.0, %v733
  %v735 = vpop.f32.mrb[0].mxu0
  %v736 = vadd.f32 0.0, %v735
  %737 = vmatprep.mubr.bf16.mxu0 0
  %738 = vmatmul.mubr.bf16.gmra.mrb[0].mxu0 %v244
  %v739 = vpop.f32.mrb[0].mxu0
  %v740 = vadd.f32 0.0, %v739
  %v741 = vpop.f32.mrb[0].mxu0
  %v742 = vadd.f32 0.0, %v741
  %v743 = vpop.f32.mrb[0].mxu0
  %v744 = vadd.f32 0.0, %v743
  %v745 = vpop.f32.mrb[0].mxu0
  %v746 = vadd.f32 0.0, %v745
  %747 = vmatprep.mubr.bf16.mxu0 0
  %748 = vmatmul.mubr.bf16.gmra.mrb[0].mxu0 %v245
  %v749 = vpop.f32.mrb[0].mxu0
  %v750 = vadd.f32 0.0, %v749
  %v751 = vpop.f32.mrb[0].mxu0
  %v752 = vadd.f32 0.0, %v751
  %v753 = vpop.f32.mrb[0].mxu0
  %v754 = vadd.f32 0.0, %v753
  %v755 = vpop.f32.mrb[0].mxu0
  %v756 = vadd.f32 0.0, %v755
  %757 = vmatprep.mubr.bf16.mxu0 0
  %758 = vmatmul.mubr.bf16.gmra.mrb[0].mxu0 %v246
  %v759 = vpop.f32.mrb[0].mxu0
  %v760 = vadd.f32 0.0, %v759
  %v761 = vpop.f32.mrb[0].mxu0
  %v762 = vadd.f32 0.0, %v761
  %v763 = vpop.f32.mrb[0].mxu0
  %v764 = vadd.f32 0.0, %v763
  %v765 = vpop.f32.mrb[0].mxu0
  %v766 = vadd.f32 0.0, %v765
  %767 = vmatprep.mubr.bf16.mxu0 0
  %768 = vmatmul.mubr.bf16.gmra.mrb[0].mxu0 %v247
  %v769 = vpop.f32.mrb[0].mxu0
  %v770 = vadd.f32 0.0, %v769
  %v771 = vpop.f32.mrb[0].mxu0
  %v772 = vadd.f32 0.0, %v771
  %v773 = vpop.f32.mrb[0].mxu0
  %v774 = vadd.f32 0.0, %v773
  %v775 = vpop.f32.mrb[0].mxu0
  %v776 = vadd.f32 0.0, %v775
  %777 = vmatprep.mubr.bf16.mxu0 0
  %778 = vmatmul.mubr.bf16.gmra.mrb[0].mxu0 %v248
  %v779 = vpop.f32.mrb[0].mxu0
  %v780 = vadd.f32 0.0, %v779
  %v781 = vpop.f32.mrb[0].mxu0
  %v782 = vadd.f32 0.0, %v781
  %v783 = vpop.f32.mrb[0].mxu0
  %v784 = vadd.f32 0.0, %v783
  %v785 = vpop.f32.mrb[0].mxu0
  %v786 = vadd.f32 0.0, %v785
  %787 = vmatprep.mubr.bf16.mxu0 0
  %788 = vmatmul.mubr.bf16.gmra.mrb[0].mxu0 %v249
  %v789 = vpop.f32.mrb[0].mxu0
  %v790 = vadd.f32 0.0, %v789
  %v791 = vpop.f32.mrb[0].mxu0
  %v792 = vadd.f32 0.0, %v791
  %v793 = vpop.f32.mrb[0].mxu0
  %v794 = vadd.f32 0.0, %v793
  %v795 = vpop.f32.mrb[0].mxu0
  %v796 = vadd.f32 0.0, %v795
  %797 = vdwg.mxu0
  %798 = vmatprep.subr.bf16.mxu0 %v422
  %799 = vmatpush1.bf16.msra.mxu0 %v421
  %800 = vmatprep.subr.bf16.mxu0 %v428
  %801 = vmatpush1.bf16.msra.mxu0 %v427
  %802 = vmatprep.subr.bf16.mxu0 %v434
  %803 = vmatpush1.bf16.msra.mxu0 %v433
  %804 = vmatprep.subr.bf16.mxu0 %v440
  %805 = vmatpush1.bf16.msra.mxu0 %v439
  %806 = vmatprep.subr.bf16.mxu0 %v446
  %807 = vmatpush1.bf16.msra.mxu0 %v445
  %808 = vmatprep.subr.bf16.mxu0 %v452
  %809 = vmatpush1.bf16.msra.mxu0 %v451
  %810 = vmatprep.subr.bf16.mxu0 %v458
  %811 = vmatpush1.bf16.msra.mxu0 %v457
  %812 = vmatprep.subr.bf16.mxu0 %v464
  %813 = vmatpush1.bf16.msra.mxu0 %v463
  %814 = vmatprep.subr.bf16.mxu0 0
  %815 = vmatpush1.bf16.msra.mxu0 0
  %816 = vmatprep.subr.bf16.mxu0 0
  %817 = vmatpush1.bf16.msra.mxu0 0
  %818 = vmatprep.subr.bf16.mxu0 0
  %819 = vmatpush1.bf16.msra.mxu0 0
  %820 = vmatprep.subr.bf16.mxu0 0
  %821 = vmatpush1.bf16.msra.mxu0 0
  %822 = vmatprep.subr.bf16.mxu0 0
  %823 = vmatpush1.bf16.msra.mxu0 0
  %824 = vmatprep.subr.bf16.mxu0 0
  %825 = vmatpush1.bf16.msra.mxu0 0
  %826 = vmatprep.subr.bf16.mxu0 0
  %827 = vmatpush1.bf16.msra.mxu0 0
  %828 = vmatprep.subr.bf16.mxu0 0
  %829 = vmatpush1.bf16.msra.mxu0 0
  %830 = vmatprep.mubr.bf16.mxu0 0
  %831 = vmatmul.mubr.bf16.gmra.mrb[0].mxu0 %v225
  %v832 = vpop.f32.mrb[0].mxu0
  %v833 = vadd.f32 0.0, %v832
  %v834 = vpop.f32.mrb[0].mxu0
  %v835 = vadd.f32 0.0, %v834
  %v836 = vpop.f32.mrb[0].mxu0
  %v837 = vadd.f32 0.0, %v836
  %v838 = vpop.f32.mrb[0].mxu0
  %v839 = vadd.f32 0.0, %v838
  %840 = vmatprep.mubr.bf16.mxu0 0
  %841 = vmatmul.mubr.bf16.gmra.mrb[0].mxu0 %v226
  %v842 = vpop.f32.mrb[0].mxu0
  %v843 = vadd.f32 0.0, %v842
  %v844 = vpop.f32.mrb[0].mxu0
  %v845 = vadd.f32 0.0, %v844
  %v846 = vpop.f32.mrb[0].mxu0
  %v847 = vadd.f32 0.0, %v846
  %v848 = vpop.f32.mrb[0].mxu0
  %v849 = vadd.f32 0.0, %v848
  %850 = vmatprep.mubr.bf16.mxu0 0
  %851 = vmatmul.mubr.bf16.gmra.mrb[0].mxu0 %v227
  %v852 = vpop.f32.mrb[0].mxu0
  %v853 = vadd.f32 0.0, %v852
  %v854 = vpop.f32.mrb[0].mxu0
  %v855 = vadd.f32 0.0, %v854
  %v856 = vpop.f32.mrb[0].mxu0
  %v857 = vadd.f32 0.0, %v856
  %v858 = vpop.f32.mrb[0].mxu0
  %v859 = vadd.f32 0.0, %v858
  %860 = vmatprep.mubr.bf16.mxu0 0
  %861 = vmatmul.mubr.bf16.gmra.mrb[0].mxu0 %v228
  %v862 = vpop.f32.mrb[0].mxu0
  %v863 = vadd.f32 0.0, %v862
  %v864 = vpop.f32.mrb[0].mxu0
  %v865 = vadd.f32 0.0, %v864
  %v866 = vpop.f32.mrb[0].mxu0
  %v867 = vadd.f32 0.0, %v866
  %v868 = vpop.f32.mrb[0].mxu0
  %v869 = vadd.f32 0.0, %v868
  %870 = vmatprep.mubr.bf16.mxu0 0
  %871 = vmatmul.mubr.bf16.gmra.mrb[0].mxu0 %v229
  %v872 = vpop.f32.mrb[0].mxu0
  %v873 = vadd.f32 0.0, %v872
  %v874 = vpop.f32.mrb[0].mxu0
  %v875 = vadd.f32 0.0, %v874
  %v876 = vpop.f32.mrb[0].mxu0
  %v877 = vadd.f32 0.0, %v876
  %v878 = vpop.f32.mrb[0].mxu0
  %v879 = vadd.f32 0.0, %v878
  %880 = vmatprep.mubr.bf16.mxu0 0
  %881 = vmatmul.mubr.bf16.gmra.mrb[0].mxu0 %v230
  %v882 = vpop.f32.mrb[0].mxu0
  %v883 = vadd.f32 0.0, %v882
  %v884 = vpop.f32.mrb[0].mxu0
  %v885 = vadd.f32 0.0, %v884
  %v886 = vpop.f32.mrb[0].mxu0
  %v887 = vadd.f32 0.0, %v886
  %v888 = vpop.f32.mrb[0].mxu0
  %v889 = vadd.f32 0.0, %v888
  %890 = vmatprep.mubr.bf16.mxu0 0
  %891 = vmatmul.mubr.bf16.gmra.mrb[0].mxu0 %v231
  %v892 = vpop.f32.mrb[0].mxu0
  %v893 = vadd.f32 0.0, %v892
  %v894 = vpop.f32.mrb[0].mxu0
  %v895 = vadd.f32 0.0, %v894
  %v896 = vpop.f32.mrb[0].mxu0
  %v897 = vadd.f32 0.0, %v896
  %v898 = vpop.f32.mrb[0].mxu0
  %v899 = vadd.f32 0.0, %v898
  %900 = vmatprep.mubr.bf16.mxu0 0
  %901 = vmatmul.mubr.bf16.gmra.mrb[0].mxu0 %v232
  %v902 = vpop.f32.mrb[0].mxu0
  %v903 = vadd.f32 0.0, %v902
  %v904 = vpop.f32.mrb[0].mxu0
  %v905 = vadd.f32 0.0, %v904
  %v906 = vpop.f32.mrb[0].mxu0
  %v907 = vadd.f32 0.0, %v906
  %v908 = vpop.f32.mrb[0].mxu0
  %v909 = vadd.f32 0.0, %v908
  %910 = vmatprep.mubr.bf16.mxu0 0
  %911 = vmatmul.mubr.bf16.gmra.mrb[0].mxu0 %v233
  %v912 = vpop.f32.mrb[0].mxu0
  %v913 = vadd.f32 0.0, %v912
  %v914 = vpop.f32.mrb[0].mxu0
  %v915 = vadd.f32 0.0, %v914
  %v916 = vpop.f32.mrb[0].mxu0
  %v917 = vadd.f32 0.0, %v916
  %v918 = vpop.f32.mrb[0].mxu0
  %v919 = vadd.f32 0.0, %v918
  %920 = vmatprep.mubr.bf16.mxu0 0
  %921 = vmatmul.mubr.bf16.gmra.mrb[0].mxu0 %v234
  %v922 = vpop.f32.mrb[0].mxu0
  %v923 = vadd.f32 0.0, %v922
  %v924 = vpop.f32.mrb[0].mxu0
  %v925 = vadd.f32 0.0, %v924
  %v926 = vpop.f32.mrb[0].mxu0
  %v927 = vadd.f32 0.0, %v926
  %v928 = vpop.f32.mrb[0].mxu0
  %v929 = vadd.f32 0.0, %v928
  %930 = vmatprep.mubr.bf16.mxu0 0
  %931 = vmatmul.mubr.bf16.gmra.mrb[0].mxu0 %v235
  %v932 = vpop.f32.mrb[0].mxu0
  %v933 = vadd.f32 0.0, %v932
  %v934 = vpop.f32.mrb[0].mxu0
  %v935 = vadd.f32 0.0, %v934
  %v936 = vpop.f32.mrb[0].mxu0
  %v937 = vadd.f32 0.0, %v936
  %v938 = vpop.f32.mrb[0].mxu0
  %v939 = vadd.f32 0.0, %v938
  %940 = vmatprep.mubr.bf16.mxu0 0
  %941 = vmatmul.mubr.bf16.gmra.mrb[0].mxu0 %v236
  %v942 = vpop.f32.mrb[0].mxu0
  %v943 = vadd.f32 0.0, %v942
  %v944 = vpop.f32.mrb[0].mxu0
  %v945 = vadd.f32 0.0, %v944
  %v946 = vpop.f32.mrb[0].mxu0
  %v947 = vadd.f32 0.0, %v946
  %v948 = vpop.f32.mrb[0].mxu0
  %v949 = vadd.f32 0.0, %v948
  %950 = vmatprep.mubr.bf16.mxu0 0
  %951 = vmatmul.mubr.bf16.gmra.mrb[0].mxu0 %v237
  %v952 = vpop.f32.mrb[0].mxu0
  %v953 = vadd.f32 0.0, %v952
  %v954 = vpop.f32.mrb[0].mxu0
  %v955 = vadd.f32 0.0, %v954
  %v956 = vpop.f32.mrb[0].mxu0
  %v957 = vadd.f32 0.0, %v956
  %v958 = vpop.f32.mrb[0].mxu0
  %v959 = vadd.f32 0.0, %v958
  %960 = vmatprep.mubr.bf16.mxu0 0
  %961 = vmatmul.mubr.bf16.gmra.mrb[0].mxu0 %v238
  %v962 = vpop.f32.mrb[0].mxu0
  %v963 = vadd.f32 0.0, %v962
  %v964 = vpop.f32.mrb[0].mxu0
  %v965 = vadd.f32 0.0, %v964
  %v966 = vpop.f32.mrb[0].mxu0
  %v967 = vadd.f32 0.0, %v966
  %v968 = vpop.f32.mrb[0].mxu0
  %v969 = vadd.f32 0.0, %v968
  %970 = vmatprep.mubr.bf16.mxu0 0
  %971 = vmatmul.mubr.bf16.gmra.mrb[0].mxu0 %v239
  %v972 = vpop.f32.mrb[0].mxu0
  %v973 = vadd.f32 0.0, %v972
  %v974 = vpop.f32.mrb[0].mxu0
  %v975 = vadd.f32 0.0, %v974
  %v976 = vpop.f32.mrb[0].mxu0
  %v977 = vadd.f32 0.0, %v976
  %v978 = vpop.f32.mrb[0].mxu0
  %v979 = vadd.f32 0.0, %v978
  %980 = vmatprep.mubr.bf16.mxu0 0
  %981 = vmatmul.mubr.bf16.gmra.mrb[0].mxu0 %v240
  %v982 = vpop.f32.mrb[0].mxu0
  %v983 = vadd.f32 0.0, %v982
  %v984 = vpop.f32.mrb[0].mxu0
  %v985 = vadd.f32 0.0, %v984
  %v986 = vpop.f32.mrb[0].mxu0
  %v987 = vadd.f32 0.0, %v986
  %v988 = vpop.f32.mrb[0].mxu0
  %v989 = vadd.f32 0.0, %v988
  %990 = vmatprep.mubr.bf16.mxu0 0
  %991 = vmatmul.mubr.bf16.gmra.mrb[0].mxu0 %v241
  %v992 = vpop.f32.mrb[0].mxu0
  %v993 = vadd.f32 0.0, %v992
  %v994 = vpop.f32.mrb[0].mxu0
  %v995 = vadd.f32 0.0, %v994
  %v996 = vpop.f32.mrb[0].mxu0
  %v997 = vadd.f32 0.0, %v996
  %v998 = vpop.f32.mrb[0].mxu0
  %v999 = vadd.f32 0.0, %v998
  %1000 = vmatprep.mubr.bf16.mxu0 0
  %1001 = vmatmul.mubr.bf16.gmra.mrb[0].mxu0 %v242
  %v1002 = vpop.f32.mrb[0].mxu0
  %v1003 = vadd.f32 0.0, %v1002
  %v1004 = vpop.f32.mrb[0].mxu0
  %v1005 = vadd.f32 0.0, %v1004
  %v1006 = vpop.f32.mrb[0].mxu0
  %v1007 = vadd.f32 0.0, %v1006
  %v1008 = vpop.f32.mrb[0].mxu0
  %v1009 = vadd.f32 0.0, %v1008
  %1010 = vmatprep.mubr.bf16.mxu0 0
  %1011 = vmatmul.mubr.bf16.gmra.mrb[0].mxu0 %v243
  %v1012 = vpop.f32.mrb[0].mxu0
  %v1013 = vadd.f32 0.0, %v1012
  %v1014 = vpop.f32.mrb[0].mxu0
  %v1015 = vadd.f32 0.0, %v1014
  %v1016 = vpop.f32.mrb[0].mxu0
  %v1017 = vadd.f32 0.0, %v1016
  %v1018 = vpop.f32.mrb[0].mxu0
  %v1019 = vadd.f32 0.0, %v1018
  %1020 = vmatprep.mubr.bf16.mxu0 0
  %1021 = vmatmul.mubr.bf16.gmra.mrb[0].mxu0 %v244
  %v1022 = vpop.f32.mrb[0].mxu0
  %v1023 = vadd.f32 0.0, %v1022
  %v1024 = vpop.f32.mrb[0].mxu0
  %v1025 = vadd.f32 0.0, %v1024
  %v1026 = vpop.f32.mrb[0].mxu0
  %v1027 = vadd.f32 0.0, %v1026
  %v1028 = vpop.f32.mrb[0].mxu0
  %v1029 = vadd.f32 0.0, %v1028
  %1030 = vmatprep.mubr.bf16.mxu0 0
  %1031 = vmatmul.mubr.bf16.gmra.mrb[0].mxu0 %v245
  %v1032 = vpop.f32.mrb[0].mxu0
  %v1033 = vadd.f32 0.0, %v1032
  %v1034 = vpop.f32.mrb[0].mxu0
  %v1035 = vadd.f32 0.0, %v1034
  %v1036 = vpop.f32.mrb[0].mxu0
  %v1037 = vadd.f32 0.0, %v1036
  %v1038 = vpop.f32.mrb[0].mxu0
  %v1039 = vadd.f32 0.0, %v1038
  %1040 = vmatprep.mubr.bf16.mxu0 0
  %1041 = vmatmul.mubr.bf16.gmra.mrb[0].mxu0 %v246
  %v1042 = vpop.f32.mrb[0].mxu0
  %v1043 = vadd.f32 0.0, %v1042
  %v1044 = vpop.f32.mrb[0].mxu0
  %v1045 = vadd.f32 0.0, %v1044
  %v1046 = vpop.f32.mrb[0].mxu0
  %v1047 = vadd.f32 0.0, %v1046
  %v1048 = vpop.f32.mrb[0].mxu0
  %v1049 = vadd.f32 0.0, %v1048
  %1050 = vmatprep.mubr.bf16.mxu0 0
  %1051 = vmatmul.mubr.bf16.gmra.mrb[0].mxu0 %v247
  %v1052 = vpop.f32.mrb[0].mxu0
  %v1053 = vadd.f32 0.0, %v1052
  %v1054 = vpop.f32.mrb[0].mxu0
  %v1055 = vadd.f32 0.0, %v1054
  %v1056 = vpop.f32.mrb[0].mxu0
  %v1057 = vadd.f32 0.0, %v1056
  %v1058 = vpop.f32.mrb[0].mxu0
  %v1059 = vadd.f32 0.0, %v1058
  %1060 = vmatprep.mubr.bf16.mxu0 0
  %1061 = vmatmul.mubr.bf16.gmra.mrb[0].mxu0 %v248
  %v1062 = vpop.f32.mrb[0].mxu0
  %v1063 = vadd.f32 0.0, %v1062
  %v1064 = vpop.f32.mrb[0].mxu0
  %v1065 = vadd.f32 0.0, %v1064
  %v1066 = vpop.f32.mrb[0].mxu0
  %v1067 = vadd.f32 0.0, %v1066
  %v1068 = vpop.f32.mrb[0].mxu0
  %v1069 = vadd.f32 0.0, %v1068
  %1070 = vmatprep.mubr.bf16.mxu0 0
  %1071 = vmatmul.mubr.bf16.gmra.mrb[0].mxu0 %v249
  %v1072 = vpop.f32.mrb[0].mxu0
  %v1073 = vadd.f32 0.0, %v1072
  %v1074 = vpop.f32.mrb[0].mxu0
  %v1075 = vadd.f32 0.0, %v1074
  %v1076 = vpop.f32.mrb[0].mxu0
  %v1077 = vadd.f32 0.0, %v1076
  %v1078 = vpop.f32.mrb[0].mxu0
  %v1079 = vadd.f32 0.0, %v1078
  %1080 = vdwg.mxu0
  %1081 = vmatprep.subr.bf16.mxu0 %v424
  %1082 = vmatpush1.bf16.msra.mxu0 %v423
  %1083 = vmatprep.subr.bf16.mxu0 %v430
  %1084 = vmatpush1.bf16.msra.mxu0 %v429
  %1085 = vmatprep.subr.bf16.mxu0 %v436
  %1086 = vmatpush1.bf16.msra.mxu0 %v435
  %1087 = vmatprep.subr.bf16.mxu0 %v442
  %1088 = vmatpush1.bf16.msra.mxu0 %v441
  %1089 = vmatprep.subr.bf16.mxu0 %v448
  %1090 = vmatpush1.bf16.msra.mxu0 %v447
  %1091 = vmatprep.subr.bf16.mxu0 %v454
  %1092 = vmatpush1.bf16.msra.mxu0 %v453
  %1093 = vmatprep.subr.bf16.mxu0 %v460
  %1094 = vmatpush1.bf16.msra.mxu0 %v459
  %1095 = vmatprep.subr.bf16.mxu0 %v466
  %1096 = vmatpush1.bf16.msra.mxu0 %v465
  %1097 = vmatprep.subr.bf16.mxu0 0
  %1098 = vmatpush1.bf16.msra.mxu0 0
  %1099 = vmatprep.subr.bf16.mxu0 0
  %1100 = vmatpush1.bf16.msra.mxu0 0
  %1101 = vmatprep.subr.bf16.mxu0 0
  %1102 = vmatpush1.bf16.msra.mxu0 0
  %1103 = vmatprep.subr.bf16.mxu0 0
  %1104 = vmatpush1.bf16.msra.mxu0 0
  %1105 = vmatprep.subr.bf16.mxu0 0
  %1106 = vmatpush1.bf16.msra.mxu0 0
  %1107 = vmatprep.subr.bf16.mxu0 0
  %1108 = vmatpush1.bf16.msra.mxu0 0
  %1109 = vmatprep.subr.bf16.mxu0 0
  %1110 = vmatpush1.bf16.msra.mxu0 0
  %1111 = vmatprep.subr.bf16.mxu0 0
  %1112 = vmatpush1.bf16.msra.mxu0 0
  %1113 = vmatprep.mubr.bf16.mxu0 0
  %1114 = vmatmul.mubr.bf16.gmra.mrb[0].mxu0 %v225
  %v1115 = vpop.f32.mrb[0].mxu0
  %v1116 = vadd.f32 0.0, %v1115
  %v1117 = vpop.f32.mrb[0].mxu0
  %v1118 = vadd.f32 0.0, %v1117
  %v1119 = vpop.f32.mrb[0].mxu0
  %v1120 = vadd.f32 0.0, %v1119
  %v1121 = vpop.f32.mrb[0].mxu0
  %v1122 = vadd.f32 0.0, %v1121
  %1123 = vmatprep.mubr.bf16.mxu0 0
  %1124 = vmatmul.mubr.bf16.gmra.mrb[0].mxu0 %v226
  %v1125 = vpop.f32.mrb[0].mxu0
  %v1126 = vadd.f32 0.0, %v1125
  %v1127 = vpop.f32.mrb[0].mxu0
  %v1128 = vadd.f32 0.0, %v1127
  %v1129 = vpop.f32.mrb[0].mxu0
  %v1130 = vadd.f32 0.0, %v1129
  %v1131 = vpop.f32.mrb[0].mxu0
  %v1132 = vadd.f32 0.0, %v1131
  %1133 = vmatprep.mubr.bf16.mxu0 0
  %1134 = vmatmul.mubr.bf16.gmra.mrb[0].mxu0 %v227
  %v1135 = vpop.f32.mrb[0].mxu0
  %v1136 = vadd.f32 0.0, %v1135
  %v1137 = vpop.f32.mrb[0].mxu0
  %v1138 = vadd.f32 0.0, %v1137
  %v1139 = vpop.f32.mrb[0].mxu0
  %v1140 = vadd.f32 0.0, %v1139
  %v1141 = vpop.f32.mrb[0].mxu0
  %v1142 = vadd.f32 0.0, %v1141
  %1143 = vmatprep.mubr.bf16.mxu0 0
  %1144 = vmatmul.mubr.bf16.gmra.mrb[0].mxu0 %v228
  %v1145 = vpop.f32.mrb[0].mxu0
  %v1146 = vadd.f32 0.0, %v1145
  %v1147 = vpop.f32.mrb[0].mxu0
  %v1148 = vadd.f32 0.0, %v1147
  %v1149 = vpop.f32.mrb[0].mxu0
  %v1150 = vadd.f32 0.0, %v1149
  %v1151 = vpop.f32.mrb[0].mxu0
  %v1152 = vadd.f32 0.0, %v1151
  %1153 = vmatprep.mubr.bf16.mxu0 0
  %1154 = vmatmul.mubr.bf16.gmra.mrb[0].mxu0 %v229
  %v1155 = vpop.f32.mrb[0].mxu0
  %v1156 = vadd.f32 0.0, %v1155
  %v1157 = vpop.f32.mrb[0].mxu0
  %v1158 = vadd.f32 0.0, %v1157
  %v1159 = vpop.f32.mrb[0].mxu0
  %v1160 = vadd.f32 0.0, %v1159
  %v1161 = vpop.f32.mrb[0].mxu0
  %v1162 = vadd.f32 0.0, %v1161
  %1163 = vmatprep.mubr.bf16.mxu0 0
  %1164 = vmatmul.mubr.bf16.gmra.mrb[0].mxu0 %v230
  %v1165 = vpop.f32.mrb[0].mxu0
  %v1166 = vadd.f32 0.0, %v1165
  %v1167 = vpop.f32.mrb[0].mxu0
  %v1168 = vadd.f32 0.0, %v1167
  %v1169 = vpop.f32.mrb[0].mxu0
  %v1170 = vadd.f32 0.0, %v1169
  %v1171 = vpop.f32.mrb[0].mxu0
  %v1172 = vadd.f32 0.0, %v1171
  %1173 = vmatprep.mubr.bf16.mxu0 0
  %1174 = vmatmul.mubr.bf16.gmra.mrb[0].mxu0 %v231
  %v1175 = vpop.f32.mrb[0].mxu0
  %v1176 = vadd.f32 0.0, %v1175
  %v1177 = vpop.f32.mrb[0].mxu0
  %v1178 = vadd.f32 0.0, %v1177
  %v1179 = vpop.f32.mrb[0].mxu0
  %v1180 = vadd.f32 0.0, %v1179
  %v1181 = vpop.f32.mrb[0].mxu0
  %v1182 = vadd.f32 0.0, %v1181
  %1183 = vmatprep.mubr.bf16.mxu0 0
  %1184 = vmatmul.mubr.bf16.gmra.mrb[0].mxu0 %v232
  %v1185 = vpop.f32.mrb[0].mxu0
  %v1186 = vadd.f32 0.0, %v1185
  %v1187 = vpop.f32.mrb[0].mxu0
  %v1188 = vadd.f32 0.0, %v1187
  %v1189 = vpop.f32.mrb[0].mxu0
  %v1190 = vadd.f32 0.0, %v1189
  %v1191 = vpop.f32.mrb[0].mxu0
  %v1192 = vadd.f32 0.0, %v1191
  %1193 = vmatprep.mubr.bf16.mxu0 0
  %1194 = vmatmul.mubr.bf16.gmra.mrb[0].mxu0 %v233
  %v1195 = vpop.f32.mrb[0].mxu0
  %v1196 = vadd.f32 0.0, %v1195
  %v1197 = vpop.f32.mrb[0].mxu0
  %v1198 = vadd.f32 0.0, %v1197
  %v1199 = vpop.f32.mrb[0].mxu0
  %v1200 = vadd.f32 0.0, %v1199
  %v1201 = vpop.f32.mrb[0].mxu0
  %v1202 = vadd.f32 0.0, %v1201
  %1203 = vmatprep.mubr.bf16.mxu0 0
  %1204 = vmatmul.mubr.bf16.gmra.mrb[0].mxu0 %v234
  %v1205 = vpop.f32.mrb[0].mxu0
  %v1206 = vadd.f32 0.0, %v1205
  %v1207 = vpop.f32.mrb[0].mxu0
  %v1208 = vadd.f32 0.0, %v1207
  %v1209 = vpop.f32.mrb[0].mxu0
  %v1210 = vadd.f32 0.0, %v1209
  %v1211 = vpop.f32.mrb[0].mxu0
  %v1212 = vadd.f32 0.0, %v1211
  %1213 = vmatprep.mubr.bf16.mxu0 0
  %1214 = vmatmul.mubr.bf16.gmra.mrb[0].mxu0 %v235
  %v1215 = vpop.f32.mrb[0].mxu0
  %v1216 = vadd.f32 0.0, %v1215
  %v1217 = vpop.f32.mrb[0].mxu0
  %v1218 = vadd.f32 0.0, %v1217
  %v1219 = vpop.f32.mrb[0].mxu0
  %v1220 = vadd.f32 0.0, %v1219
  %v1221 = vpop.f32.mrb[0].mxu0
  %v1222 = vadd.f32 0.0, %v1221
  %1223 = vmatprep.mubr.bf16.mxu0 0
  %1224 = vmatmul.mubr.bf16.gmra.mrb[0].mxu0 %v236
  %v1225 = vpop.f32.mrb[0].mxu0
  %v1226 = vadd.f32 0.0, %v1225
  %v1227 = vpop.f32.mrb[0].mxu0
  %v1228 = vadd.f32 0.0, %v1227
  %v1229 = vpop.f32.mrb[0].mxu0
  %v1230 = vadd.f32 0.0, %v1229
  %v1231 = vpop.f32.mrb[0].mxu0
  %v1232 = vadd.f32 0.0, %v1231
  %1233 = vmatprep.mubr.bf16.mxu0 0
  %1234 = vmatmul.mubr.bf16.gmra.mrb[0].mxu0 %v237
  %v1235 = vpop.f32.mrb[0].mxu0
  %v1236 = vadd.f32 0.0, %v1235
  %v1237 = vpop.f32.mrb[0].mxu0
  %v1238 = vadd.f32 0.0, %v1237
  %v1239 = vpop.f32.mrb[0].mxu0
  %v1240 = vadd.f32 0.0, %v1239
  %v1241 = vpop.f32.mrb[0].mxu0
  %v1242 = vadd.f32 0.0, %v1241
  %1243 = vmatprep.mubr.bf16.mxu0 0
  %1244 = vmatmul.mubr.bf16.gmra.mrb[0].mxu0 %v238
  %v1245 = vpop.f32.mrb[0].mxu0
  %v1246 = vadd.f32 0.0, %v1245
  %v1247 = vpop.f32.mrb[0].mxu0
  %v1248 = vadd.f32 0.0, %v1247
  %v1249 = vpop.f32.mrb[0].mxu0
  %v1250 = vadd.f32 0.0, %v1249
  %v1251 = vpop.f32.mrb[0].mxu0
  %v1252 = vadd.f32 0.0, %v1251
  %1253 = vmatprep.mubr.bf16.mxu0 0
  %1254 = vmatmul.mubr.bf16.gmra.mrb[0].mxu0 %v239
  %v1255 = vpop.f32.mrb[0].mxu0
  %v1256 = vadd.f32 0.0, %v1255
  %v1257 = vpop.f32.mrb[0].mxu0
  %v1258 = vadd.f32 0.0, %v1257
  %v1259 = vpop.f32.mrb[0].mxu0
  %v1260 = vadd.f32 0.0, %v1259
  %v1261 = vpop.f32.mrb[0].mxu0
  %v1262 = vadd.f32 0.0, %v1261
  %1263 = vmatprep.mubr.bf16.mxu0 0
  %1264 = vmatmul.mubr.bf16.gmra.mrb[0].mxu0 %v240
  %v1265 = vpop.f32.mrb[0].mxu0
  %v1266 = vadd.f32 0.0, %v1265
  %v1267 = vpop.f32.mrb[0].mxu0
  %v1268 = vadd.f32 0.0, %v1267
  %v1269 = vpop.f32.mrb[0].mxu0
  %v1270 = vadd.f32 0.0, %v1269
  %v1271 = vpop.f32.mrb[0].mxu0
  %v1272 = vadd.f32 0.0, %v1271
  %1273 = vmatprep.mubr.bf16.mxu0 0
  %1274 = vmatmul.mubr.bf16.gmra.mrb[0].mxu0 %v241
  %v1275 = vpop.f32.mrb[0].mxu0
  %v1276 = vadd.f32 0.0, %v1275
  %v1277 = vpop.f32.mrb[0].mxu0
  %v1278 = vadd.f32 0.0, %v1277
  %v1279 = vpop.f32.mrb[0].mxu0
  %v1280 = vadd.f32 0.0, %v1279
  %v1281 = vpop.f32.mrb[0].mxu0
  %v1282 = vadd.f32 0.0, %v1281
  %1283 = vmatprep.mubr.bf16.mxu0 0
  %1284 = vmatmul.mubr.bf16.gmra.mrb[0].mxu0 %v242
  %v1285 = vpop.f32.mrb[0].mxu0
  %v1286 = vadd.f32 0.0, %v1285
  %v1287 = vpop.f32.mrb[0].mxu0
  %v1288 = vadd.f32 0.0, %v1287
  %v1289 = vpop.f32.mrb[0].mxu0
  %v1290 = vadd.f32 0.0, %v1289
  %v1291 = vpop.f32.mrb[0].mxu0
  %v1292 = vadd.f32 0.0, %v1291
  %1293 = vmatprep.mubr.bf16.mxu0 0
  %1294 = vmatmul.mubr.bf16.gmra.mrb[0].mxu0 %v243
  %v1295 = vpop.f32.mrb[0].mxu0
  %v1296 = vadd.f32 0.0, %v1295
  %v1297 = vpop.f32.mrb[0].mxu0
  %v1298 = vadd.f32 0.0, %v1297
  %v1299 = vpop.f32.mrb[0].mxu0
  %v1300 = vadd.f32 0.0, %v1299
  %v1301 = vpop.f32.mrb[0].mxu0
  %v1302 = vadd.f32 0.0, %v1301
  %1303 = vmatprep.mubr.bf16.mxu0 0
  %1304 = vmatmul.mubr.bf16.gmra.mrb[0].mxu0 %v244
  %v1305 = vpop.f32.mrb[0].mxu0
  %v1306 = vadd.f32 0.0, %v1305
  %v1307 = vpop.f32.mrb[0].mxu0
  %v1308 = vadd.f32 0.0, %v1307
  %v1309 = vpop.f32.mrb[0].mxu0
  %v1310 = vadd.f32 0.0, %v1309
  %v1311 = vpop.f32.mrb[0].mxu0
  %v1312 = vadd.f32 0.0, %v1311
  %1313 = vmatprep.mubr.bf16.mxu0 0
  %1314 = vmatmul.mubr.bf16.gmra.mrb[0].mxu0 %v245
  %v1315 = vpop.f32.mrb[0].mxu0
  %v1316 = vadd.f32 0.0, %v1315
  %v1317 = vpop.f32.mrb[0].mxu0
  %v1318 = vadd.f32 0.0, %v1317
  %v1319 = vpop.f32.mrb[0].mxu0
  %v1320 = vadd.f32 0.0, %v1319
  %v1321 = vpop.f32.mrb[0].mxu0
  %v1322 = vadd.f32 0.0, %v1321
  %1323 = vmatprep.mubr.bf16.mxu0 0
  %1324 = vmatmul.mubr.bf16.gmra.mrb[0].mxu0 %v246
  %v1325 = vpop.f32.mrb[0].mxu0
  %v1326 = vadd.f32 0.0, %v1325
  %v1327 = vpop.f32.mrb[0].mxu0
  %v1328 = vadd.f32 0.0, %v1327
  %v1329 = vpop.f32.mrb[0].mxu0
  %v1330 = vadd.f32 0.0, %v1329
  %v1331 = vpop.f32.mrb[0].mxu0
  %v1332 = vadd.f32 0.0, %v1331
  %1333 = vmatprep.mubr.bf16.mxu0 0
  %1334 = vmatmul.mubr.bf16.gmra.mrb[0].mxu0 %v247
  %v1335 = vpop.f32.mrb[0].mxu0
  %v1336 = vadd.f32 0.0, %v1335
  %v1337 = vpop.f32.mrb[0].mxu0
  %v1338 = vadd.f32 0.0, %v1337
  %v1339 = vpop.f32.mrb[0].mxu0
  %v1340 = vadd.f32 0.0, %v1339
  %v1341 = vpop.f32.mrb[0].mxu0
  %v1342 = vadd.f32 0.0, %v1341
  %1343 = vmatprep.mubr.bf16.mxu0 0
  %1344 = vmatmul.mubr.bf16.gmra.mrb[0].mxu0 %v248
  %v1345 = vpop.f32.mrb[0].mxu0
  %v1346 = vadd.f32 0.0, %v1345
  %v1347 = vpop.f32.mrb[0].mxu0
  %v1348 = vadd.f32 0.0, %v1347
  %v1349 = vpop.f32.mrb[0].mxu0
  %v1350 = vadd.f32 0.0, %v1349
  %v1351 = vpop.f32.mrb[0].mxu0
  %v1352 = vadd.f32 0.0, %v1351
  %1353 = vmatprep.mubr.bf16.mxu0 0
  %1354 = vmatmul.mubr.bf16.gmra.mrb[0].mxu0 %v249
  %v1355 = vpop.f32.mrb[0].mxu0
  %v1356 = vadd.f32 0.0, %v1355
  %v1357 = vpop.f32.mrb[0].mxu0
  %v1358 = vadd.f32 0.0, %v1357
  %v1359 = vpop.f32.mrb[0].mxu0
  %v1360 = vadd.f32 0.0, %v1359
  %v1361 = vpop.f32.mrb[0].mxu0
  %v1362 = vadd.f32 0.0, %v1361
  %1363 = vdwg.mxu0
  %v1364 = vld [vmem:[%s2] sm:$0x3f]
  %v1366 = vlaneseq
  %v1367 = vshrl.u32 %v1366, 7
  %v1368 = vsub.s32 0, %v1367
  %v1369 = vrot.slane %v1364, %v1368
  %v1370 = vlaneseq
  %v1371 = vshrl.u32 %v1370, 7
  %v1372 = vsub.s32 1, %v1371
  %v1373 = vrot.slane %v1364, %v1372
  %v1374 = vlaneseq
  %v1375 = vshrl.u32 %v1374, 7
  %v1376 = vsub.s32 2, %v1375
  %v1377 = vrot.slane %v1364, %v1376
  %v1378 = vlaneseq
  %v1379 = vshrl.u32 %v1378, 7
  %v1380 = vsub.s32 3, %v1379
  %v1381 = vrot.slane %v1364, %v1380
  %v1382 = vlaneseq
  %v1383 = vshrl.u32 %v1382, 7
  %v1384 = vsub.s32 4, %v1383
  %v1385 = vrot.slane %v1364, %v1384
  %v1386 = vlaneseq
  %v1387 = vshrl.u32 %v1386, 7
  %v1388 = vsub.s32 5, %v1387
  %v1389 = vrot.slane %v1364, %v1388
  %v1396 = vmul.f32 %v550, %v1369
  %v1397 = vmul.f32 %v552, %v1373
  %v1398 = vmul.f32 %v833, %v1377
  %v1399 = vmul.f32 %v835, %v1381
  %v1400 = vmul.f32 %v1116, %v1385
  %v1401 = vmul.f32 %v1118, %v1389
  %v1402 = vmul.f32 %v554, %v1369
  %v1403 = vmul.f32 %v556, %v1373
  %v1404 = vmul.f32 %v837, %v1377
  %v1405 = vmul.f32 %v839, %v1381
  %v1406 = vmul.f32 %v1120, %v1385
  %v1407 = vmul.f32 %v1122, %v1389
  %v1408 = vmul.f32 %v560, %v1369
  %v1409 = vmul.f32 %v562, %v1373
  %v1410 = vmul.f32 %v843, %v1377
  %v1411 = vmul.f32 %v845, %v1381
  %v1412 = vmul.f32 %v1126, %v1385
  %v1413 = vmul.f32 %v1128, %v1389
  %v1414 = vmul.f32 %v564, %v1369
  %v1415 = vmul.f32 %v566, %v1373
  %v1416 = vmul.f32 %v847, %v1377
  %v1417 = vmul.f32 %v849, %v1381
  %v1418 = vmul.f32 %v1130, %v1385
  %v1419 = vmul.f32 %v1132, %v1389
  %v1420 = vmul.f32 %v570, %v1369
  %v1421 = vmul.f32 %v572, %v1373
  %v1422 = vmul.f32 %v853, %v1377
  %v1423 = vmul.f32 %v855, %v1381
  %v1424 = vmul.f32 %v1136, %v1385
  %v1425 = vmul.f32 %v1138, %v1389
  %v1426 = vmul.f32 %v574, %v1369
  %v1427 = vmul.f32 %v576, %v1373
  %v1428 = vmul.f32 %v857, %v1377
  %v1429 = vmul.f32 %v859, %v1381
  %v1430 = vmul.f32 %v1140, %v1385
  %v1431 = vmul.f32 %v1142, %v1389
  %v1432 = vmul.f32 %v580, %v1369
  %v1433 = vmul.f32 %v582, %v1373
  %v1434 = vmul.f32 %v863, %v1377
  %v1435 = vmul.f32 %v865, %v1381
  %v1436 = vmul.f32 %v1146, %v1385
  %v1437 = vmul.f32 %v1148, %v1389
  %v1438 = vmul.f32 %v584, %v1369
  %v1439 = vmul.f32 %v586, %v1373
  %v1440 = vmul.f32 %v867, %v1377
  %v1441 = vmul.f32 %v869, %v1381
  %v1442 = vmul.f32 %v1150, %v1385
  %v1443 = vmul.f32 %v1152, %v1389
  %v1444 = vmul.f32 %v590, %v1369
  %v1445 = vmul.f32 %v592, %v1373
  %v1446 = vmul.f32 %v873, %v1377
  %v1447 = vmul.f32 %v875, %v1381
  %v1448 = vmul.f32 %v1156, %v1385
  %v1449 = vmul.f32 %v1158, %v1389
  %v1450 = vmul.f32 %v594, %v1369
  %v1451 = vmul.f32 %v596, %v1373
  %v1452 = vmul.f32 %v877, %v1377
  %v1453 = vmul.f32 %v879, %v1381
  %v1454 = vmul.f32 %v1160, %v1385
  %v1455 = vmul.f32 %v1162, %v1389
  %v1456 = vmul.f32 %v600, %v1369
  %v1457 = vmul.f32 %v602, %v1373
  %v1458 = vmul.f32 %v883, %v1377
  %v1459 = vmul.f32 %v885, %v1381
  %v1460 = vmul.f32 %v1166, %v1385
  %v1461 = vmul.f32 %v1168, %v1389
  %v1462 = vmul.f32 %v604, %v1369
  %v1463 = vmul.f32 %v606, %v1373
  %v1464 = vmul.f32 %v887, %v1377
  %v1465 = vmul.f32 %v889, %v1381
  %v1466 = vmul.f32 %v1170, %v1385
  %v1467 = vmul.f32 %v1172, %v1389
  %v1468 = vmul.f32 %v610, %v1369
  %v1469 = vmul.f32 %v612, %v1373
  %v1470 = vmul.f32 %v893, %v1377
  %v1471 = vmul.f32 %v895, %v1381
  %v1472 = vmul.f32 %v1176, %v1385
  %v1473 = vmul.f32 %v1178, %v1389
  %v1474 = vmul.f32 %v614, %v1369
  %v1475 = vmul.f32 %v616, %v1373
  %v1476 = vmul.f32 %v897, %v1377
  %v1477 = vmul.f32 %v899, %v1381
  %v1478 = vmul.f32 %v1180, %v1385
  %v1479 = vmul.f32 %v1182, %v1389
  %v1480 = vmul.f32 %v620, %v1369
  %v1481 = vmul.f32 %v622, %v1373
  %v1482 = vmul.f32 %v903, %v1377
  %v1483 = vmul.f32 %v905, %v1381
  %v1484 = vmul.f32 %v1186, %v1385
  %v1485 = vmul.f32 %v1188, %v1389
  %v1486 = vmul.f32 %v624, %v1369
  %v1487 = vmul.f32 %v626, %v1373
  %v1488 = vmul.f32 %v907, %v1377
  %v1489 = vmul.f32 %v909, %v1381
  %v1490 = vmul.f32 %v1190, %v1385
  %v1491 = vmul.f32 %v1192, %v1389
  %v1492 = vmul.f32 %v630, %v1369
  %v1493 = vmul.f32 %v632, %v1373
  %v1494 = vmul.f32 %v913, %v1377
  %v1495 = vmul.f32 %v915, %v1381
  %v1496 = vmul.f32 %v1196, %v1385
  %v1497 = vmul.f32 %v1198, %v1389
  %v1498 = vmul.f32 %v634, %v1369
  %v1499 = vmul.f32 %v636, %v1373
  %v1500 = vmul.f32 %v917, %v1377
  %v1501 = vmul.f32 %v919, %v1381
  %v1502 = vmul.f32 %v1200, %v1385
  %v1503 = vmul.f32 %v1202, %v1389
  %v1504 = vmul.f32 %v640, %v1369
  %v1505 = vmul.f32 %v642, %v1373
  %v1506 = vmul.f32 %v923, %v1377
  %v1507 = vmul.f32 %v925, %v1381
  %v1508 = vmul.f32 %v1206, %v1385
  %v1509 = vmul.f32 %v1208, %v1389
  %v1510 = vmul.f32 %v644, %v1369
  %v1511 = vmul.f32 %v646, %v1373
  %v1512 = vmul.f32 %v927, %v1377
  %v1513 = vmul.f32 %v929, %v1381
  %v1514 = vmul.f32 %v1210, %v1385
  %v1515 = vmul.f32 %v1212, %v1389
  %v1516 = vmul.f32 %v650, %v1369
  %v1517 = vmul.f32 %v652, %v1373
  %v1518 = vmul.f32 %v933, %v1377
  %v1519 = vmul.f32 %v935, %v1381
  %v1520 = vmul.f32 %v1216, %v1385
  %v1521 = vmul.f32 %v1218, %v1389
  %v1522 = vmul.f32 %v654, %v1369
  %v1523 = vmul.f32 %v656, %v1373
  %v1524 = vmul.f32 %v937, %v1377
  %v1525 = vmul.f32 %v939, %v1381
  %v1526 = vmul.f32 %v1220, %v1385
  %v1527 = vmul.f32 %v1222, %v1389
  %v1528 = vmul.f32 %v660, %v1369
  %v1529 = vmul.f32 %v662, %v1373
  %v1530 = vmul.f32 %v943, %v1377
  %v1531 = vmul.f32 %v945, %v1381
  %v1532 = vmul.f32 %v1226, %v1385
  %v1533 = vmul.f32 %v1228, %v1389
  %v1534 = vmul.f32 %v664, %v1369
  %v1535 = vmul.f32 %v666, %v1373
  %v1536 = vmul.f32 %v947, %v1377
  %v1537 = vmul.f32 %v949, %v1381
  %v1538 = vmul.f32 %v1230, %v1385
  %v1539 = vmul.f32 %v1232, %v1389
  %v1540 = vmul.f32 %v670, %v1369
  %v1541 = vmul.f32 %v672, %v1373
  %v1542 = vmul.f32 %v953, %v1377
  %v1543 = vmul.f32 %v955, %v1381
  %v1544 = vmul.f32 %v1236, %v1385
  %v1545 = vmul.f32 %v1238, %v1389
  %v1546 = vmul.f32 %v674, %v1369
  %v1547 = vmul.f32 %v676, %v1373
  %v1548 = vmul.f32 %v957, %v1377
  %v1549 = vmul.f32 %v959, %v1381
  %v1550 = vmul.f32 %v1240, %v1385
  %v1551 = vmul.f32 %v1242, %v1389
  %v1552 = vmul.f32 %v680, %v1369
  %v1553 = vmul.f32 %v682, %v1373
  %v1554 = vmul.f32 %v963, %v1377
  %v1555 = vmul.f32 %v965, %v1381
  %v1556 = vmul.f32 %v1246, %v1385
  %v1557 = vmul.f32 %v1248, %v1389
  %v1558 = vmul.f32 %v684, %v1369
  %v1559 = vmul.f32 %v686, %v1373
  %v1560 = vmul.f32 %v967, %v1377
  %v1561 = vmul.f32 %v969, %v1381
  %v1562 = vmul.f32 %v1250, %v1385
  %v1563 = vmul.f32 %v1252, %v1389
  %v1564 = vmul.f32 %v690, %v1369
  %v1565 = vmul.f32 %v692, %v1373
  %v1566 = vmul.f32 %v973, %v1377
  %v1567 = vmul.f32 %v975, %v1381
  %v1568 = vmul.f32 %v1256, %v1385
  %v1569 = vmul.f32 %v1258, %v1389
  %v1570 = vmul.f32 %v694, %v1369
  %v1571 = vmul.f32 %v696, %v1373
  %v1572 = vmul.f32 %v977, %v1377
  %v1573 = vmul.f32 %v979, %v1381
  %v1574 = vmul.f32 %v1260, %v1385
  %v1575 = vmul.f32 %v1262, %v1389
  %v1576 = vmul.f32 %v700, %v1369
  %v1577 = vmul.f32 %v702, %v1373
  %v1578 = vmul.f32 %v983, %v1377
  %v1579 = vmul.f32 %v985, %v1381
  %v1580 = vmul.f32 %v1266, %v1385
  %v1581 = vmul.f32 %v1268, %v1389
  %v1582 = vmul.f32 %v704, %v1369
  %v1583 = vmul.f32 %v706, %v1373
  %v1584 = vmul.f32 %v987, %v1377
  %v1585 = vmul.f32 %v989, %v1381
  %v1586 = vmul.f32 %v1270, %v1385
  %v1587 = vmul.f32 %v1272, %v1389
  %v1588 = vmul.f32 %v710, %v1369
  %v1589 = vmul.f32 %v712, %v1373
  %v1590 = vmul.f32 %v993, %v1377
  %v1591 = vmul.f32 %v995, %v1381
  %v1592 = vmul.f32 %v1276, %v1385
  %v1593 = vmul.f32 %v1278, %v1389
  %v1594 = vmul.f32 %v714, %v1369
  %v1595 = vmul.f32 %v716, %v1373
  %v1596 = vmul.f32 %v997, %v1377
  %v1597 = vmul.f32 %v999, %v1381
  %v1598 = vmul.f32 %v1280, %v1385
  %v1599 = vmul.f32 %v1282, %v1389
  %v1600 = vmul.f32 %v720, %v1369
  %v1601 = vmul.f32 %v722, %v1373
  %v1602 = vmul.f32 %v1003, %v1377
  %v1603 = vmul.f32 %v1005, %v1381
  %v1604 = vmul.f32 %v1286, %v1385
  %v1605 = vmul.f32 %v1288, %v1389
  %v1606 = vmul.f32 %v724, %v1369
  %v1607 = vmul.f32 %v726, %v1373
  %v1608 = vmul.f32 %v1007, %v1377
  %v1609 = vmul.f32 %v1009, %v1381
  %v1610 = vmul.f32 %v1290, %v1385
  %v1611 = vmul.f32 %v1292, %v1389
  %v1612 = vmul.f32 %v730, %v1369
  %v1613 = vmul.f32 %v732, %v1373
  %v1614 = vmul.f32 %v1013, %v1377
  %v1615 = vmul.f32 %v1015, %v1381
  %v1616 = vmul.f32 %v1296, %v1385
  %v1617 = vmul.f32 %v1298, %v1389
  %v1618 = vmul.f32 %v734, %v1369
  %v1619 = vmul.f32 %v736, %v1373
  %v1620 = vmul.f32 %v1017, %v1377
  %v1621 = vmul.f32 %v1019, %v1381
  %v1622 = vmul.f32 %v1300, %v1385
  %v1623 = vmul.f32 %v1302, %v1389
  %v1624 = vmul.f32 %v740, %v1369
  %v1625 = vmul.f32 %v742, %v1373
  %v1626 = vmul.f32 %v1023, %v1377
  %v1627 = vmul.f32 %v1025, %v1381
  %v1628 = vmul.f32 %v1306, %v1385
  %v1629 = vmul.f32 %v1308, %v1389
  %v1630 = vmul.f32 %v744, %v1369
  %v1631 = vmul.f32 %v746, %v1373
  %v1632 = vmul.f32 %v1027, %v1377
  %v1633 = vmul.f32 %v1029, %v1381
  %v1634 = vmul.f32 %v1310, %v1385
  %v1635 = vmul.f32 %v1312, %v1389
  %v1636 = vmul.f32 %v750, %v1369
  %v1637 = vmul.f32 %v752, %v1373
  %v1638 = vmul.f32 %v1033, %v1377
  %v1639 = vmul.f32 %v1035, %v1381
  %v1640 = vmul.f32 %v1316, %v1385
  %v1641 = vmul.f32 %v1318, %v1389
  %v1642 = vmul.f32 %v754, %v1369
  %v1643 = vmul.f32 %v756, %v1373
  %v1644 = vmul.f32 %v1037, %v1377
  %v1645 = vmul.f32 %v1039, %v1381
  %v1646 = vmul.f32 %v1320, %v1385
  %v1647 = vmul.f32 %v1322, %v1389
  %v1648 = vmul.f32 %v760, %v1369
  %v1649 = vmul.f32 %v762, %v1373
  %v1650 = vmul.f32 %v1043, %v1377
  %v1651 = vmul.f32 %v1045, %v1381
  %v1652 = vmul.f32 %v1326, %v1385
  %v1653 = vmul.f32 %v1328, %v1389
  %v1654 = vmul.f32 %v764, %v1369
  %v1655 = vmul.f32 %v766, %v1373
  %v1656 = vmul.f32 %v1047, %v1377
  %v1657 = vmul.f32 %v1049, %v1381
  %v1658 = vmul.f32 %v1330, %v1385
  %v1659 = vmul.f32 %v1332, %v1389
  %v1660 = vmul.f32 %v770, %v1369
  %v1661 = vmul.f32 %v772, %v1373
  %v1662 = vmul.f32 %v1053, %v1377
  %v1663 = vmul.f32 %v1055, %v1381
  %v1664 = vmul.f32 %v1336, %v1385
  %v1665 = vmul.f32 %v1338, %v1389
  %v1666 = vmul.f32 %v774, %v1369
  %v1667 = vmul.f32 %v776, %v1373
  %v1668 = vmul.f32 %v1057, %v1377
  %v1669 = vmul.f32 %v1059, %v1381
  %v1670 = vmul.f32 %v1340, %v1385
  %v1671 = vmul.f32 %v1342, %v1389
  %v1672 = vmul.f32 %v780, %v1369
  %v1673 = vmul.f32 %v782, %v1373
  %v1674 = vmul.f32 %v1063, %v1377
  %v1675 = vmul.f32 %v1065, %v1381
  %v1676 = vmul.f32 %v1346, %v1385
  %v1677 = vmul.f32 %v1348, %v1389
  %v1678 = vmul.f32 %v784, %v1369
  %v1679 = vmul.f32 %v786, %v1373
  %v1680 = vmul.f32 %v1067, %v1377
  %v1681 = vmul.f32 %v1069, %v1381
  %v1682 = vmul.f32 %v1350, %v1385
  %v1683 = vmul.f32 %v1352, %v1389
  %v1684 = vmul.f32 %v790, %v1369
  %v1685 = vmul.f32 %v792, %v1373
  %v1686 = vmul.f32 %v1073, %v1377
  %v1687 = vmul.f32 %v1075, %v1381
  %v1688 = vmul.f32 %v1356, %v1385
  %v1689 = vmul.f32 %v1358, %v1389
  %v1690 = vmul.f32 %v794, %v1369
  %v1691 = vmul.f32 %v796, %v1373
  %v1692 = vmul.f32 %v1077, %v1377
  %v1693 = vmul.f32 %v1079, %v1381
  %v1694 = vmul.f32 %v1360, %v1385
  %v1695 = vmul.f32 %v1362, %v1389
  %v1696 = vld [vmem:[%s3] sm:$0x3f]
  %v1698 = vlaneseq
  %v1699 = vshrl.u32 %v1698, 7
  %v1700 = vsub.s32 0, %v1699
  %v1701 = vrot.slane %v1696, %v1700
  %v1702 = vlaneseq
  %v1703 = vshrl.u32 %v1702, 7
  %v1704 = vsub.s32 1, %v1703
  %v1705 = vrot.slane %v1696, %v1704
  %v1706 = vlaneseq
  %v1707 = vshrl.u32 %v1706, 7
  %v1708 = vsub.s32 2, %v1707
  %v1709 = vrot.slane %v1696, %v1708
  %v1710 = vlaneseq
  %v1711 = vshrl.u32 %v1710, 7
  %v1712 = vsub.s32 3, %v1711
  %v1713 = vrot.slane %v1696, %v1712
  %v1714 = vlaneseq
  %v1715 = vshrl.u32 %v1714, 7
  %v1716 = vsub.s32 4, %v1715
  %v1717 = vrot.slane %v1696, %v1716
  %v1718 = vlaneseq
  %v1719 = vshrl.u32 %v1718, 7
  %v1720 = vsub.s32 5, %v1719
  %v1721 = vrot.slane %v1696, %v1720
  %v1728 = vadd.f32 %v1396, %v1701
  %v1729 = vadd.f32 %v1397, %v1705
  %v1730 = vadd.f32 %v1398, %v1709
  %v1731 = vadd.f32 %v1399, %v1713
  %v1732 = vadd.f32 %v1400, %v1717
  %v1733 = vadd.f32 %v1401, %v1721
  %v1734 = vadd.f32 %v1402, %v1701
  %v1735 = vadd.f32 %v1403, %v1705
  %v1736 = vadd.f32 %v1404, %v1709
  %v1737 = vadd.f32 %v1405, %v1713
  %v1738 = vadd.f32 %v1406, %v1717
  %v1739 = vadd.f32 %v1407, %v1721
  %v1740 = vadd.f32 %v1408, %v1701
  %v1741 = vadd.f32 %v1409, %v1705
  %v1742 = vadd.f32 %v1410, %v1709
  %v1743 = vadd.f32 %v1411, %v1713
  %v1744 = vadd.f32 %v1412, %v1717
  %v1745 = vadd.f32 %v1413, %v1721
  %v1746 = vadd.f32 %v1414, %v1701
  %v1747 = vadd.f32 %v1415, %v1705
  %v1748 = vadd.f32 %v1416, %v1709
  %v1749 = vadd.f32 %v1417, %v1713
  %v1750 = vadd.f32 %v1418, %v1717
  %v1751 = vadd.f32 %v1419, %v1721
  %v1752 = vadd.f32 %v1420, %v1701
  %v1753 = vadd.f32 %v1421, %v1705
  %v1754 = vadd.f32 %v1422, %v1709
  %v1755 = vadd.f32 %v1423, %v1713
  %v1756 = vadd.f32 %v1424, %v1717
  %v1757 = vadd.f32 %v1425, %v1721
  %v1758 = vadd.f32 %v1426, %v1701
  %v1759 = vadd.f32 %v1427, %v1705
  %v1760 = vadd.f32 %v1428, %v1709
  %v1761 = vadd.f32 %v1429, %v1713
  %v1762 = vadd.f32 %v1430, %v1717
  %v1763 = vadd.f32 %v1431, %v1721
  %v1764 = vadd.f32 %v1432, %v1701
  %v1765 = vadd.f32 %v1433, %v1705
  %v1766 = vadd.f32 %v1434, %v1709
  %v1767 = vadd.f32 %v1435, %v1713
  %v1768 = vadd.f32 %v1436, %v1717
  %v1769 = vadd.f32 %v1437, %v1721
  %v1770 = vadd.f32 %v1438, %v1701
  %v1771 = vadd.f32 %v1439, %v1705
  %v1772 = vadd.f32 %v1440, %v1709
  %v1773 = vadd.f32 %v1441, %v1713
  %v1774 = vadd.f32 %v1442, %v1717
  %v1775 = vadd.f32 %v1443, %v1721
  %v1776 = vadd.f32 %v1444, %v1701
  %v1777 = vadd.f32 %v1445, %v1705
  %v1778 = vadd.f32 %v1446, %v1709
  %v1779 = vadd.f32 %v1447, %v1713
  %v1780 = vadd.f32 %v1448, %v1717
  %v1781 = vadd.f32 %v1449, %v1721
  %v1782 = vadd.f32 %v1450, %v1701
  %v1783 = vadd.f32 %v1451, %v1705
  %v1784 = vadd.f32 %v1452, %v1709
  %v1785 = vadd.f32 %v1453, %v1713
  %v1786 = vadd.f32 %v1454, %v1717
  %v1787 = vadd.f32 %v1455, %v1721
  %v1788 = vadd.f32 %v1456, %v1701
  %v1789 = vadd.f32 %v1457, %v1705
  %v1790 = vadd.f32 %v1458, %v1709
  %v1791 = vadd.f32 %v1459, %v1713
  %v1792 = vadd.f32 %v1460, %v1717
  %v1793 = vadd.f32 %v1461, %v1721
  %v1794 = vadd.f32 %v1462, %v1701
  %v1795 = vadd.f32 %v1463, %v1705
  %v1796 = vadd.f32 %v1464, %v1709
  %v1797 = vadd.f32 %v1465, %v1713
  %v1798 = vadd.f32 %v1466, %v1717
  %v1799 = vadd.f32 %v1467, %v1721
  %v1800 = vadd.f32 %v1468, %v1701
  %v1801 = vadd.f32 %v1469, %v1705
  %v1802 = vadd.f32 %v1470, %v1709
  %v1803 = vadd.f32 %v1471, %v1713
  %v1804 = vadd.f32 %v1472, %v1717
  %v1805 = vadd.f32 %v1473, %v1721
  %v1806 = vadd.f32 %v1474, %v1701
  %v1807 = vadd.f32 %v1475, %v1705
  %v1808 = vadd.f32 %v1476, %v1709
  %v1809 = vadd.f32 %v1477, %v1713
  %v1810 = vadd.f32 %v1478, %v1717
  %v1811 = vadd.f32 %v1479, %v1721
  %v1812 = vadd.f32 %v1480, %v1701
  %v1813 = vadd.f32 %v1481, %v1705
  %v1814 = vadd.f32 %v1482, %v1709
  %v1815 = vadd.f32 %v1483, %v1713
  %v1816 = vadd.f32 %v1484, %v1717
  %v1817 = vadd.f32 %v1485, %v1721
  %v1818 = vadd.f32 %v1486, %v1701
  %v1819 = vadd.f32 %v1487, %v1705
  %v1820 = vadd.f32 %v1488, %v1709
  %v1821 = vadd.f32 %v1489, %v1713
  %v1822 = vadd.f32 %v1490, %v1717
  %v1823 = vadd.f32 %v1491, %v1721
  %v1824 = vadd.f32 %v1492, %v1701
  %v1825 = vadd.f32 %v1493, %v1705
  %v1826 = vadd.f32 %v1494, %v1709
  %v1827 = vadd.f32 %v1495, %v1713
  %v1828 = vadd.f32 %v1496, %v1717
  %v1829 = vadd.f32 %v1497, %v1721
  %v1830 = vadd.f32 %v1498, %v1701
  %v1831 = vadd.f32 %v1499, %v1705
  %v1832 = vadd.f32 %v1500, %v1709
  %v1833 = vadd.f32 %v1501, %v1713
  %v1834 = vadd.f32 %v1502, %v1717
  %v1835 = vadd.f32 %v1503, %v1721
  %v1836 = vadd.f32 %v1504, %v1701
  %v1837 = vadd.f32 %v1505, %v1705
  %v1838 = vadd.f32 %v1506, %v1709
  %v1839 = vadd.f32 %v1507, %v1713
  %v1840 = vadd.f32 %v1508, %v1717
  %v1841 = vadd.f32 %v1509, %v1721
  %v1842 = vadd.f32 %v1510, %v1701
  %v1843 = vadd.f32 %v1511, %v1705
  %v1844 = vadd.f32 %v1512, %v1709
  %v1845 = vadd.f32 %v1513, %v1713
  %v1846 = vadd.f32 %v1514, %v1717
  %v1847 = vadd.f32 %v1515, %v1721
  %v1848 = vadd.f32 %v1516, %v1701
  %v1849 = vadd.f32 %v1517, %v1705
  %v1850 = vadd.f32 %v1518, %v1709
  %v1851 = vadd.f32 %v1519, %v1713
  %v1852 = vadd.f32 %v1520, %v1717
  %v1853 = vadd.f32 %v1521, %v1721
  %v1854 = vadd.f32 %v1522, %v1701
  %v1855 = vadd.f32 %v1523, %v1705
  %v1856 = vadd.f32 %v1524, %v1709
  %v1857 = vadd.f32 %v1525, %v1713
  %v1858 = vadd.f32 %v1526, %v1717
  %v1859 = vadd.f32 %v1527, %v1721
  %v1860 = vadd.f32 %v1528, %v1701
  %v1861 = vadd.f32 %v1529, %v1705
  %v1862 = vadd.f32 %v1530, %v1709
  %v1863 = vadd.f32 %v1531, %v1713
  %v1864 = vadd.f32 %v1532, %v1717
  %v1865 = vadd.f32 %v1533, %v1721
  %v1866 = vadd.f32 %v1534, %v1701
  %v1867 = vadd.f32 %v1535, %v1705
  %v1868 = vadd.f32 %v1536, %v1709
  %v1869 = vadd.f32 %v1537, %v1713
  %v1870 = vadd.f32 %v1538, %v1717
  %v1871 = vadd.f32 %v1539, %v1721
  %v1872 = vadd.f32 %v1540, %v1701
  %v1873 = vadd.f32 %v1541, %v1705
  %v1874 = vadd.f32 %v1542, %v1709
  %v1875 = vadd.f32 %v1543, %v1713
  %v1876 = vadd.f32 %v1544, %v1717
  %v1877 = vadd.f32 %v1545, %v1721
  %v1878 = vadd.f32 %v1546, %v1701
  %v1879 = vadd.f32 %v1547, %v1705
  %v1880 = vadd.f32 %v1548, %v1709
  %v1881 = vadd.f32 %v1549, %v1713
  %v1882 = vadd.f32 %v1550, %v1717
  %v1883 = vadd.f32 %v1551, %v1721
  %v1884 = vadd.f32 %v1552, %v1701
  %v1885 = vadd.f32 %v1553, %v1705
  %v1886 = vadd.f32 %v1554, %v1709
  %v1887 = vadd.f32 %v1555, %v1713
  %v1888 = vadd.f32 %v1556, %v1717
  %v1889 = vadd.f32 %v1557, %v1721
  %v1890 = vadd.f32 %v1558, %v1701
  %v1891 = vadd.f32 %v1559, %v1705
  %v1892 = vadd.f32 %v1560, %v1709
  %v1893 = vadd.f32 %v1561, %v1713
  %v1894 = vadd.f32 %v1562, %v1717
  %v1895 = vadd.f32 %v1563, %v1721
  %v1896 = vadd.f32 %v1564, %v1701
  %v1897 = vadd.f32 %v1565, %v1705
  %v1898 = vadd.f32 %v1566, %v1709
  %v1899 = vadd.f32 %v1567, %v1713
  %v1900 = vadd.f32 %v1568, %v1717
  %v1901 = vadd.f32 %v1569, %v1721
  %v1902 = vadd.f32 %v1570, %v1701
  %v1903 = vadd.f32 %v1571, %v1705
  %v1904 = vadd.f32 %v1572, %v1709
  %v1905 = vadd.f32 %v1573, %v1713
  %v1906 = vadd.f32 %v1574, %v1717
  %v1907 = vadd.f32 %v1575, %v1721
  %v1908 = vadd.f32 %v1576, %v1701
  %v1909 = vadd.f32 %v1577, %v1705
  %v1910 = vadd.f32 %v1578, %v1709
  %v1911 = vadd.f32 %v1579, %v1713
  %v1912 = vadd.f32 %v1580, %v1717
  %v1913 = vadd.f32 %v1581, %v1721
  %v1914 = vadd.f32 %v1582, %v1701
  %v1915 = vadd.f32 %v1583, %v1705
  %v1916 = vadd.f32 %v1584, %v1709
  %v1917 = vadd.f32 %v1585, %v1713
  %v1918 = vadd.f32 %v1586, %v1717
  %v1919 = vadd.f32 %v1587, %v1721
  %v1920 = vadd.f32 %v1588, %v1701
  %v1921 = vadd.f32 %v1589, %v1705
  %v1922 = vadd.f32 %v1590, %v1709
  %v1923 = vadd.f32 %v1591, %v1713
  %v1924 = vadd.f32 %v1592, %v1717
  %v1925 = vadd.f32 %v1593, %v1721
  %v1926 = vadd.f32 %v1594, %v1701
  %v1927 = vadd.f32 %v1595, %v1705
  %v1928 = vadd.f32 %v1596, %v1709
  %v1929 = vadd.f32 %v1597, %v1713
  %v1930 = vadd.f32 %v1598, %v1717
  %v1931 = vadd.f32 %v1599, %v1721
  %v1932 = vadd.f32 %v1600, %v1701
  %v1933 = vadd.f32 %v1601, %v1705
  %v1934 = vadd.f32 %v1602, %v1709
  %v1935 = vadd.f32 %v1603, %v1713
  %v1936 = vadd.f32 %v1604, %v1717
  %v1937 = vadd.f32 %v1605, %v1721
  %v1938 = vadd.f32 %v1606, %v1701
  %v1939 = vadd.f32 %v1607, %v1705
  %v1940 = vadd.f32 %v1608, %v1709
  %v1941 = vadd.f32 %v1609, %v1713
  %v1942 = vadd.f32 %v1610, %v1717
  %v1943 = vadd.f32 %v1611, %v1721
  %v1944 = vadd.f32 %v1612, %v1701
  %v1945 = vadd.f32 %v1613, %v1705
  %v1946 = vadd.f32 %v1614, %v1709
  %v1947 = vadd.f32 %v1615, %v1713
  %v1948 = vadd.f32 %v1616, %v1717
  %v1949 = vadd.f32 %v1617, %v1721
  %v1950 = vadd.f32 %v1618, %v1701
  %v1951 = vadd.f32 %v1619, %v1705
  %v1952 = vadd.f32 %v1620, %v1709
  %v1953 = vadd.f32 %v1621, %v1713
  %v1954 = vadd.f32 %v1622, %v1717
  %v1955 = vadd.f32 %v1623, %v1721
  %v1956 = vadd.f32 %v1624, %v1701
  %v1957 = vadd.f32 %v1625, %v1705
  %v1958 = vadd.f32 %v1626, %v1709
  %v1959 = vadd.f32 %v1627, %v1713
  %v1960 = vadd.f32 %v1628, %v1717
  %v1961 = vadd.f32 %v1629, %v1721
  %v1962 = vadd.f32 %v1630, %v1701
  %v1963 = vadd.f32 %v1631, %v1705
  %v1964 = vadd.f32 %v1632, %v1709
  %v1965 = vadd.f32 %v1633, %v1713
  %v1966 = vadd.f32 %v1634, %v1717
  %v1967 = vadd.f32 %v1635, %v1721
  %v1968 = vadd.f32 %v1636, %v1701
  %v1969 = vadd.f32 %v1637, %v1705
  %v1970 = vadd.f32 %v1638, %v1709
  %v1971 = vadd.f32 %v1639, %v1713
  %v1972 = vadd.f32 %v1640, %v1717
  %v1973 = vadd.f32 %v1641, %v1721
  %v1974 = vadd.f32 %v1642, %v1701
  %v1975 = vadd.f32 %v1643, %v1705
  %v1976 = vadd.f32 %v1644, %v1709
  %v1977 = vadd.f32 %v1645, %v1713
  %v1978 = vadd.f32 %v1646, %v1717
  %v1979 = vadd.f32 %v1647, %v1721
  %v1980 = vadd.f32 %v1648, %v1701
  %v1981 = vadd.f32 %v1649, %v1705
  %v1982 = vadd.f32 %v1650, %v1709
  %v1983 = vadd.f32 %v1651, %v1713
  %v1984 = vadd.f32 %v1652, %v1717
  %v1985 = vadd.f32 %v1653, %v1721
  %v1986 = vadd.f32 %v1654, %v1701
  %v1987 = vadd.f32 %v1655, %v1705
  %v1988 = vadd.f32 %v1656, %v1709
  %v1989 = vadd.f32 %v1657, %v1713
  %v1990 = vadd.f32 %v1658, %v1717
  %v1991 = vadd.f32 %v1659, %v1721
  %v1992 = vadd.f32 %v1660, %v1701
  %v1993 = vadd.f32 %v1661, %v1705
  %v1994 = vadd.f32 %v1662, %v1709
  %v1995 = vadd.f32 %v1663, %v1713
  %v1996 = vadd.f32 %v1664, %v1717
  %v1997 = vadd.f32 %v1665, %v1721
  %v1998 = vadd.f32 %v1666, %v1701
  %v1999 = vadd.f32 %v1667, %v1705
  %v2000 = vadd.f32 %v1668, %v1709
  %v2001 = vadd.f32 %v1669, %v1713
  %v2002 = vadd.f32 %v1670, %v1717
  %v2003 = vadd.f32 %v1671, %v1721
  %v2004 = vadd.f32 %v1672, %v1701
  %v2005 = vadd.f32 %v1673, %v1705
  %v2006 = vadd.f32 %v1674, %v1709
  %v2007 = vadd.f32 %v1675, %v1713
  %v2008 = vadd.f32 %v1676, %v1717
  %v2009 = vadd.f32 %v1677, %v1721
  %v2010 = vadd.f32 %v1678, %v1701
  %v2011 = vadd.f32 %v1679, %v1705
  %v2012 = vadd.f32 %v1680, %v1709
  %v2013 = vadd.f32 %v1681, %v1713
  %v2014 = vadd.f32 %v1682, %v1717
  %v2015 = vadd.f32 %v1683, %v1721
  %v2016 = vadd.f32 %v1684, %v1701
  %v2017 = vadd.f32 %v1685, %v1705
  %v2018 = vadd.f32 %v1686, %v1709
  %v2019 = vadd.f32 %v1687, %v1713
  %v2020 = vadd.f32 %v1688, %v1717
  %v2021 = vadd.f32 %v1689, %v1721
  %v2022 = vadd.f32 %v1690, %v1701
  %v2023 = vadd.f32 %v1691, %v1705
  %v2024 = vadd.f32 %v1692, %v1709
  %v2025 = vadd.f32 %v1693, %v1713
  %v2026 = vadd.f32 %v1694, %v1717
  %v2027 = vadd.f32 %v1695, %v1721
  %v2028 = vmax.f32 %v1728, 0.0
  %v2029 = vmax.f32 %v1729, 0.0
  %v2030 = vmax.f32 %v1730, 0.0
  %v2031 = vmax.f32 %v1731, 0.0
  %v2032 = vmax.f32 %v1732, 0.0
  %v2033 = vmax.f32 %v1733, 0.0
  %v2034 = vmax.f32 %v1734, 0.0
  %v2035 = vmax.f32 %v1735, 0.0
  %v2036 = vmax.f32 %v1736, 0.0
  %v2037 = vmax.f32 %v1737, 0.0
  %v2038 = vmax.f32 %v1738, 0.0
  %v2039 = vmax.f32 %v1739, 0.0
  %v2040 = vmax.f32 %v1740, 0.0
  %v2041 = vmax.f32 %v1741, 0.0
  %v2042 = vmax.f32 %v1742, 0.0
  %v2043 = vmax.f32 %v1743, 0.0
  %v2044 = vmax.f32 %v1744, 0.0
  %v2045 = vmax.f32 %v1745, 0.0
  %v2046 = vmax.f32 %v1746, 0.0
  %v2047 = vmax.f32 %v1747, 0.0
  %v2048 = vmax.f32 %v1748, 0.0
  %v2049 = vmax.f32 %v1749, 0.0
  %v2050 = vmax.f32 %v1750, 0.0
  %v2051 = vmax.f32 %v1751, 0.0
  %v2052 = vmax.f32 %v1752, 0.0
  %v2053 = vmax.f32 %v1753, 0.0
  %v2054 = vmax.f32 %v1754, 0.0
  %v2055 = vmax.f32 %v1755, 0.0
  %v2056 = vmax.f32 %v1756, 0.0
  %v2057 = vmax.f32 %v1757, 0.0
  %v2058 = vmax.f32 %v1758, 0.0
  %v2059 = vmax.f32 %v1759, 0.0
  %v2060 = vmax.f32 %v1760, 0.0
  %v2061 = vmax.f32 %v1761, 0.0
  %v2062 = vmax.f32 %v1762, 0.0
  %v2063 = vmax.f32 %v1763, 0.0
  %v2064 = vmax.f32 %v1764, 0.0
  %v2065 = vmax.f32 %v1765, 0.0
  %v2066 = vmax.f32 %v1766, 0.0
  %v2067 = vmax.f32 %v1767, 0.0
  %v2068 = vmax.f32 %v1768, 0.0
  %v2069 = vmax.f32 %v1769, 0.0
  %v2070 = vmax.f32 %v1770, 0.0
  %v2071 = vmax.f32 %v1771, 0.0
  %v2072 = vmax.f32 %v1772, 0.0
  %v2073 = vmax.f32 %v1773, 0.0
  %v2074 = vmax.f32 %v1774, 0.0
  %v2075 = vmax.f32 %v1775, 0.0
  %v2076 = vmax.f32 %v1776, 0.0
  %v2077 = vmax.f32 %v1777, 0.0
  %v2078 = vmax.f32 %v1778, 0.0
  %v2079 = vmax.f32 %v1779, 0.0
  %v2080 = vmax.f32 %v1780, 0.0
  %v2081 = vmax.f32 %v1781, 0.0
  %v2082 = vmax.f32 %v1782, 0.0
  %v2083 = vmax.f32 %v1783, 0.0
  %v2084 = vmax.f32 %v1784, 0.0
  %v2085 = vmax.f32 %v1785, 0.0
  %v2086 = vmax.f32 %v1786, 0.0
  %v2087 = vmax.f32 %v1787, 0.0
  %v2088 = vmax.f32 %v1788, 0.0
  %v2089 = vmax.f32 %v1789, 0.0
  %v2090 = vmax.f32 %v1790, 0.0
  %v2091 = vmax.f32 %v1791, 0.0
  %v2092 = vmax.f32 %v1792, 0.0
  %v2093 = vmax.f32 %v1793, 0.0
  %v2094 = vmax.f32 %v1794, 0.0
  %v2095 = vmax.f32 %v1795, 0.0
  %v2096 = vmax.f32 %v1796, 0.0
  %v2097 = vmax.f32 %v1797, 0.0
  %v2098 = vmax.f32 %v1798, 0.0
  %v2099 = vmax.f32 %v1799, 0.0
  %v2100 = vmax.f32 %v1800, 0.0
  %v2101 = vmax.f32 %v1801, 0.0
  %v2102 = vmax.f32 %v1802, 0.0
  %v2103 = vmax.f32 %v1803, 0.0
  %v2104 = vmax.f32 %v1804, 0.0
  %v2105 = vmax.f32 %v1805, 0.0
  %v2106 = vmax.f32 %v1806, 0.0
  %v2107 = vmax.f32 %v1807, 0.0
  %v2108 = vmax.f32 %v1808, 0.0
  %v2109 = vmax.f32 %v1809, 0.0
  %v2110 = vmax.f32 %v1810, 0.0
  %v2111 = vmax.f32 %v1811, 0.0
  %v2112 = vmax.f32 %v1812, 0.0
  %v2113 = vmax.f32 %v1813, 0.0
  %v2114 = vmax.f32 %v1814, 0.0
  %v2115 = vmax.f32 %v1815, 0.0
  %v2116 = vmax.f32 %v1816, 0.0
  %v2117 = vmax.f32 %v1817, 0.0
  %v2118 = vmax.f32 %v1818, 0.0
  %v2119 = vmax.f32 %v1819, 0.0
  %v2120 = vmax.f32 %v1820, 0.0
  %v2121 = vmax.f32 %v1821, 0.0
  %v2122 = vmax.f32 %v1822, 0.0
  %v2123 = vmax.f32 %v1823, 0.0
  %v2124 = vmax.f32 %v1824, 0.0
  %v2125 = vmax.f32 %v1825, 0.0
  %v2126 = vmax.f32 %v1826, 0.0
  %v2127 = vmax.f32 %v1827, 0.0
  %v2128 = vmax.f32 %v1828, 0.0
  %v2129 = vmax.f32 %v1829, 0.0
  %v2130 = vmax.f32 %v1830, 0.0
  %v2131 = vmax.f32 %v1831, 0.0
  %v2132 = vmax.f32 %v1832, 0.0
  %v2133 = vmax.f32 %v1833, 0.0
  %v2134 = vmax.f32 %v1834, 0.0
  %v2135 = vmax.f32 %v1835, 0.0
  %v2136 = vmax.f32 %v1836, 0.0
  %v2137 = vmax.f32 %v1837, 0.0
  %v2138 = vmax.f32 %v1838, 0.0
  %v2139 = vmax.f32 %v1839, 0.0
  %v2140 = vmax.f32 %v1840, 0.0
  %v2141 = vmax.f32 %v1841, 0.0
  %v2142 = vmax.f32 %v1842, 0.0
  %v2143 = vmax.f32 %v1843, 0.0
  %v2144 = vmax.f32 %v1844, 0.0
  %v2145 = vmax.f32 %v1845, 0.0
  %v2146 = vmax.f32 %v1846, 0.0
  %v2147 = vmax.f32 %v1847, 0.0
  %v2148 = vmax.f32 %v1848, 0.0
  %v2149 = vmax.f32 %v1849, 0.0
  %v2150 = vmax.f32 %v1850, 0.0
  %v2151 = vmax.f32 %v1851, 0.0
  %v2152 = vmax.f32 %v1852, 0.0
  %v2153 = vmax.f32 %v1853, 0.0
  %v2154 = vmax.f32 %v1854, 0.0
  %v2155 = vmax.f32 %v1855, 0.0
  %v2156 = vmax.f32 %v1856, 0.0
  %v2157 = vmax.f32 %v1857, 0.0
  %v2158 = vmax.f32 %v1858, 0.0
  %v2159 = vmax.f32 %v1859, 0.0
  %v2160 = vmax.f32 %v1860, 0.0
  %v2161 = vmax.f32 %v1861, 0.0
  %v2162 = vmax.f32 %v1862, 0.0
  %v2163 = vmax.f32 %v1863, 0.0
  %v2164 = vmax.f32 %v1864, 0.0
  %v2165 = vmax.f32 %v1865, 0.0
  %v2166 = vmax.f32 %v1866, 0.0
  %v2167 = vmax.f32 %v1867, 0.0
  %v2168 = vmax.f32 %v1868, 0.0
  %v2169 = vmax.f32 %v1869, 0.0
  %v2170 = vmax.f32 %v1870, 0.0
  %v2171 = vmax.f32 %v1871, 0.0
  %v2172 = vmax.f32 %v1872, 0.0
  %v2173 = vmax.f32 %v1873, 0.0
  %v2174 = vmax.f32 %v1874, 0.0
  %v2175 = vmax.f32 %v1875, 0.0
  %v2176 = vmax.f32 %v1876, 0.0
  %v2177 = vmax.f32 %v1877, 0.0
  %v2178 = vmax.f32 %v1878, 0.0
  %v2179 = vmax.f32 %v1879, 0.0
  %v2180 = vmax.f32 %v1880, 0.0
  %v2181 = vmax.f32 %v1881, 0.0
  %v2182 = vmax.f32 %v1882, 0.0
  %v2183 = vmax.f32 %v1883, 0.0
  %v2184 = vmax.f32 %v1884, 0.0
  %v2185 = vmax.f32 %v1885, 0.0
  %v2186 = vmax.f32 %v1886, 0.0
  %v2187 = vmax.f32 %v1887, 0.0
  %v2188 = vmax.f32 %v1888, 0.0
  %v2189 = vmax.f32 %v1889, 0.0
  %v2190 = vmax.f32 %v1890, 0.0
  %v2191 = vmax.f32 %v1891, 0.0
  %v2192 = vmax.f32 %v1892, 0.0
  %v2193 = vmax.f32 %v1893, 0.0
  %v2194 = vmax.f32 %v1894, 0.0
  %v2195 = vmax.f32 %v1895, 0.0
  %v2196 = vmax.f32 %v1896, 0.0
  %v2197 = vmax.f32 %v1897, 0.0
  %v2198 = vmax.f32 %v1898, 0.0
  %v2199 = vmax.f32 %v1899, 0.0
  %v2200 = vmax.f32 %v1900, 0.0
  %v2201 = vmax.f32 %v1901, 0.0
  %v2202 = vmax.f32 %v1902, 0.0
  %v2203 = vmax.f32 %v1903, 0.0
  %v2204 = vmax.f32 %v1904, 0.0
  %v2205 = vmax.f32 %v1905, 0.0
  %v2206 = vmax.f32 %v1906, 0.0
  %v2207 = vmax.f32 %v1907, 0.0
  %v2208 = vmax.f32 %v1908, 0.0
  %v2209 = vmax.f32 %v1909, 0.0
  %v2210 = vmax.f32 %v1910, 0.0
  %v2211 = vmax.f32 %v1911, 0.0
  %v2212 = vmax.f32 %v1912, 0.0
  %v2213 = vmax.f32 %v1913, 0.0
  %v2214 = vmax.f32 %v1914, 0.0
  %v2215 = vmax.f32 %v1915, 0.0
  %v2216 = vmax.f32 %v1916, 0.0
  %v2217 = vmax.f32 %v1917, 0.0
  %v2218 = vmax.f32 %v1918, 0.0
  %v2219 = vmax.f32 %v1919, 0.0
  %v2220 = vmax.f32 %v1920, 0.0
  %v2221 = vmax.f32 %v1921, 0.0
  %v2222 = vmax.f32 %v1922, 0.0
  %v2223 = vmax.f32 %v1923, 0.0
  %v2224 = vmax.f32 %v1924, 0.0
  %v2225 = vmax.f32 %v1925, 0.0
  %v2226 = vmax.f32 %v1926, 0.0
  %v2227 = vmax.f32 %v1927, 0.0
  %v2228 = vmax.f32 %v1928, 0.0
  %v2229 = vmax.f32 %v1929, 0.0
  %v2230 = vmax.f32 %v1930, 0.0
  %v2231 = vmax.f32 %v1931, 0.0
  %v2232 = vmax.f32 %v1932, 0.0
  %v2233 = vmax.f32 %v1933, 0.0
  %v2234 = vmax.f32 %v1934, 0.0
  %v2235 = vmax.f32 %v1935, 0.0
  %v2236 = vmax.f32 %v1936, 0.0
  %v2237 = vmax.f32 %v1937, 0.0
  %v2238 = vmax.f32 %v1938, 0.0
  %v2239 = vmax.f32 %v1939, 0.0
  %v2240 = vmax.f32 %v1940, 0.0
  %v2241 = vmax.f32 %v1941, 0.0
  %v2242 = vmax.f32 %v1942, 0.0
  %v2243 = vmax.f32 %v1943, 0.0
  %v2244 = vmax.f32 %v1944, 0.0
  %v2245 = vmax.f32 %v1945, 0.0
  %v2246 = vmax.f32 %v1946, 0.0
  %v2247 = vmax.f32 %v1947, 0.0
  %v2248 = vmax.f32 %v1948, 0.0
  %v2249 = vmax.f32 %v1949, 0.0
  %v2250 = vmax.f32 %v1950, 0.0
  %v2251 = vmax.f32 %v1951, 0.0
  %v2252 = vmax.f32 %v1952, 0.0
  %v2253 = vmax.f32 %v1953, 0.0
  %v2254 = vmax.f32 %v1954, 0.0
  %v2255 = vmax.f32 %v1955, 0.0
  %v2256 = vmax.f32 %v1956, 0.0
  %v2257 = vmax.f32 %v1957, 0.0
  %v2258 = vmax.f32 %v1958, 0.0
  %v2259 = vmax.f32 %v1959, 0.0
  %v2260 = vmax.f32 %v1960, 0.0
  %v2261 = vmax.f32 %v1961, 0.0
  %v2262 = vmax.f32 %v1962, 0.0
  %v2263 = vmax.f32 %v1963, 0.0
  %v2264 = vmax.f32 %v1964, 0.0
  %v2265 = vmax.f32 %v1965, 0.0
  %v2266 = vmax.f32 %v1966, 0.0
  %v2267 = vmax.f32 %v1967, 0.0
  %v2268 = vmax.f32 %v1968, 0.0
  %v2269 = vmax.f32 %v1969, 0.0
  %v2270 = vmax.f32 %v1970, 0.0
  %v2271 = vmax.f32 %v1971, 0.0
  %v2272 = vmax.f32 %v1972, 0.0
  %v2273 = vmax.f32 %v1973, 0.0
  %v2274 = vmax.f32 %v1974, 0.0
  %v2275 = vmax.f32 %v1975, 0.0
  %v2276 = vmax.f32 %v1976, 0.0
  %v2277 = vmax.f32 %v1977, 0.0
  %v2278 = vmax.f32 %v1978, 0.0
  %v2279 = vmax.f32 %v1979, 0.0
  %v2280 = vmax.f32 %v1980, 0.0
  %v2281 = vmax.f32 %v1981, 0.0
  %v2282 = vmax.f32 %v1982, 0.0
  %v2283 = vmax.f32 %v1983, 0.0
  %v2284 = vmax.f32 %v1984, 0.0
  %v2285 = vmax.f32 %v1985, 0.0
  %v2286 = vmax.f32 %v1986, 0.0
  %v2287 = vmax.f32 %v1987, 0.0
  %v2288 = vmax.f32 %v1988, 0.0
  %v2289 = vmax.f32 %v1989, 0.0
  %v2290 = vmax.f32 %v1990, 0.0
  %v2291 = vmax.f32 %v1991, 0.0
  %v2292 = vmax.f32 %v1992, 0.0
  %v2293 = vmax.f32 %v1993, 0.0
  %v2294 = vmax.f32 %v1994, 0.0
  %v2295 = vmax.f32 %v1995, 0.0
  %v2296 = vmax.f32 %v1996, 0.0
  %v2297 = vmax.f32 %v1997, 0.0
  %v2298 = vmax.f32 %v1998, 0.0
  %v2299 = vmax.f32 %v1999, 0.0
  %v2300 = vmax.f32 %v2000, 0.0
  %v2301 = vmax.f32 %v2001, 0.0
  %v2302 = vmax.f32 %v2002, 0.0
  %v2303 = vmax.f32 %v2003, 0.0
  %v2304 = vmax.f32 %v2004, 0.0
  %v2305 = vmax.f32 %v2005, 0.0
  %v2306 = vmax.f32 %v2006, 0.0
  %v2307 = vmax.f32 %v2007, 0.0
  %v2308 = vmax.f32 %v2008, 0.0
  %v2309 = vmax.f32 %v2009, 0.0
  %v2310 = vmax.f32 %v2010, 0.0
  %v2311 = vmax.f32 %v2011, 0.0
  %v2312 = vmax.f32 %v2012, 0.0
  %v2313 = vmax.f32 %v2013, 0.0
  %v2314 = vmax.f32 %v2014, 0.0
  %v2315 = vmax.f32 %v2015, 0.0
  %v2316 = vmax.f32 %v2016, 0.0
  %v2317 = vmax.f32 %v2017, 0.0
  %v2318 = vmax.f32 %v2018, 0.0
  %v2319 = vmax.f32 %v2019, 0.0
  %v2320 = vmax.f32 %v2020, 0.0
  %v2321 = vmax.f32 %v2021, 0.0
  %v2322 = vmax.f32 %v2022, 0.0
  %v2323 = vmax.f32 %v2023, 0.0
  %v2324 = vmax.f32 %v2024, 0.0
  %v2325 = vmax.f32 %v2025, 0.0
  %v2326 = vmax.f32 %v2026, 0.0
  %v2327 = vmax.f32 %v2027, 0.0
  %v2328 = vpack.c.bf16 %v2034, %v2028
  %v2329 = vpack.c.bf16 %v2035, %v2029
  %v2330 = vpack.c.bf16 %v2036, %v2030
  %v2331 = vpack.c.bf16 %v2037, %v2031
  %v2332 = vpack.c.bf16 %v2038, %v2032
  %v2333 = vpack.c.bf16 %v2039, %v2033
  %v2334 = vpack.c.bf16 %v2046, %v2040
  %v2335 = vpack.c.bf16 %v2047, %v2041
  %v2336 = vpack.c.bf16 %v2048, %v2042
  %v2337 = vpack.c.bf16 %v2049, %v2043
  %v2338 = vpack.c.bf16 %v2050, %v2044
  %v2339 = vpack.c.bf16 %v2051, %v2045
  %v2340 = vpack.c.bf16 %v2058, %v2052
  %v2341 = vpack.c.bf16 %v2059, %v2053
  %v2342 = vpack.c.bf16 %v2060, %v2054
  %v2343 = vpack.c.bf16 %v2061, %v2055
  %v2344 = vpack.c.bf16 %v2062, %v2056
  %v2345 = vpack.c.bf16 %v2063, %v2057
  %v2346 = vpack.c.bf16 %v2070, %v2064
  %v2347 = vpack.c.bf16 %v2071, %v2065
  %v2348 = vpack.c.bf16 %v2072, %v2066
  %v2349 = vpack.c.bf16 %v2073, %v2067
  %v2350 = vpack.c.bf16 %v2074, %v2068
  %v2351 = vpack.c.bf16 %v2075, %v2069
  %v2352 = vpack.c.bf16 %v2082, %v2076
  %v2353 = vpack.c.bf16 %v2083, %v2077
  %v2354 = vpack.c.bf16 %v2084, %v2078
  %v2355 = vpack.c.bf16 %v2085, %v2079
  %v2356 = vpack.c.bf16 %v2086, %v2080
  %v2357 = vpack.c.bf16 %v2087, %v2081
  %v2358 = vpack.c.bf16 %v2094, %v2088
  %v2359 = vpack.c.bf16 %v2095, %v2089
  %v2360 = vpack.c.bf16 %v2096, %v2090
  %v2361 = vpack.c.bf16 %v2097, %v2091
  %v2362 = vpack.c.bf16 %v2098, %v2092
  %v2363 = vpack.c.bf16 %v2099, %v2093
  %v2364 = vpack.c.bf16 %v2106, %v2100
  %v2365 = vpack.c.bf16 %v2107, %v2101
  %v2366 = vpack.c.bf16 %v2108, %v2102
  %v2367 = vpack.c.bf16 %v2109, %v2103
  %v2368 = vpack.c.bf16 %v2110, %v2104
  %v2369 = vpack.c.bf16 %v2111, %v2105
  %v2370 = vpack.c.bf16 %v2118, %v2112
  %v2371 = vpack.c.bf16 %v2119, %v2113
  %v2372 = vpack.c.bf16 %v2120, %v2114
  %v2373 = vpack.c.bf16 %v2121, %v2115
  %v2374 = vpack.c.bf16 %v2122, %v2116
  %v2375 = vpack.c.bf16 %v2123, %v2117
  %v2376 = vpack.c.bf16 %v2130, %v2124
  %v2377 = vpack.c.bf16 %v2131, %v2125
  %v2378 = vpack.c.bf16 %v2132, %v2126
  %v2379 = vpack.c.bf16 %v2133, %v2127
  %v2380 = vpack.c.bf16 %v2134, %v2128
  %v2381 = vpack.c.bf16 %v2135, %v2129
  %v2382 = vpack.c.bf16 %v2142, %v2136
  %v2383 = vpack.c.bf16 %v2143, %v2137
  %v2384 = vpack.c.bf16 %v2144, %v2138
  %v2385 = vpack.c.bf16 %v2145, %v2139
  %v2386 = vpack.c.bf16 %v2146, %v2140
  %v2387 = vpack.c.bf16 %v2147, %v2141
  %v2388 = vpack.c.bf16 %v2154, %v2148
  %v2389 = vpack.c.bf16 %v2155, %v2149
  %v2390 = vpack.c.bf16 %v2156, %v2150
  %v2391 = vpack.c.bf16 %v2157, %v2151
  %v2392 = vpack.c.bf16 %v2158, %v2152
  %v2393 = vpack.c.bf16 %v2159, %v2153
  %v2394 = vpack.c.bf16 %v2166, %v2160
  %v2395 = vpack.c.bf16 %v2167, %v2161
  %v2396 = vpack.c.bf16 %v2168, %v2162
  %v2397 = vpack.c.bf16 %v2169, %v2163
  %v2398 = vpack.c.bf16 %v2170, %v2164
  %v2399 = vpack.c.bf16 %v2171, %v2165
  %v2400 = vpack.c.bf16 %v2178, %v2172
  %v2401 = vpack.c.bf16 %v2179, %v2173
  %v2402 = vpack.c.bf16 %v2180, %v2174
  %v2403 = vpack.c.bf16 %v2181, %v2175
  %v2404 = vpack.c.bf16 %v2182, %v2176
  %v2405 = vpack.c.bf16 %v2183, %v2177
  %v2406 = vpack.c.bf16 %v2190, %v2184
  %v2407 = vpack.c.bf16 %v2191, %v2185
  %v2408 = vpack.c.bf16 %v2192, %v2186
  %v2409 = vpack.c.bf16 %v2193, %v2187
  %v2410 = vpack.c.bf16 %v2194, %v2188
  %v2411 = vpack.c.bf16 %v2195, %v2189
  %v2412 = vpack.c.bf16 %v2202, %v2196
  %v2413 = vpack.c.bf16 %v2203, %v2197
  %v2414 = vpack.c.bf16 %v2204, %v2198
  %v2415 = vpack.c.bf16 %v2205, %v2199
  %v2416 = vpack.c.bf16 %v2206, %v2200
  %v2417 = vpack.c.bf16 %v2207, %v2201
  %v2418 = vpack.c.bf16 %v2214, %v2208
  %v2419 = vpack.c.bf16 %v2215, %v2209
  %v2420 = vpack.c.bf16 %v2216, %v2210
  %v2421 = vpack.c.bf16 %v2217, %v2211
  %v2422 = vpack.c.bf16 %v2218, %v2212
  %v2423 = vpack.c.bf16 %v2219, %v2213
  %v2424 = vpack.c.bf16 %v2226, %v2220
  %v2425 = vpack.c.bf16 %v2227, %v2221
  %v2426 = vpack.c.bf16 %v2228, %v2222
  %v2427 = vpack.c.bf16 %v2229, %v2223
  %v2428 = vpack.c.bf16 %v2230, %v2224
  %v2429 = vpack.c.bf16 %v2231, %v2225
  %v2430 = vpack.c.bf16 %v2238, %v2232
  %v2431 = vpack.c.bf16 %v2239, %v2233
  %v2432 = vpack.c.bf16 %v2240, %v2234
  %v2433 = vpack.c.bf16 %v2241, %v2235
  %v2434 = vpack.c.bf16 %v2242, %v2236
  %v2435 = vpack.c.bf16 %v2243, %v2237
  %v2436 = vpack.c.bf16 %v2250, %v2244
  %v2437 = vpack.c.bf16 %v2251, %v2245
  %v2438 = vpack.c.bf16 %v2252, %v2246
  %v2439 = vpack.c.bf16 %v2253, %v2247
  %v2440 = vpack.c.bf16 %v2254, %v2248
  %v2441 = vpack.c.bf16 %v2255, %v2249
  %v2442 = vpack.c.bf16 %v2262, %v2256
  %v2443 = vpack.c.bf16 %v2263, %v2257
  %v2444 = vpack.c.bf16 %v2264, %v2258
  %v2445 = vpack.c.bf16 %v2265, %v2259
  %v2446 = vpack.c.bf16 %v2266, %v2260
  %v2447 = vpack.c.bf16 %v2267, %v2261
  %v2448 = vpack.c.bf16 %v2274, %v2268
  %v2449 = vpack.c.bf16 %v2275, %v2269
  %v2450 = vpack.c.bf16 %v2276, %v2270
  %v2451 = vpack.c.bf16 %v2277, %v2271
  %v2452 = vpack.c.bf16 %v2278, %v2272
  %v2453 = vpack.c.bf16 %v2279, %v2273
  %v2454 = vpack.c.bf16 %v2286, %v2280
  %v2455 = vpack.c.bf16 %v2287, %v2281
  %v2456 = vpack.c.bf16 %v2288, %v2282
  %v2457 = vpack.c.bf16 %v2289, %v2283
  %v2458 = vpack.c.bf16 %v2290, %v2284
  %v2459 = vpack.c.bf16 %v2291, %v2285
  %v2460 = vpack.c.bf16 %v2298, %v2292
  %v2461 = vpack.c.bf16 %v2299, %v2293
  %v2462 = vpack.c.bf16 %v2300, %v2294
  %v2463 = vpack.c.bf16 %v2301, %v2295
  %v2464 = vpack.c.bf16 %v2302, %v2296
  %v2465 = vpack.c.bf16 %v2303, %v2297
  %v2466 = vpack.c.bf16 %v2310, %v2304
  %v2467 = vpack.c.bf16 %v2311, %v2305
  %v2468 = vpack.c.bf16 %v2312, %v2306
  %v2469 = vpack.c.bf16 %v2313, %v2307
  %v2470 = vpack.c.bf16 %v2314, %v2308
  %v2471 = vpack.c.bf16 %v2315, %v2309
  %v2472 = vpack.c.bf16 %v2322, %v2316
  %v2473 = vpack.c.bf16 %v2323, %v2317
  %v2474 = vpack.c.bf16 %v2324, %v2318
  %v2475 = vpack.c.bf16 %v2325, %v2319
  %v2476 = vpack.c.bf16 %v2326, %v2320
  %v2477 = vpack.c.bf16 %v2327, %v2321
  %v2478 = vld [vmem:[%s4] sm:$0xff]
  %v2479 = vld [vmem:[%s4 + $0x8] sm:$0xff]
  %v2480 = vld [vmem:[%s4 + $0x10] sm:$0xff]
  %v2481 = vld [vmem:[%s4 + $0x18] sm:$0xff]
  %v2486 = vunpack.c.l.b16 %v2478
  %v2487 = vunpack.c.h.b16 %v2478
  %v2488 = vunpack.c.l.b16 %v2479
  %v2489 = vunpack.c.h.b16 %v2479
  %v2490 = vunpack.c.l.b16 %v2480
  %v2491 = vunpack.c.h.b16 %v2480
  %v2492 = vunpack.c.l.b16 %v2481
  %v2493 = vunpack.c.h.b16 %v2481
  %v2494 = vpack.c.b16 %v2490, %v2486
  %v2495 = vpack.c.b16 %v2491, %v2487
  %v2496 = vpack.c.b16 %v2492, %v2488
  %v2497 = vpack.c.b16 %v2493, %v2489
  %vm2501 = vcmask 130048
  %v2503 = vsel %vm2501, %v2497, 0
  %2505 = vmatprep.subr.bf16.mxu0 %v2329
  %2506 = vmatpush1.bf16.msra.mxu0 %v2328
  %2507 = vmatprep.subr.bf16.mxu0 %v2335
  %2508 = vmatpush1.bf16.msra.mxu0 %v2334
  %2509 = vmatprep.subr.bf16.mxu0 %v2341
  %2510 = vmatpush1.bf16.msra.mxu0 %v2340
  %2511 = vmatprep.subr.bf16.mxu0 %v2347
  %2512 = vmatpush1.bf16.msra.mxu0 %v2346
  %2513 = vmatprep.subr.bf16.mxu0 %v2353
  %2514 = vmatpush1.bf16.msra.mxu0 %v2352
  %2515 = vmatprep.subr.bf16.mxu0 %v2359
  %2516 = vmatpush1.bf16.msra.mxu0 %v2358
  %2517 = vmatprep.subr.bf16.mxu0 %v2365
  %2518 = vmatpush1.bf16.msra.mxu0 %v2364
  %2519 = vmatprep.subr.bf16.mxu0 %v2371
  %2520 = vmatpush1.bf16.msra.mxu0 %v2370
  %2521 = vmatprep.subr.bf16.mxu0 %v2377
  %2522 = vmatpush1.bf16.msra.mxu0 %v2376
  %2523 = vmatprep.subr.bf16.mxu0 %v2383
  %2524 = vmatpush1.bf16.msra.mxu0 %v2382
  %2525 = vmatprep.subr.bf16.mxu0 %v2389
  %2526 = vmatpush1.bf16.msra.mxu0 %v2388
  %2527 = vmatprep.subr.bf16.mxu0 %v2395
  %2528 = vmatpush1.bf16.msra.mxu0 %v2394
  %2529 = vmatprep.subr.bf16.mxu0 %v2401
  %2530 = vmatpush1.bf16.msra.mxu0 %v2400
  %2531 = vmatprep.subr.bf16.mxu0 %v2407
  %2532 = vmatpush1.bf16.msra.mxu0 %v2406
  %2533 = vmatprep.subr.bf16.mxu0 %v2413
  %2534 = vmatpush1.bf16.msra.mxu0 %v2412
  %2535 = vmatprep.subr.bf16.mxu0 %v2419
  %2536 = vmatpush1.bf16.msra.mxu0 %v2418
  %2537 = vmatprep.mubr.bf16.mxu0 %v2495
  %2538 = vmatmul.mubr.bf16.gmra.mrb[0].mxu0 %v2494
  %v2539 = vpop.f32.mrb[0].mxu0
  %v2540 = vadd.f32 0.0, %v2539
  %v2541 = vpop.f32.mrb[0].mxu0
  %v2542 = vadd.f32 0.0, %v2541
  %v2543 = vpop.f32.mrb[0].mxu0
  %v2544 = vadd.f32 0.0, %v2543
  %v2545 = vpop.f32.mrb[0].mxu0
  %v2546 = vadd.f32 0.0, %v2545
  %2547 = vdwg.mxu0
  %2548 = vmatprep.subr.bf16.mxu0 %v2425
  %2549 = vmatpush1.bf16.msra.mxu0 %v2424
  %2550 = vmatprep.subr.bf16.mxu0 %v2431
  %2551 = vmatpush1.bf16.msra.mxu0 %v2430
  %2552 = vmatprep.subr.bf16.mxu0 %v2437
  %2553 = vmatpush1.bf16.msra.mxu0 %v2436
  %2554 = vmatprep.subr.bf16.mxu0 %v2443
  %2555 = vmatpush1.bf16.msra.mxu0 %v2442
  %2556 = vmatprep.subr.bf16.mxu0 %v2449
  %2557 = vmatpush1.bf16.msra.mxu0 %v2448
  %2558 = vmatprep.subr.bf16.mxu0 %v2455
  %2559 = vmatpush1.bf16.msra.mxu0 %v2454
  %2560 = vmatprep.subr.bf16.mxu0 %v2461
  %2561 = vmatpush1.bf16.msra.mxu0 %v2460
  %2562 = vmatprep.subr.bf16.mxu0 %v2467
  %2563 = vmatpush1.bf16.msra.mxu0 %v2466
  %2564 = vmatprep.subr.bf16.mxu0 %v2473
  %2565 = vmatpush1.bf16.msra.mxu0 %v2472
  %2566 = vmatprep.subr.bf16.mxu0 0
  %2567 = vmatpush1.bf16.msra.mxu0 0
  %2568 = vmatprep.subr.bf16.mxu0 0
  %2569 = vmatpush1.bf16.msra.mxu0 0
  %2570 = vmatprep.subr.bf16.mxu0 0
  %2571 = vmatpush1.bf16.msra.mxu0 0
  %2572 = vmatprep.subr.bf16.mxu0 0
  %2573 = vmatpush1.bf16.msra.mxu0 0
  %2574 = vmatprep.subr.bf16.mxu0 0
  %2575 = vmatpush1.bf16.msra.mxu0 0
  %2576 = vmatprep.subr.bf16.mxu0 0
  %2577 = vmatpush1.bf16.msra.mxu0 0
  %2578 = vmatprep.subr.bf16.mxu0 0
  %2579 = vmatpush1.bf16.msra.mxu0 0
  %2580 = vmatprep.mubr.bf16.mxu0 %v2503
  %2581 = vmatmul.mubr.bf16.gmra.mrb[0].mxu0 %v2496
  %v2582 = vpop.f32.mrb[0].mxu0
  %v2583 = vadd.f32 %v2540, %v2582
  %v2584 = vpop.f32.mrb[0].mxu0
  %v2585 = vadd.f32 %v2542, %v2584
  %v2586 = vpop.f32.mrb[0].mxu0
  %v2587 = vadd.f32 %v2544, %v2586
  %v2588 = vpop.f32.mrb[0].mxu0
  %v2589 = vadd.f32 %v2546, %v2588
  %2590 = vdwg.mxu0
  %2591 = vmatprep.subr.bf16.mxu0 %v2331
  %2592 = vmatpush1.bf16.msra.mxu0 %v2330
  %2593 = vmatprep.subr.bf16.mxu0 %v2337
  %2594 = vmatpush1.bf16.msra.mxu0 %v2336
  %2595 = vmatprep.subr.bf16.mxu0 %v2343
  %2596 = vmatpush1.bf16.msra.mxu0 %v2342
  %2597 = vmatprep.subr.bf16.mxu0 %v2349
  %2598 = vmatpush1.bf16.msra.mxu0 %v2348
  %2599 = vmatprep.subr.bf16.mxu0 %v2355
  %2600 = vmatpush1.bf16.msra.mxu0 %v2354
  %2601 = vmatprep.subr.bf16.mxu0 %v2361
  %2602 = vmatpush1.bf16.msra.mxu0 %v2360
  %2603 = vmatprep.subr.bf16.mxu0 %v2367
  %2604 = vmatpush1.bf16.msra.mxu0 %v2366
  %2605 = vmatprep.subr.bf16.mxu0 %v2373
  %2606 = vmatpush1.bf16.msra.mxu0 %v2372
  %2607 = vmatprep.subr.bf16.mxu0 %v2379
  %2608 = vmatpush1.bf16.msra.mxu0 %v2378
  %2609 = vmatprep.subr.bf16.mxu0 %v2385
  %2610 = vmatpush1.bf16.msra.mxu0 %v2384
  %2611 = vmatprep.subr.bf16.mxu0 %v2391
  %2612 = vmatpush1.bf16.msra.mxu0 %v2390
  %2613 = vmatprep.subr.bf16.mxu0 %v2397
  %2614 = vmatpush1.bf16.msra.mxu0 %v2396
  %2615 = vmatprep.subr.bf16.mxu0 %v2403
  %2616 = vmatpush1.bf16.msra.mxu0 %v2402
  %2617 = vmatprep.subr.bf16.mxu0 %v2409
  %2618 = vmatpush1.bf16.msra.mxu0 %v2408
  %2619 = vmatprep.subr.bf16.mxu0 %v2415
  %2620 = vmatpush1.bf16.msra.mxu0 %v2414
  %2621 = vmatprep.subr.bf16.mxu0 %v2421
  %2622 = vmatpush1.bf16.msra.mxu0 %v2420
  %2623 = vmatprep.mubr.bf16.mxu0 %v2495
  %2624 = vmatmul.mubr.bf16.gmra.mrb[0].mxu0 %v2494
  %v2625 = vpop.f32.mrb[0].mxu0
  %v2626 = vadd.f32 0.0, %v2625
  %v2627 = vpop.f32.mrb[0].mxu0
  %v2628 = vadd.f32 0.0, %v2627
  %v2629 = vpop.f32.mrb[0].mxu0
  %v2630 = vadd.f32 0.0, %v2629
  %v2631 = vpop.f32.mrb[0].mxu0
  %v2632 = vadd.f32 0.0, %v2631
  %2633 = vdwg.mxu0
  %2634 = vmatprep.subr.bf16.mxu0 %v2427
  %2635 = vmatpush1.bf16.msra.mxu0 %v2426
  %2636 = vmatprep.subr.bf16.mxu0 %v2433
  %2637 = vmatpush1.bf16.msra.mxu0 %v2432
  %2638 = vmatprep.subr.bf16.mxu0 %v2439
  %2639 = vmatpush1.bf16.msra.mxu0 %v2438
  %2640 = vmatprep.subr.bf16.mxu0 %v2445
  %2641 = vmatpush1.bf16.msra.mxu0 %v2444
  %2642 = vmatprep.subr.bf16.mxu0 %v2451
  %2643 = vmatpush1.bf16.msra.mxu0 %v2450
  %2644 = vmatprep.subr.bf16.mxu0 %v2457
  %2645 = vmatpush1.bf16.msra.mxu0 %v2456
  %2646 = vmatprep.subr.bf16.mxu0 %v2463
  %2647 = vmatpush1.bf16.msra.mxu0 %v2462
  %2648 = vmatprep.subr.bf16.mxu0 %v2469
  %2649 = vmatpush1.bf16.msra.mxu0 %v2468
  %2650 = vmatprep.subr.bf16.mxu0 %v2475
  %2651 = vmatpush1.bf16.msra.mxu0 %v2474
  %2652 = vmatprep.subr.bf16.mxu0 0
  %2653 = vmatpush1.bf16.msra.mxu0 0
  %2654 = vmatprep.subr.bf16.mxu0 0
  %2655 = vmatpush1.bf16.msra.mxu0 0
  %2656 = vmatprep.subr.bf16.mxu0 0
  %2657 = vmatpush1.bf16.msra.mxu0 0
  %2658 = vmatprep.subr.bf16.mxu0 0
  %2659 = vmatpush1.bf16.msra.mxu0 0
  %2660 = vmatprep.subr.bf16.mxu0 0
  %2661 = vmatpush1.bf16.msra.mxu0 0
  %2662 = vmatprep.subr.bf16.mxu0 0
  %2663 = vmatpush1.bf16.msra.mxu0 0
  %2664 = vmatprep.subr.bf16.mxu0 0
  %2665 = vmatpush1.bf16.msra.mxu0 0
  %2666 = vmatprep.mubr.bf16.mxu0 %v2503
  %2667 = vmatmul.mubr.bf16.gmra.mrb[0].mxu0 %v2496
  %v2668 = vpop.f32.mrb[0].mxu0
  %v2669 = vadd.f32 %v2626, %v2668
  %v2670 = vpop.f32.mrb[0].mxu0
  %v2671 = vadd.f32 %v2628, %v2670
  %v2672 = vpop.f32.mrb[0].mxu0
  %v2673 = vadd.f32 %v2630, %v2672
  %v2674 = vpop.f32.mrb[0].mxu0
  %v2675 = vadd.f32 %v2632, %v2674
  %2676 = vdwg.mxu0
  %2677 = vmatprep.subr.bf16.mxu0 %v2333
  %2678 = vmatpush1.bf16.msra.mxu0 %v2332
  %2679 = vmatprep.subr.bf16.mxu0 %v2339
  %2680 = vmatpush1.bf16.msra.mxu0 %v2338
  %2681 = vmatprep.subr.bf16.mxu0 %v2345
  %2682 = vmatpush1.bf16.msra.mxu0 %v2344
  %2683 = vmatprep.subr.bf16.mxu0 %v2351
  %2684 = vmatpush1.bf16.msra.mxu0 %v2350
  %2685 = vmatprep.subr.bf16.mxu0 %v2357
  %2686 = vmatpush1.bf16.msra.mxu0 %v2356
  %2687 = vmatprep.subr.bf16.mxu0 %v2363
  %2688 = vmatpush1.bf16.msra.mxu0 %v2362
  %2689 = vmatprep.subr.bf16.mxu0 %v2369
  %2690 = vmatpush1.bf16.msra.mxu0 %v2368
  %2691 = vmatprep.subr.bf16.mxu0 %v2375
  %2692 = vmatpush1.bf16.msra.mxu0 %v2374
  %2693 = vmatprep.subr.bf16.mxu0 %v2381
  %2694 = vmatpush1.bf16.msra.mxu0 %v2380
  %2695 = vmatprep.subr.bf16.mxu0 %v2387
  %2696 = vmatpush1.bf16.msra.mxu0 %v2386
  %2697 = vmatprep.subr.bf16.mxu0 %v2393
  %2698 = vmatpush1.bf16.msra.mxu0 %v2392
  %2699 = vmatprep.subr.bf16.mxu0 %v2399
  %2700 = vmatpush1.bf16.msra.mxu0 %v2398
  %2701 = vmatprep.subr.bf16.mxu0 %v2405
  %2702 = vmatpush1.bf16.msra.mxu0 %v2404
  %2703 = vmatprep.subr.bf16.mxu0 %v2411
  %2704 = vmatpush1.bf16.msra.mxu0 %v2410
  %2705 = vmatprep.subr.bf16.mxu0 %v2417
  %2706 = vmatpush1.bf16.msra.mxu0 %v2416
  %2707 = vmatprep.subr.bf16.mxu0 %v2423
  %2708 = vmatpush1.bf16.msra.mxu0 %v2422
  %2709 = vmatprep.mubr.bf16.mxu0 %v2495
  %2710 = vmatmul.mubr.bf16.gmra.mrb[0].mxu0 %v2494
  %v2711 = vpop.f32.mrb[0].mxu0
  %v2712 = vadd.f32 0.0, %v2711
  %v2713 = vpop.f32.mrb[0].mxu0
  %v2714 = vadd.f32 0.0, %v2713
  %v2715 = vpop.f32.mrb[0].mxu0
  %v2716 = vadd.f32 0.0, %v2715
  %v2717 = vpop.f32.mrb[0].mxu0
  %v2718 = vadd.f32 0.0, %v2717
  %2719 = vdwg.mxu0
  %2720 = vmatprep.subr.bf16.mxu0 %v2429
  %2721 = vmatpush1.bf16.msra.mxu0 %v2428
  %2722 = vmatprep.subr.bf16.mxu0 %v2435
  %2723 = vmatpush1.bf16.msra.mxu0 %v2434
  %2724 = vmatprep.subr.bf16.mxu0 %v2441
  %2725 = vmatpush1.bf16.msra.mxu0 %v2440
  %2726 = vmatprep.subr.bf16.mxu0 %v2447
  %2727 = vmatpush1.bf16.msra.mxu0 %v2446
  %2728 = vmatprep.subr.bf16.mxu0 %v2453
  %2729 = vmatpush1.bf16.msra.mxu0 %v2452
  %2730 = vmatprep.subr.bf16.mxu0 %v2459
  %2731 = vmatpush1.bf16.msra.mxu0 %v2458
  %2732 = vmatprep.subr.bf16.mxu0 %v2465
  %2733 = vmatpush1.bf16.msra.mxu0 %v2464
  %2734 = vmatprep.subr.bf16.mxu0 %v2471
  %2735 = vmatpush1.bf16.msra.mxu0 %v2470
  %2736 = vmatprep.subr.bf16.mxu0 %v2477
  %2737 = vmatpush1.bf16.msra.mxu0 %v2476
  %2738 = vmatprep.subr.bf16.mxu0 0
  %2739 = vmatpush1.bf16.msra.mxu0 0
  %2740 = vmatprep.subr.bf16.mxu0 0
  %2741 = vmatpush1.bf16.msra.mxu0 0
  %2742 = vmatprep.subr.bf16.mxu0 0
  %2743 = vmatpush1.bf16.msra.mxu0 0
  %2744 = vmatprep.subr.bf16.mxu0 0
  %2745 = vmatpush1.bf16.msra.mxu0 0
  %2746 = vmatprep.subr.bf16.mxu0 0
  %2747 = vmatpush1.bf16.msra.mxu0 0
  %2748 = vmatprep.subr.bf16.mxu0 0
  %2749 = vmatpush1.bf16.msra.mxu0 0
  %2750 = vmatprep.subr.bf16.mxu0 0
  %2751 = vmatpush1.bf16.msra.mxu0 0
  %2752 = vmatprep.mubr.bf16.mxu0 %v2503
  %2753 = vmatmul.mubr.bf16.gmra.mrb[0].mxu0 %v2496
  %v2754 = vpop.f32.mrb[0].mxu0
  %v2755 = vadd.f32 %v2712, %v2754
  %v2756 = vpop.f32.mrb[0].mxu0
  %v2757 = vadd.f32 %v2714, %v2756
  %v2758 = vpop.f32.mrb[0].mxu0
  %v2759 = vadd.f32 %v2716, %v2758
  %v2760 = vpop.f32.mrb[0].mxu0
  %v2761 = vadd.f32 %v2718, %v2760
  %2762 = vdwg.mxu0
  %s2763 = scalar_lea.vmem %s4, 32
  %v2764 = vld [vmem:[%s2763] sm:$0xff]
  %v2765 = vld [vmem:[%s2763 + $0x8] sm:$0xff]
  %v2766 = vld [vmem:[%s2763 + $0x10] sm:$0xff]
  %v2767 = vld [vmem:[%s2763 + $0x18] sm:$0xff]
  %v2772 = vunpack.c.l.b16 %v2764
  %v2773 = vunpack.c.h.b16 %v2764
  %v2774 = vunpack.c.l.b16 %v2765
  %v2775 = vunpack.c.h.b16 %v2765
  %v2776 = vunpack.c.l.b16 %v2766
  %v2777 = vunpack.c.h.b16 %v2766
  %v2778 = vunpack.c.l.b16 %v2767
  %v2779 = vunpack.c.h.b16 %v2767
  %v2780 = vpack.c.b16 %v2776, %v2772
  %v2781 = vpack.c.b16 %v2777, %v2773
  %v2782 = vpack.c.b16 %v2778, %v2774
  %v2783 = vpack.c.b16 %v2779, %v2775
  %v2788 = vsel %vm2501, %v2783, 0
  %2790 = vmatprep.subr.bf16.mxu0 %v2329
  %2791 = vmatpush1.bf16.msra.mxu0 %v2328
  %2792 = vmatprep.subr.bf16.mxu0 %v2335
  %2793 = vmatpush1.bf16.msra.mxu0 %v2334
  %2794 = vmatprep.subr.bf16.mxu0 %v2341
  %2795 = vmatpush1.bf16.msra.mxu0 %v2340
  %2796 = vmatprep.subr.bf16.mxu0 %v2347
  %2797 = vmatpush1.bf16.msra.mxu0 %v2346
  %2798 = vmatprep.subr.bf16.mxu0 %v2353
  %2799 = vmatpush1.bf16.msra.mxu0 %v2352
  %2800 = vmatprep.subr.bf16.mxu0 %v2359
  %2801 = vmatpush1.bf16.msra.mxu0 %v2358
  %2802 = vmatprep.subr.bf16.mxu0 %v2365
  %2803 = vmatpush1.bf16.msra.mxu0 %v2364
  %2804 = vmatprep.subr.bf16.mxu0 %v2371
  %2805 = vmatpush1.bf16.msra.mxu0 %v2370
  %2806 = vmatprep.subr.bf16.mxu0 %v2377
  %2807 = vmatpush1.bf16.msra.mxu0 %v2376
  %2808 = vmatprep.subr.bf16.mxu0 %v2383
  %2809 = vmatpush1.bf16.msra.mxu0 %v2382
  %2810 = vmatprep.subr.bf16.mxu0 %v2389
  %2811 = vmatpush1.bf16.msra.mxu0 %v2388
  %2812 = vmatprep.subr.bf16.mxu0 %v2395
  %2813 = vmatpush1.bf16.msra.mxu0 %v2394
  %2814 = vmatprep.subr.bf16.mxu0 %v2401
  %2815 = vmatpush1.bf16.msra.mxu0 %v2400
  %2816 = vmatprep.subr.bf16.mxu0 %v2407
  %2817 = vmatpush1.bf16.msra.mxu0 %v2406
  %2818 = vmatprep.subr.bf16.mxu0 %v2413
  %2819 = vmatpush1.bf16.msra.mxu0 %v2412
  %2820 = vmatprep.subr.bf16.mxu0 %v2419
  %2821 = vmatpush1.bf16.msra.mxu0 %v2418
  %2822 = vmatprep.mubr.bf16.mxu0 %v2781
  %2823 = vmatmul.mubr.bf16.gmra.mrb[0].mxu0 %v2780
  %v2824 = vpop.f32.mrb[0].mxu0
  %v2825 = vadd.f32 0.0, %v2824
  %v2826 = vpop.f32.mrb[0].mxu0
  %v2827 = vadd.f32 0.0, %v2826
  %v2828 = vpop.f32.mrb[0].mxu0
  %v2829 = vadd.f32 0.0, %v2828
  %v2830 = vpop.f32.mrb[0].mxu0
  %v2831 = vadd.f32 0.0, %v2830
  %2832 = vdwg.mxu0
  %2833 = vmatprep.subr.bf16.mxu0 %v2425
  %2834 = vmatpush1.bf16.msra.mxu0 %v2424
  %2835 = vmatprep.subr.bf16.mxu0 %v2431
  %2836 = vmatpush1.bf16.msra.mxu0 %v2430
  %2837 = vmatprep.subr.bf16.mxu0 %v2437
  %2838 = vmatpush1.bf16.msra.mxu0 %v2436
  %2839 = vmatprep.subr.bf16.mxu0 %v2443
  %2840 = vmatpush1.bf16.msra.mxu0 %v2442
  %2841 = vmatprep.subr.bf16.mxu0 %v2449
  %2842 = vmatpush1.bf16.msra.mxu0 %v2448
  %2843 = vmatprep.subr.bf16.mxu0 %v2455
  %2844 = vmatpush1.bf16.msra.mxu0 %v2454
  %2845 = vmatprep.subr.bf16.mxu0 %v2461
  %2846 = vmatpush1.bf16.msra.mxu0 %v2460
  %2847 = vmatprep.subr.bf16.mxu0 %v2467
  %2848 = vmatpush1.bf16.msra.mxu0 %v2466
  %2849 = vmatprep.subr.bf16.mxu0 %v2473
  %2850 = vmatpush1.bf16.msra.mxu0 %v2472
  %2851 = vmatprep.subr.bf16.mxu0 0
  %2852 = vmatpush1.bf16.msra.mxu0 0
  %2853 = vmatprep.subr.bf16.mxu0 0
  %2854 = vmatpush1.bf16.msra.mxu0 0
  %2855 = vmatprep.subr.bf16.mxu0 0
  %2856 = vmatpush1.bf16.msra.mxu0 0
  %2857 = vmatprep.subr.bf16.mxu0 0
  %2858 = vmatpush1.bf16.msra.mxu0 0
  %2859 = vmatprep.subr.bf16.mxu0 0
  %2860 = vmatpush1.bf16.msra.mxu0 0
  %2861 = vmatprep.subr.bf16.mxu0 0
  %2862 = vmatpush1.bf16.msra.mxu0 0
  %2863 = vmatprep.subr.bf16.mxu0 0
  %2864 = vmatpush1.bf16.msra.mxu0 0
  %2865 = vmatprep.mubr.bf16.mxu0 %v2788
  %2866 = vmatmul.mubr.bf16.gmra.mrb[0].mxu0 %v2782
  %v2867 = vpop.f32.mrb[0].mxu0
  %v2868 = vadd.f32 %v2825, %v2867
  %v2869 = vpop.f32.mrb[0].mxu0
  %v2870 = vadd.f32 %v2827, %v2869
  %v2871 = vpop.f32.mrb[0].mxu0
  %v2872 = vadd.f32 %v2829, %v2871
  %v2873 = vpop.f32.mrb[0].mxu0
  %v2874 = vadd.f32 %v2831, %v2873
  %2875 = vdwg.mxu0
  %2876 = vmatprep.subr.bf16.mxu0 %v2331
  %2877 = vmatpush1.bf16.msra.mxu0 %v2330
  %2878 = vmatprep.subr.bf16.mxu0 %v2337
  %2879 = vmatpush1.bf16.msra.mxu0 %v2336
  %2880 = vmatprep.subr.bf16.mxu0 %v2343
  %2881 = vmatpush1.bf16.msra.mxu0 %v2342
  %2882 = vmatprep.subr.bf16.mxu0 %v2349
  %2883 = vmatpush1.bf16.msra.mxu0 %v2348
  %2884 = vmatprep.subr.bf16.mxu0 %v2355
  %2885 = vmatpush1.bf16.msra.mxu0 %v2354
  %2886 = vmatprep.subr.bf16.mxu0 %v2361
  %2887 = vmatpush1.bf16.msra.mxu0 %v2360
  %2888 = vmatprep.subr.bf16.mxu0 %v2367
  %2889 = vmatpush1.bf16.msra.mxu0 %v2366
  %2890 = vmatprep.subr.bf16.mxu0 %v2373
  %2891 = vmatpush1.bf16.msra.mxu0 %v2372
  %2892 = vmatprep.subr.bf16.mxu0 %v2379
  %2893 = vmatpush1.bf16.msra.mxu0 %v2378
  %2894 = vmatprep.subr.bf16.mxu0 %v2385
  %2895 = vmatpush1.bf16.msra.mxu0 %v2384
  %2896 = vmatprep.subr.bf16.mxu0 %v2391
  %2897 = vmatpush1.bf16.msra.mxu0 %v2390
  %2898 = vmatprep.subr.bf16.mxu0 %v2397
  %2899 = vmatpush1.bf16.msra.mxu0 %v2396
  %2900 = vmatprep.subr.bf16.mxu0 %v2403
  %2901 = vmatpush1.bf16.msra.mxu0 %v2402
  %2902 = vmatprep.subr.bf16.mxu0 %v2409
  %2903 = vmatpush1.bf16.msra.mxu0 %v2408
  %2904 = vmatprep.subr.bf16.mxu0 %v2415
  %2905 = vmatpush1.bf16.msra.mxu0 %v2414
  %2906 = vmatprep.subr.bf16.mxu0 %v2421
  %2907 = vmatpush1.bf16.msra.mxu0 %v2420
  %2908 = vmatprep.mubr.bf16.mxu0 %v2781
  %2909 = vmatmul.mubr.bf16.gmra.mrb[0].mxu0 %v2780
  %v2910 = vpop.f32.mrb[0].mxu0
  %v2911 = vadd.f32 0.0, %v2910
  %v2912 = vpop.f32.mrb[0].mxu0
  %v2913 = vadd.f32 0.0, %v2912
  %v2914 = vpop.f32.mrb[0].mxu0
  %v2915 = vadd.f32 0.0, %v2914
  %v2916 = vpop.f32.mrb[0].mxu0
  %v2917 = vadd.f32 0.0, %v2916
  %2918 = vdwg.mxu0
  %2919 = vmatprep.subr.bf16.mxu0 %v2427
  %2920 = vmatpush1.bf16.msra.mxu0 %v2426
  %2921 = vmatprep.subr.bf16.mxu0 %v2433
  %2922 = vmatpush1.bf16.msra.mxu0 %v2432
  %2923 = vmatprep.subr.bf16.mxu0 %v2439
  %2924 = vmatpush1.bf16.msra.mxu0 %v2438
  %2925 = vmatprep.subr.bf16.mxu0 %v2445
  %2926 = vmatpush1.bf16.msra.mxu0 %v2444
  %2927 = vmatprep.subr.bf16.mxu0 %v2451
  %2928 = vmatpush1.bf16.msra.mxu0 %v2450
  %2929 = vmatprep.subr.bf16.mxu0 %v2457
  %2930 = vmatpush1.bf16.msra.mxu0 %v2456
  %2931 = vmatprep.subr.bf16.mxu0 %v2463
  %2932 = vmatpush1.bf16.msra.mxu0 %v2462
  %2933 = vmatprep.subr.bf16.mxu0 %v2469
  %2934 = vmatpush1.bf16.msra.mxu0 %v2468
  %2935 = vmatprep.subr.bf16.mxu0 %v2475
  %2936 = vmatpush1.bf16.msra.mxu0 %v2474
  %2937 = vmatprep.subr.bf16.mxu0 0
  %2938 = vmatpush1.bf16.msra.mxu0 0
  %2939 = vmatprep.subr.bf16.mxu0 0
  %2940 = vmatpush1.bf16.msra.mxu0 0
  %2941 = vmatprep.subr.bf16.mxu0 0
  %2942 = vmatpush1.bf16.msra.mxu0 0
  %2943 = vmatprep.subr.bf16.mxu0 0
  %2944 = vmatpush1.bf16.msra.mxu0 0
  %2945 = vmatprep.subr.bf16.mxu0 0
  %2946 = vmatpush1.bf16.msra.mxu0 0
  %2947 = vmatprep.subr.bf16.mxu0 0
  %2948 = vmatpush1.bf16.msra.mxu0 0
  %2949 = vmatprep.subr.bf16.mxu0 0
  %2950 = vmatpush1.bf16.msra.mxu0 0
  %2951 = vmatprep.mubr.bf16.mxu0 %v2788
  %2952 = vmatmul.mubr.bf16.gmra.mrb[0].mxu0 %v2782
  %v2953 = vpop.f32.mrb[0].mxu0
  %v2954 = vadd.f32 %v2911, %v2953
  %v2955 = vpop.f32.mrb[0].mxu0
  %v2956 = vadd.f32 %v2913, %v2955
  %v2957 = vpop.f32.mrb[0].mxu0
  %v2958 = vadd.f32 %v2915, %v2957
  %v2959 = vpop.f32.mrb[0].mxu0
  %v2960 = vadd.f32 %v2917, %v2959
  %2961 = vdwg.mxu0
  %2962 = vmatprep.subr.bf16.mxu0 %v2333
  %2963 = vmatpush1.bf16.msra.mxu0 %v2332
  %2964 = vmatprep.subr.bf16.mxu0 %v2339
  %2965 = vmatpush1.bf16.msra.mxu0 %v2338
  %2966 = vmatprep.subr.bf16.mxu0 %v2345
  %2967 = vmatpush1.bf16.msra.mxu0 %v2344
  %2968 = vmatprep.subr.bf16.mxu0 %v2351
  %2969 = vmatpush1.bf16.msra.mxu0 %v2350
  %2970 = vmatprep.subr.bf16.mxu0 %v2357
  %2971 = vmatpush1.bf16.msra.mxu0 %v2356
  %2972 = vmatprep.subr.bf16.mxu0 %v2363
  %2973 = vmatpush1.bf16.msra.mxu0 %v2362
  %2974 = vmatprep.subr.bf16.mxu0 %v2369
  %2975 = vmatpush1.bf16.msra.mxu0 %v2368
  %2976 = vmatprep.subr.bf16.mxu0 %v2375
  %2977 = vmatpush1.bf16.msra.mxu0 %v2374
  %2978 = vmatprep.subr.bf16.mxu0 %v2381
  %2979 = vmatpush1.bf16.msra.mxu0 %v2380
  %2980 = vmatprep.subr.bf16.mxu0 %v2387
  %2981 = vmatpush1.bf16.msra.mxu0 %v2386
  %2982 = vmatprep.subr.bf16.mxu0 %v2393
  %2983 = vmatpush1.bf16.msra.mxu0 %v2392
  %2984 = vmatprep.subr.bf16.mxu0 %v2399
  %2985 = vmatpush1.bf16.msra.mxu0 %v2398
  %2986 = vmatprep.subr.bf16.mxu0 %v2405
  %2987 = vmatpush1.bf16.msra.mxu0 %v2404
  %2988 = vmatprep.subr.bf16.mxu0 %v2411
  %2989 = vmatpush1.bf16.msra.mxu0 %v2410
  %2990 = vmatprep.subr.bf16.mxu0 %v2417
  %2991 = vmatpush1.bf16.msra.mxu0 %v2416
  %2992 = vmatprep.subr.bf16.mxu0 %v2423
  %2993 = vmatpush1.bf16.msra.mxu0 %v2422
  %2994 = vmatprep.mubr.bf16.mxu0 %v2781
  %2995 = vmatmul.mubr.bf16.gmra.mrb[0].mxu0 %v2780
  %v2996 = vpop.f32.mrb[0].mxu0
  %v2997 = vadd.f32 0.0, %v2996
  %v2998 = vpop.f32.mrb[0].mxu0
  %v2999 = vadd.f32 0.0, %v2998
  %v3000 = vpop.f32.mrb[0].mxu0
  %v3001 = vadd.f32 0.0, %v3000
  %v3002 = vpop.f32.mrb[0].mxu0
  %v3003 = vadd.f32 0.0, %v3002
  %3004 = vdwg.mxu0
  %3005 = vmatprep.subr.bf16.mxu0 %v2429
  %3006 = vmatpush1.bf16.msra.mxu0 %v2428
  %3007 = vmatprep.subr.bf16.mxu0 %v2435
  %3008 = vmatpush1.bf16.msra.mxu0 %v2434
  %3009 = vmatprep.subr.bf16.mxu0 %v2441
  %3010 = vmatpush1.bf16.msra.mxu0 %v2440
  %3011 = vmatprep.subr.bf16.mxu0 %v2447
  %3012 = vmatpush1.bf16.msra.mxu0 %v2446
  %3013 = vmatprep.subr.bf16.mxu0 %v2453
  %3014 = vmatpush1.bf16.msra.mxu0 %v2452
  %3015 = vmatprep.subr.bf16.mxu0 %v2459
  %3016 = vmatpush1.bf16.msra.mxu0 %v2458
  %3017 = vmatprep.subr.bf16.mxu0 %v2465
  %3018 = vmatpush1.bf16.msra.mxu0 %v2464
  %3019 = vmatprep.subr.bf16.mxu0 %v2471
  %3020 = vmatpush1.bf16.msra.mxu0 %v2470
  %3021 = vmatprep.subr.bf16.mxu0 %v2477
  %3022 = vmatpush1.bf16.msra.mxu0 %v2476
  %3023 = vmatprep.subr.bf16.mxu0 0
  %3024 = vmatpush1.bf16.msra.mxu0 0
  %3025 = vmatprep.subr.bf16.mxu0 0
  %3026 = vmatpush1.bf16.msra.mxu0 0
  %3027 = vmatprep.subr.bf16.mxu0 0
  %3028 = vmatpush1.bf16.msra.mxu0 0
  %3029 = vmatprep.subr.bf16.mxu0 0
  %3030 = vmatpush1.bf16.msra.mxu0 0
  %3031 = vmatprep.subr.bf16.mxu0 0
  %3032 = vmatpush1.bf16.msra.mxu0 0
  %3033 = vmatprep.subr.bf16.mxu0 0
  %3034 = vmatpush1.bf16.msra.mxu0 0
  %3035 = vmatprep.subr.bf16.mxu0 0
  %3036 = vmatpush1.bf16.msra.mxu0 0
  %3037 = vmatprep.mubr.bf16.mxu0 %v2788
  %3038 = vmatmul.mubr.bf16.gmra.mrb[0].mxu0 %v2782
  %v3039 = vpop.f32.mrb[0].mxu0
  %v3040 = vadd.f32 %v2997, %v3039
  %v3041 = vpop.f32.mrb[0].mxu0
  %v3042 = vadd.f32 %v2999, %v3041
  %v3043 = vpop.f32.mrb[0].mxu0
  %v3044 = vadd.f32 %v3001, %v3043
  %v3045 = vpop.f32.mrb[0].mxu0
  %v3046 = vadd.f32 %v3003, %v3045
  %3047 = vdwg.mxu0
  %v3048 = vpack.c.bf16 %v2587, %v2583
  %v3049 = vpack.c.bf16 %v2589, %v2585
  %v3050 = vpack.c.bf16 %v2673, %v2669
  %v3051 = vpack.c.bf16 %v2675, %v2671
  %v3052 = vpack.c.bf16 %v2759, %v2755
  %v3053 = vpack.c.bf16 %v2761, %v2757
  %v3054 = vld [vmem:[%s5] sm:$0xf]
  %v3055 = vld [vmem:[%s5 + $0x4] sm:$0xf]
  %v3056 = vld [vmem:[%s5 + $0x8] sm:$0xf]
  %v3057 = vld [vmem:[%s5 + $0xc] sm:$0xf]
  %v3058 = vld [vmem:[%s5 + $0x10] sm:$0xf]
  %v3059 = vld [vmem:[%s5 + $0x14] sm:$0xf]
  %v3060 = vld [vmem:[%s5 + $0x18] sm:$0xf]
  %v3061 = vld [vmem:[%s5 + $0x1c] sm:$0xf]
  %v3062 = vld [vmem:[%s5 + $0x20] sm:$0xf]
  %v3063 = vld [vmem:[%s5 + $0x24] sm:$0xf]
  %v3064 = vld [vmem:[%s5 + $0x28] sm:$0xf]
  %v3065 = vld [vmem:[%s5 + $0x2c] sm:$0xf]
  %v3066 = vld [vmem:[%s5 + $0x30] sm:$0xf]
  %v3067 = vld [vmem:[%s5 + $0x34] sm:$0xf]
  %v3068 = vld [vmem:[%s5 + $0x38] sm:$0xf]
  %v3069 = vld [vmem:[%s5 + $0x3c] sm:$0xf]
  %v3070 = vld [vmem:[%s5 + $0x40] sm:$0xf]
  %v3071 = vld [vmem:[%s5 + $0x44] sm:$0xf]
  %v3072 = vld [vmem:[%s5 + $0x48] sm:$0xf]
  %v3073 = vld [vmem:[%s5 + $0x4c] sm:$0xf]
  %v3074 = vld [vmem:[%s5 + $0x50] sm:$0xf]
  %v3075 = vld [vmem:[%s5 + $0x54] sm:$0xf]
  %v3076 = vld [vmem:[%s5 + $0x58] sm:$0xf]
  %v3077 = vld [vmem:[%s5 + $0x5c] sm:$0xf]
  %v3078 = vld [vmem:[%s5 + $0x60] sm:$0xf]
  %v3079 = vld [vmem:[%s5 + $0x64] sm:$0xf]
  %v3080 = vld [vmem:[%s5 + $0x68] sm:$0xf]
  %v3081 = vld [vmem:[%s5 + $0x6c] sm:$0xf]
  %v3082 = vld [vmem:[%s5 + $0x70] sm:$0xf]
  %v3083 = vld [vmem:[%s5 + $0x74] sm:$0xf]
  %v3084 = vld [vmem:[%s5 + $0x78] sm:$0xf]
  %v3085 = vld [vmem:[%s5 + $0x7c] sm:$0xf]
  %v3086 = vld [vmem:[%s5 + $0x80] sm:$0xf]
  %v3087 = vld [vmem:[%s5 + $0x84] sm:$0xf]
  %v3088 = vld [vmem:[%s5 + $0x88] sm:$0xf]
  %v3089 = vld [vmem:[%s5 + $0x8c] sm:$0xf]
  %v3090 = vld [vmem:[%s5 + $0x90] sm:$0xf]
  %v3091 = vld [vmem:[%s5 + $0x94] sm:$0xf]
  %v3092 = vld [vmem:[%s5 + $0x98] sm:$0xf]
  %v3093 = vld [vmem:[%s5 + $0x9c] sm:$0xf]
  %v3094 = vld [vmem:[%s5 + $0xa0] sm:$0xf]
  %v3095 = vld [vmem:[%s5 + $0xa4] sm:$0xf]
  %v3096 = vld [vmem:[%s5 + $0xa8] sm:$0xf]
  %v3097 = vld [vmem:[%s5 + $0xac] sm:$0xf]
  %v3098 = vld [vmem:[%s5 + $0xb0] sm:$0xf]
  %v3099 = vld [vmem:[%s5 + $0xb4] sm:$0xf]
  %v3100 = vld [vmem:[%s5 + $0xb8] sm:$0xf]
  %v3101 = vld [vmem:[%s5 + $0xbc] sm:$0xf]
  %v3102 = vld [vmem:[%s5 + $0xc0] sm:$0xf]
  %v3103 = vld [vmem:[%s5 + $0xc4] sm:$0xf]
  %v3104 = vld [vmem:[%s5 + $0xc8] sm:$0xf]
  %v3105 = vld [vmem:[%s5 + $0xcc] sm:$0xf]
  %v3106 = vld [vmem:[%s5 + $0xd0] sm:$0xf]
  %v3107 = vld [vmem:[%s5 + $0xd4] sm:$0xf]
  %v3108 = vld [vmem:[%s5 + $0xd8] sm:$0xf]
  %v3109 = vld [vmem:[%s5 + $0xdc] sm:$0xf]
  %v3110 = vld [vmem:[%s5 + $0xe0] sm:$0xf]
  %v3111 = vld [vmem:[%s5 + $0xe4] sm:$0xf]
  %v3112 = vld [vmem:[%s5 + $0xe8] sm:$0xf]
  %v3113 = vld [vmem:[%s5 + $0xec] sm:$0xf]
  %v3114 = vld [vmem:[%s5 + $0xf0] sm:$0xf]
  %v3115 = vld [vmem:[%s5 + $0xf4] sm:$0xf]
  %v3116 = vld [vmem:[%s5 + $0xf8] sm:$0xf]
  %v3117 = vld [vmem:[%s5 + $0xfc] sm:$0xf]
  %v3118 = vld [vmem:[%s5 + $0x100] sm:$0xf]
  %v3119 = vld [vmem:[%s5 + $0x104] sm:$0xf]
  %v3120 = vld [vmem:[%s5 + $0x108] sm:$0xf]
  %v3121 = vld [vmem:[%s5 + $0x10c] sm:$0xf]
  %v3122 = vld [vmem:[%s5 + $0x110] sm:$0xf]
  %v3123 = vld [vmem:[%s5 + $0x114] sm:$0xf]
  %v3124 = vld [vmem:[%s5 + $0x118] sm:$0xf]
  %v3125 = vld [vmem:[%s5 + $0x11c] sm:$0xf]
  %v3126 = vld [vmem:[%s5 + $0x120] sm:$0xf]
  %v3127 = vld [vmem:[%s5 + $0x124] sm:$0xf]
  %v3128 = vld [vmem:[%s5 + $0x128] sm:$0xf]
  %v3129 = vld [vmem:[%s5 + $0x12c] sm:$0xf]
  %v3130 = vld [vmem:[%s5 + $0x130] sm:$0xf]
  %v3131 = vld [vmem:[%s5 + $0x134] sm:$0xf]
  %v3132 = vld [vmem:[%s5 + $0x138] sm:$0xf]
  %v3133 = vld [vmem:[%s5 + $0x13c] sm:$0xf]
  %v3134 = vld [vmem:[%s5 + $0x140] sm:$0xf]
  %v3135 = vld [vmem:[%s5 + $0x144] sm:$0xf]
  %v3136 = vld [vmem:[%s5 + $0x148] sm:$0xf]
  %v3137 = vld [vmem:[%s5 + $0x14c] sm:$0xf]
  %v3138 = vld [vmem:[%s5 + $0x150] sm:$0xf]
  %v3139 = vld [vmem:[%s5 + $0x154] sm:$0xf]
  %v3140 = vld [vmem:[%s5 + $0x158] sm:$0xf]
  %v3141 = vld [vmem:[%s5 + $0x15c] sm:$0xf]
  %v3142 = vld [vmem:[%s5 + $0x160] sm:$0xf]
  %v3143 = vld [vmem:[%s5 + $0x164] sm:$0xf]
  %v3144 = vld [vmem:[%s5 + $0x168] sm:$0xf]
  %v3145 = vld [vmem:[%s5 + $0x16c] sm:$0xf]
  %v3146 = vld [vmem:[%s5 + $0x170] sm:$0xf]
  %v3147 = vld [vmem:[%s5 + $0x174] sm:$0xf]
  %v3148 = vld [vmem:[%s5 + $0x178] sm:$0xf]
  %v3149 = vld [vmem:[%s5 + $0x17c] sm:$0xf]
  %v3150 = vpack.c.bf16 %v2872, %v2868
  %v3151 = vpack.c.bf16 %v2874, %v2870
  %v3152 = vpack.c.bf16 %v2958, %v2954
  %v3153 = vpack.c.bf16 %v2960, %v2956
  %v3154 = vpack.c.bf16 %v3044, %v3040
  %v3155 = vpack.c.bf16 %v3046, %v3042
  %s3156 = scalar_lea.vmem %s5, 384
  %v3157 = vld [vmem:[%s3156] sm:$0xf]
  %v3158 = vld [vmem:[%s3156 + $0x4] sm:$0xf]
  %v3159 = vld [vmem:[%s3156 + $0x8] sm:$0xf]
  %v3160 = vld [vmem:[%s3156 + $0xc] sm:$0xf]
  %v3161 = vld [vmem:[%s3156 + $0x10] sm:$0xf]
  %v3162 = vld [vmem:[%s3156 + $0x14] sm:$0xf]
  %v3163 = vld [vmem:[%s3156 + $0x18] sm:$0xf]
  %v3164 = vld [vmem:[%s3156 + $0x1c] sm:$0xf]
  %v3165 = vld [vmem:[%s3156 + $0x20] sm:$0xf]
  %v3166 = vld [vmem:[%s3156 + $0x24] sm:$0xf]
  %v3167 = vld [vmem:[%s3156 + $0x28] sm:$0xf]
  %v3168 = vld [vmem:[%s3156 + $0x2c] sm:$0xf]
  %v3169 = vld [vmem:[%s3156 + $0x30] sm:$0xf]
  %v3170 = vld [vmem:[%s3156 + $0x34] sm:$0xf]
  %v3171 = vld [vmem:[%s3156 + $0x38] sm:$0xf]
  %v3172 = vld [vmem:[%s3156 + $0x3c] sm:$0xf]
  %v3173 = vld [vmem:[%s3156 + $0x40] sm:$0xf]
  %v3174 = vld [vmem:[%s3156 + $0x44] sm:$0xf]
  %v3175 = vld [vmem:[%s3156 + $0x48] sm:$0xf]
  %v3176 = vld [vmem:[%s3156 + $0x4c] sm:$0xf]
  %v3177 = vld [vmem:[%s3156 + $0x50] sm:$0xf]
  %v3178 = vld [vmem:[%s3156 + $0x54] sm:$0xf]
  %v3179 = vld [vmem:[%s3156 + $0x58] sm:$0xf]
  %v3180 = vld [vmem:[%s3156 + $0x5c] sm:$0xf]
  %v3181 = vld [vmem:[%s3156 + $0x60] sm:$0xf]
  %v3182 = vld [vmem:[%s3156 + $0x64] sm:$0xf]
  %v3183 = vld [vmem:[%s3156 + $0x68] sm:$0xf]
  %v3184 = vld [vmem:[%s3156 + $0x6c] sm:$0xf]
  %v3185 = vld [vmem:[%s3156 + $0x70] sm:$0xf]
  %v3186 = vld [vmem:[%s3156 + $0x74] sm:$0xf]
  %v3187 = vld [vmem:[%s3156 + $0x78] sm:$0xf]
  %v3188 = vld [vmem:[%s3156 + $0x7c] sm:$0xf]
  %v3189 = vld [vmem:[%s3156 + $0x80] sm:$0xf]
  %v3190 = vld [vmem:[%s3156 + $0x84] sm:$0xf]
  %v3191 = vld [vmem:[%s3156 + $0x88] sm:$0xf]
  %v3192 = vld [vmem:[%s3156 + $0x8c] sm:$0xf]
  %v3193 = vld [vmem:[%s3156 + $0x90] sm:$0xf]
  %v3194 = vld [vmem:[%s3156 + $0x94] sm:$0xf]
  %v3195 = vld [vmem:[%s3156 + $0x98] sm:$0xf]
  %v3196 = vld [vmem:[%s3156 + $0x9c] sm:$0xf]
  %v3197 = vld [vmem:[%s3156 + $0xa0] sm:$0xf]
  %v3198 = vld [vmem:[%s3156 + $0xa4] sm:$0xf]
  %v3199 = vld [vmem:[%s3156 + $0xa8] sm:$0xf]
  %v3200 = vld [vmem:[%s3156 + $0xac] sm:$0xf]
  %v3201 = vld [vmem:[%s3156 + $0xb0] sm:$0xf]
  %v3202 = vld [vmem:[%s3156 + $0xb4] sm:$0xf]
  %v3203 = vld [vmem:[%s3156 + $0xb8] sm:$0xf]
  %v3204 = vld [vmem:[%s3156 + $0xbc] sm:$0xf]
  %v3205 = vld [vmem:[%s3156 + $0xc0] sm:$0xf]
  %v3206 = vld [vmem:[%s3156 + $0xc4] sm:$0xf]
  %v3207 = vld [vmem:[%s3156 + $0xc8] sm:$0xf]
  %v3208 = vld [vmem:[%s3156 + $0xcc] sm:$0xf]
  %v3209 = vld [vmem:[%s3156 + $0xd0] sm:$0xf]
  %v3210 = vld [vmem:[%s3156 + $0xd4] sm:$0xf]
  %v3211 = vld [vmem:[%s3156 + $0xd8] sm:$0xf]
  %v3212 = vld [vmem:[%s3156 + $0xdc] sm:$0xf]
  %v3213 = vld [vmem:[%s3156 + $0xe0] sm:$0xf]
  %v3214 = vld [vmem:[%s3156 + $0xe4] sm:$0xf]
  %v3215 = vld [vmem:[%s3156 + $0xe8] sm:$0xf]
  %v3216 = vld [vmem:[%s3156 + $0xec] sm:$0xf]
  %v3217 = vld [vmem:[%s3156 + $0xf0] sm:$0xf]
  %v3218 = vld [vmem:[%s3156 + $0xf4] sm:$0xf]
  %v3219 = vld [vmem:[%s3156 + $0xf8] sm:$0xf]
  %v3220 = vld [vmem:[%s3156 + $0xfc] sm:$0xf]
  %v3221 = vld [vmem:[%s3156 + $0x100] sm:$0xf]
  %v3222 = vld [vmem:[%s3156 + $0x104] sm:$0xf]
  %v3223 = vld [vmem:[%s3156 + $0x108] sm:$0xf]
  %v3224 = vld [vmem:[%s3156 + $0x10c] sm:$0xf]
  %v3225 = vld [vmem:[%s3156 + $0x110] sm:$0xf]
  %v3226 = vld [vmem:[%s3156 + $0x114] sm:$0xf]
  %v3227 = vld [vmem:[%s3156 + $0x118] sm:$0xf]
  %v3228 = vld [vmem:[%s3156 + $0x11c] sm:$0xf]
  %v3229 = vld [vmem:[%s3156 + $0x120] sm:$0xf]
  %v3230 = vld [vmem:[%s3156 + $0x124] sm:$0xf]
  %v3231 = vld [vmem:[%s3156 + $0x128] sm:$0xf]
  %v3232 = vld [vmem:[%s3156 + $0x12c] sm:$0xf]
  %v3233 = vld [vmem:[%s3156 + $0x130] sm:$0xf]
  %v3234 = vld [vmem:[%s3156 + $0x134] sm:$0xf]
  %v3235 = vld [vmem:[%s3156 + $0x138] sm:$0xf]
  %v3236 = vld [vmem:[%s3156 + $0x13c] sm:$0xf]
  %v3237 = vld [vmem:[%s3156 + $0x140] sm:$0xf]
  %v3238 = vld [vmem:[%s3156 + $0x144] sm:$0xf]
  %v3239 = vld [vmem:[%s3156 + $0x148] sm:$0xf]
  %v3240 = vld [vmem:[%s3156 + $0x14c] sm:$0xf]
  %v3241 = vld [vmem:[%s3156 + $0x150] sm:$0xf]
  %v3242 = vld [vmem:[%s3156 + $0x154] sm:$0xf]
  %v3243 = vld [vmem:[%s3156 + $0x158] sm:$0xf]
  %v3244 = vld [vmem:[%s3156 + $0x15c] sm:$0xf]
  %v3245 = vld [vmem:[%s3156 + $0x160] sm:$0xf]
  %v3246 = vld [vmem:[%s3156 + $0x164] sm:$0xf]
  %v3247 = vld [vmem:[%s3156 + $0x168] sm:$0xf]
  %v3248 = vld [vmem:[%s3156 + $0x16c] sm:$0xf]
  %v3249 = vld [vmem:[%s3156 + $0x170] sm:$0xf]
  %v3250 = vld [vmem:[%s3156 + $0x174] sm:$0xf]
  %v3251 = vld [vmem:[%s3156 + $0x178] sm:$0xf]
  %v3252 = vld [vmem:[%s3156 + $0x17c] sm:$0xf]
  %v3349 = vunpack.c.l.b16 %v3157
  %v3350 = vunpack.c.l.b16 %v3158
  %v3351 = vunpack.c.l.b16 %v3159
  %v3352 = vunpack.c.l.b16 %v3160
  %v3353 = vunpack.c.l.b16 %v3161
  %v3354 = vunpack.c.l.b16 %v3162
  %v3355 = vunpack.c.l.b16 %v3163
  %v3356 = vunpack.c.l.b16 %v3164
  %v3357 = vunpack.c.l.b16 %v3165
  %v3358 = vunpack.c.l.b16 %v3166
  %v3359 = vunpack.c.l.b16 %v3167
  %v3360 = vunpack.c.l.b16 %v3168
  %v3361 = vunpack.c.l.b16 %v3169
  %v3362 = vunpack.c.l.b16 %v3170
  %v3363 = vunpack.c.l.b16 %v3171
  %v3364 = vunpack.c.l.b16 %v3172
  %v3365 = vunpack.c.l.b16 %v3173
  %v3366 = vunpack.c.l.b16 %v3174
  %v3367 = vunpack.c.l.b16 %v3175
  %v3368 = vunpack.c.l.b16 %v3176
  %v3369 = vunpack.c.l.b16 %v3177
  %v3370 = vunpack.c.l.b16 %v3178
  %v3371 = vunpack.c.l.b16 %v3179
  %v3372 = vunpack.c.l.b16 %v3180
  %v3373 = vunpack.c.l.b16 %v3181
  %v3374 = vunpack.c.l.b16 %v3182
  %v3375 = vunpack.c.l.b16 %v3183
  %v3376 = vunpack.c.l.b16 %v3184
  %v3377 = vunpack.c.l.b16 %v3185
  %v3378 = vunpack.c.l.b16 %v3186
  %v3379 = vunpack.c.l.b16 %v3187
  %v3380 = vunpack.c.l.b16 %v3188
  %v3381 = vunpack.c.l.b16 %v3189
  %v3382 = vunpack.c.l.b16 %v3190
  %v3383 = vunpack.c.l.b16 %v3191
  %v3384 = vunpack.c.l.b16 %v3192
  %v3385 = vunpack.c.l.b16 %v3193
  %v3386 = vunpack.c.l.b16 %v3194
  %v3387 = vunpack.c.l.b16 %v3195
  %v3388 = vunpack.c.l.b16 %v3196
  %v3389 = vunpack.c.l.b16 %v3197
  %v3390 = vunpack.c.l.b16 %v3198
  %v3391 = vunpack.c.l.b16 %v3199
  %v3392 = vunpack.c.l.b16 %v3200
  %v3393 = vunpack.c.l.b16 %v3201
  %v3394 = vunpack.c.l.b16 %v3202
  %v3395 = vunpack.c.l.b16 %v3203
  %v3396 = vunpack.c.l.b16 %v3204
  %v3397 = vunpack.c.l.b16 %v3205
  %v3398 = vunpack.c.l.b16 %v3206
  %v3399 = vunpack.c.l.b16 %v3207
  %v3400 = vunpack.c.l.b16 %v3208
  %v3401 = vunpack.c.l.b16 %v3209
  %v3402 = vunpack.c.l.b16 %v3210
  %v3403 = vunpack.c.l.b16 %v3211
  %v3404 = vunpack.c.l.b16 %v3212
  %v3405 = vunpack.c.l.b16 %v3213
  %v3406 = vunpack.c.l.b16 %v3214
  %v3407 = vunpack.c.l.b16 %v3215
  %v3408 = vunpack.c.l.b16 %v3216
  %v3409 = vunpack.c.l.b16 %v3217
  %v3410 = vunpack.c.l.b16 %v3218
  %v3411 = vunpack.c.l.b16 %v3219
  %v3412 = vunpack.c.l.b16 %v3220
  %v3413 = vunpack.c.l.b16 %v3221
  %v3414 = vunpack.c.l.b16 %v3222
  %v3415 = vunpack.c.l.b16 %v3223
  %v3416 = vunpack.c.l.b16 %v3224
  %v3417 = vunpack.c.l.b16 %v3225
  %v3418 = vunpack.c.l.b16 %v3226
  %v3419 = vunpack.c.l.b16 %v3227
  %v3420 = vunpack.c.l.b16 %v3228
  %v3421 = vunpack.c.l.b16 %v3229
  %v3422 = vunpack.c.l.b16 %v3230
  %v3423 = vunpack.c.l.b16 %v3231
  %v3424 = vunpack.c.l.b16 %v3232
  %v3425 = vunpack.c.l.b16 %v3233
  %v3426 = vunpack.c.l.b16 %v3234
  %v3427 = vunpack.c.l.b16 %v3235
  %v3428 = vunpack.c.l.b16 %v3236
  %v3429 = vunpack.c.l.b16 %v3237
  %v3430 = vunpack.c.l.b16 %v3238
  %v3431 = vunpack.c.l.b16 %v3239
  %v3432 = vunpack.c.l.b16 %v3240
  %v3433 = vunpack.c.l.b16 %v3241
  %v3434 = vunpack.c.l.b16 %v3242
  %v3435 = vunpack.c.l.b16 %v3243
  %v3436 = vunpack.c.l.b16 %v3244
  %v3437 = vunpack.c.l.b16 %v3245
  %v3438 = vunpack.c.l.b16 %v3246
  %v3439 = vunpack.c.l.b16 %v3247
  %v3440 = vunpack.c.l.b16 %v3248
  %v3441 = vunpack.c.l.b16 %v3249
  %v3442 = vunpack.c.l.b16 %v3250
  %v3443 = vunpack.c.l.b16 %v3251
  %v3444 = vunpack.c.l.b16 %v3252
  %v3445 = vpack.c.b16 %v3350, %v3349
  %v3446 = vpack.c.b16 %v3352, %v3351
  %v3447 = vpack.c.b16 %v3354, %v3353
  %v3448 = vpack.c.b16 %v3356, %v3355
  %v3449 = vpack.c.b16 %v3358, %v3357
  %v3450 = vpack.c.b16 %v3360, %v3359
  %v3451 = vpack.c.b16 %v3362, %v3361
  %v3452 = vpack.c.b16 %v3364, %v3363
  %v3453 = vpack.c.b16 %v3366, %v3365
  %v3454 = vpack.c.b16 %v3368, %v3367
  %v3455 = vpack.c.b16 %v3370, %v3369
  %v3456 = vpack.c.b16 %v3372, %v3371
  %v3457 = vpack.c.b16 %v3374, %v3373
  %v3458 = vpack.c.b16 %v3376, %v3375
  %v3459 = vpack.c.b16 %v3378, %v3377
  %v3460 = vpack.c.b16 %v3380, %v3379
  %v3461 = vpack.c.b16 %v3382, %v3381
  %v3462 = vpack.c.b16 %v3384, %v3383
  %v3463 = vpack.c.b16 %v3386, %v3385
  %v3464 = vpack.c.b16 %v3388, %v3387
  %v3465 = vpack.c.b16 %v3390, %v3389
  %v3466 = vpack.c.b16 %v3392, %v3391
  %v3467 = vpack.c.b16 %v3394, %v3393
  %v3468 = vpack.c.b16 %v3396, %v3395
  %v3469 = vpack.c.b16 %v3398, %v3397
  %v3470 = vpack.c.b16 %v3400, %v3399
  %v3471 = vpack.c.b16 %v3402, %v3401
  %v3472 = vpack.c.b16 %v3404, %v3403
  %v3473 = vpack.c.b16 %v3406, %v3405
  %v3474 = vpack.c.b16 %v3408, %v3407
  %v3475 = vpack.c.b16 %v3410, %v3409
  %v3476 = vpack.c.b16 %v3412, %v3411
  %v3477 = vpack.c.b16 %v3414, %v3413
  %v3478 = vpack.c.b16 %v3416, %v3415
  %v3479 = vpack.c.b16 %v3418, %v3417
  %v3480 = vpack.c.b16 %v3420, %v3419
  %v3481 = vpack.c.b16 %v3422, %v3421
  %v3482 = vpack.c.b16 %v3424, %v3423
  %v3483 = vpack.c.b16 %v3426, %v3425
  %v3484 = vpack.c.b16 %v3428, %v3427
  %v3485 = vpack.c.b16 %v3430, %v3429
  %v3486 = vpack.c.b16 %v3432, %v3431
  %v3487 = vpack.c.b16 %v3434, %v3433
  %v3488 = vpack.c.b16 %v3436, %v3435
  %v3489 = vpack.c.b16 %v3438, %v3437
  %v3490 = vpack.c.b16 %v3440, %v3439
  %v3491 = vpack.c.b16 %v3442, %v3441
  %v3492 = vpack.c.b16 %v3444, %v3443
  %3541 = vmatprep.subr.bf16.mxu0 0
  %3542 = vmatpush1.bf16.msra.mxu0 %v3445
  %3543 = vmatprep.subr.bf16.mxu0 0
  %3544 = vmatpush1.bf16.msra.mxu0 %v3446
  %3545 = vmatprep.subr.bf16.mxu0 0
  %3546 = vmatpush1.bf16.msra.mxu0 %v3447
  %3547 = vmatprep.subr.bf16.mxu0 0
  %3548 = vmatpush1.bf16.msra.mxu0 %v3448
  %3549 = vmatprep.subr.bf16.mxu0 0
  %3550 = vmatpush1.bf16.msra.mxu0 %v3449
  %3551 = vmatprep.subr.bf16.mxu0 0
  %3552 = vmatpush1.bf16.msra.mxu0 %v3450
  %3553 = vmatprep.subr.bf16.mxu0 0
  %3554 = vmatpush1.bf16.msra.mxu0 %v3451
  %3555 = vmatprep.subr.bf16.mxu0 0
  %3556 = vmatpush1.bf16.msra.mxu0 %v3452
  %3557 = vmatprep.subr.bf16.mxu0 0
  %3558 = vmatpush1.bf16.msra.mxu0 %v3453
  %3559 = vmatprep.subr.bf16.mxu0 0
  %3560 = vmatpush1.bf16.msra.mxu0 %v3454
  %3561 = vmatprep.subr.bf16.mxu0 0
  %3562 = vmatpush1.bf16.msra.mxu0 %v3455
  %3563 = vmatprep.subr.bf16.mxu0 0
  %3564 = vmatpush1.bf16.msra.mxu0 %v3456
  %3565 = vmatprep.subr.bf16.mxu0 0
  %3566 = vmatpush1.bf16.msra.mxu0 %v3457
  %3567 = vmatprep.subr.bf16.mxu0 0
  %3568 = vmatpush1.bf16.msra.mxu0 %v3458
  %3569 = vmatprep.subr.bf16.mxu0 0
  %3570 = vmatpush1.bf16.msra.mxu0 %v3459
  %3571 = vmatprep.subr.bf16.mxu0 0
  %3572 = vmatpush1.bf16.msra.mxu0 %v3460
  %3573 = vmatprep.mubr.bf16.mxu0 %v3151
  %3574 = vmatmul.mubr.bf16.gmra.mrb[0].mxu0 %v3150
  %v3575 = vpop.f32.mrb[0].mxu0
  %v3576 = vadd.f32 0.0, %v3575
  %v3577 = vpop.f32.mrb[0].mxu0
  %v3578 = vpop.f32.mrb[0].mxu0
  %v3579 = vadd.f32 0.0, %v3578
  %v3580 = vpop.f32.mrb[0].mxu0
  %3581 = vdwg.mxu0
  %3582 = vmatprep.subr.bf16.mxu0 0
  %3583 = vmatpush1.bf16.msra.mxu0 %v3461
  %3584 = vmatprep.subr.bf16.mxu0 0
  %3585 = vmatpush1.bf16.msra.mxu0 %v3462
  %3586 = vmatprep.subr.bf16.mxu0 0
  %3587 = vmatpush1.bf16.msra.mxu0 %v3463
  %3588 = vmatprep.subr.bf16.mxu0 0
  %3589 = vmatpush1.bf16.msra.mxu0 %v3464
  %3590 = vmatprep.subr.bf16.mxu0 0
  %3591 = vmatpush1.bf16.msra.mxu0 %v3465
  %3592 = vmatprep.subr.bf16.mxu0 0
  %3593 = vmatpush1.bf16.msra.mxu0 %v3466
  %3594 = vmatprep.subr.bf16.mxu0 0
  %3595 = vmatpush1.bf16.msra.mxu0 %v3467
  %3596 = vmatprep.subr.bf16.mxu0 0
  %3597 = vmatpush1.bf16.msra.mxu0 %v3468
  %3598 = vmatprep.subr.bf16.mxu0 0
  %3599 = vmatpush1.bf16.msra.mxu0 %v3469
  %3600 = vmatprep.subr.bf16.mxu0 0
  %3601 = vmatpush1.bf16.msra.mxu0 %v3470
  %3602 = vmatprep.subr.bf16.mxu0 0
  %3603 = vmatpush1.bf16.msra.mxu0 %v3471
  %3604 = vmatprep.subr.bf16.mxu0 0
  %3605 = vmatpush1.bf16.msra.mxu0 %v3472
  %3606 = vmatprep.subr.bf16.mxu0 0
  %3607 = vmatpush1.bf16.msra.mxu0 %v3473
  %3608 = vmatprep.subr.bf16.mxu0 0
  %3609 = vmatpush1.bf16.msra.mxu0 %v3474
  %3610 = vmatprep.subr.bf16.mxu0 0
  %3611 = vmatpush1.bf16.msra.mxu0 %v3475
  %3612 = vmatprep.subr.bf16.mxu0 0
  %3613 = vmatpush1.bf16.msra.mxu0 %v3476
  %3614 = vmatprep.mubr.bf16.mxu0 %v3153
  %3615 = vmatmul.mubr.bf16.gmra.mrb[0].mxu0 %v3152
  %v3616 = vpop.f32.mrb[0].mxu0
  %v3617 = vadd.f32 %v3576, %v3616
  %v3618 = vpop.f32.mrb[0].mxu0
  %v3619 = vpop.f32.mrb[0].mxu0
  %v3620 = vadd.f32 %v3579, %v3619
  %v3621 = vpop.f32.mrb[0].mxu0
  %3622 = vdwg.mxu0
  %3623 = vmatprep.subr.bf16.mxu0 0
  %3624 = vmatpush1.bf16.msra.mxu0 %v3477
  %3625 = vmatprep.subr.bf16.mxu0 0
  %3626 = vmatpush1.bf16.msra.mxu0 %v3478
  %3627 = vmatprep.subr.bf16.mxu0 0
  %3628 = vmatpush1.bf16.msra.mxu0 %v3479
  %3629 = vmatprep.subr.bf16.mxu0 0
  %3630 = vmatpush1.bf16.msra.mxu0 %v3480
  %3631 = vmatprep.subr.bf16.mxu0 0
  %3632 = vmatpush1.bf16.msra.mxu0 %v3481
  %3633 = vmatprep.subr.bf16.mxu0 0
  %3634 = vmatpush1.bf16.msra.mxu0 %v3482
  %3635 = vmatprep.subr.bf16.mxu0 0
  %3636 = vmatpush1.bf16.msra.mxu0 %v3483
  %3637 = vmatprep.subr.bf16.mxu0 0
  %3638 = vmatpush1.bf16.msra.mxu0 %v3484
  %3639 = vmatprep.subr.bf16.mxu0 0
  %3640 = vmatpush1.bf16.msra.mxu0 %v3485
  %3641 = vmatprep.subr.bf16.mxu0 0
  %3642 = vmatpush1.bf16.msra.mxu0 %v3486
  %3643 = vmatprep.subr.bf16.mxu0 0
  %3644 = vmatpush1.bf16.msra.mxu0 %v3487
  %3645 = vmatprep.subr.bf16.mxu0 0
  %3646 = vmatpush1.bf16.msra.mxu0 %v3488
  %3647 = vmatprep.subr.bf16.mxu0 0
  %3648 = vmatpush1.bf16.msra.mxu0 %v3489
  %3649 = vmatprep.subr.bf16.mxu0 0
  %3650 = vmatpush1.bf16.msra.mxu0 %v3490
  %3651 = vmatprep.subr.bf16.mxu0 0
  %3652 = vmatpush1.bf16.msra.mxu0 %v3491
  %3653 = vmatprep.subr.bf16.mxu0 0
  %3654 = vmatpush1.bf16.msra.mxu0 %v3492
  %3655 = vmatprep.mubr.bf16.mxu0 %v3155
  %3656 = vmatmul.mubr.bf16.gmra.mrb[0].mxu0 %v3154
  %v3657 = vpop.f32.mrb[0].mxu0
  %v3658 = vadd.f32 %v3617, %v3657
  %v3659 = vpop.f32.mrb[0].mxu0
  %v3660 = vpop.f32.mrb[0].mxu0
  %v3661 = vadd.f32 %v3620, %v3660
  %v3662 = vpop.f32.mrb[0].mxu0
  %3663 = vdwg.mxu0
  %v3760 = vunpack.c.l.b16 %v3054
  %v3761 = vunpack.c.l.b16 %v3055
  %v3762 = vunpack.c.l.b16 %v3056
  %v3763 = vunpack.c.l.b16 %v3057
  %v3764 = vunpack.c.l.b16 %v3058
  %v3765 = vunpack.c.l.b16 %v3059
  %v3766 = vunpack.c.l.b16 %v3060
  %v3767 = vunpack.c.l.b16 %v3061
  %v3768 = vunpack.c.l.b16 %v3062
  %v3769 = vunpack.c.l.b16 %v3063
  %v3770 = vunpack.c.l.b16 %v3064
  %v3771 = vunpack.c.l.b16 %v3065
  %v3772 = vunpack.c.l.b16 %v3066
  %v3773 = vunpack.c.l.b16 %v3067
  %v3774 = vunpack.c.l.b16 %v3068
  %v3775 = vunpack.c.l.b16 %v3069
  %v3776 = vunpack.c.l.b16 %v3070
  %v3777 = vunpack.c.l.b16 %v3071
  %v3778 = vunpack.c.l.b16 %v3072
  %v3779 = vunpack.c.l.b16 %v3073
  %v3780 = vunpack.c.l.b16 %v3074
  %v3781 = vunpack.c.l.b16 %v3075
  %v3782 = vunpack.c.l.b16 %v3076
  %v3783 = vunpack.c.l.b16 %v3077
  %v3784 = vunpack.c.l.b16 %v3078
  %v3785 = vunpack.c.l.b16 %v3079
  %v3786 = vunpack.c.l.b16 %v3080
  %v3787 = vunpack.c.l.b16 %v3081
  %v3788 = vunpack.c.l.b16 %v3082
  %v3789 = vunpack.c.l.b16 %v3083
  %v3790 = vunpack.c.l.b16 %v3084
  %v3791 = vunpack.c.l.b16 %v3085
  %v3792 = vunpack.c.l.b16 %v3086
  %v3793 = vunpack.c.l.b16 %v3087
  %v3794 = vunpack.c.l.b16 %v3088
  %v3795 = vunpack.c.l.b16 %v3089
  %v3796 = vunpack.c.l.b16 %v3090
  %v3797 = vunpack.c.l.b16 %v3091
  %v3798 = vunpack.c.l.b16 %v3092
  %v3799 = vunpack.c.l.b16 %v3093
  %v3800 = vunpack.c.l.b16 %v3094
  %v3801 = vunpack.c.l.b16 %v3095
  %v3802 = vunpack.c.l.b16 %v3096
  %v3803 = vunpack.c.l.b16 %v3097
  %v3804 = vunpack.c.l.b16 %v3098
  %v3805 = vunpack.c.l.b16 %v3099
  %v3806 = vunpack.c.l.b16 %v3100
  %v3807 = vunpack.c.l.b16 %v3101
  %v3808 = vunpack.c.l.b16 %v3102
  %v3809 = vunpack.c.l.b16 %v3103
  %v3810 = vunpack.c.l.b16 %v3104
  %v3811 = vunpack.c.l.b16 %v3105
  %v3812 = vunpack.c.l.b16 %v3106
  %v3813 = vunpack.c.l.b16 %v3107
  %v3814 = vunpack.c.l.b16 %v3108
  %v3815 = vunpack.c.l.b16 %v3109
  %v3816 = vunpack.c.l.b16 %v3110
  %v3817 = vunpack.c.l.b16 %v3111
  %v3818 = vunpack.c.l.b16 %v3112
  %v3819 = vunpack.c.l.b16 %v3113
  %v3820 = vunpack.c.l.b16 %v3114
  %v3821 = vunpack.c.l.b16 %v3115
  %v3822 = vunpack.c.l.b16 %v3116
  %v3823 = vunpack.c.l.b16 %v3117
  %v3824 = vunpack.c.l.b16 %v3118
  %v3825 = vunpack.c.l.b16 %v3119
  %v3826 = vunpack.c.l.b16 %v3120
  %v3827 = vunpack.c.l.b16 %v3121
  %v3828 = vunpack.c.l.b16 %v3122
  %v3829 = vunpack.c.l.b16 %v3123
  %v3830 = vunpack.c.l.b16 %v3124
  %v3831 = vunpack.c.l.b16 %v3125
  %v3832 = vunpack.c.l.b16 %v3126
  %v3833 = vunpack.c.l.b16 %v3127
  %v3834 = vunpack.c.l.b16 %v3128
  %v3835 = vunpack.c.l.b16 %v3129
  %v3836 = vunpack.c.l.b16 %v3130
  %v3837 = vunpack.c.l.b16 %v3131
  %v3838 = vunpack.c.l.b16 %v3132
  %v3839 = vunpack.c.l.b16 %v3133
  %v3840 = vunpack.c.l.b16 %v3134
  %v3841 = vunpack.c.l.b16 %v3135
  %v3842 = vunpack.c.l.b16 %v3136
  %v3843 = vunpack.c.l.b16 %v3137
  %v3844 = vunpack.c.l.b16 %v3138
  %v3845 = vunpack.c.l.b16 %v3139
  %v3846 = vunpack.c.l.b16 %v3140
  %v3847 = vunpack.c.l.b16 %v3141
  %v3848 = vunpack.c.l.b16 %v3142
  %v3849 = vunpack.c.l.b16 %v3143
  %v3850 = vunpack.c.l.b16 %v3144
  %v3851 = vunpack.c.l.b16 %v3145
  %v3852 = vunpack.c.l.b16 %v3146
  %v3853 = vunpack.c.l.b16 %v3147
  %v3854 = vunpack.c.l.b16 %v3148
  %v3855 = vunpack.c.l.b16 %v3149
  %v3856 = vpack.c.b16 %v3761, %v3760
  %v3857 = vpack.c.b16 %v3763, %v3762
  %v3858 = vpack.c.b16 %v3765, %v3764
  %v3859 = vpack.c.b16 %v3767, %v3766
  %v3860 = vpack.c.b16 %v3769, %v3768
  %v3861 = vpack.c.b16 %v3771, %v3770
  %v3862 = vpack.c.b16 %v3773, %v3772
  %v3863 = vpack.c.b16 %v3775, %v3774
  %v3864 = vpack.c.b16 %v3777, %v3776
  %v3865 = vpack.c.b16 %v3779, %v3778
  %v3866 = vpack.c.b16 %v3781, %v3780
  %v3867 = vpack.c.b16 %v3783, %v3782
  %v3868 = vpack.c.b16 %v3785, %v3784
  %v3869 = vpack.c.b16 %v3787, %v3786
  %v3870 = vpack.c.b16 %v3789, %v3788
  %v3871 = vpack.c.b16 %v3791, %v3790
  %v3872 = vpack.c.b16 %v3793, %v3792
  %v3873 = vpack.c.b16 %v3795, %v3794
  %v3874 = vpack.c.b16 %v3797, %v3796
  %v3875 = vpack.c.b16 %v3799, %v3798
  %v3876 = vpack.c.b16 %v3801, %v3800
  %v3877 = vpack.c.b16 %v3803, %v3802
  %v3878 = vpack.c.b16 %v3805, %v3804
  %v3879 = vpack.c.b16 %v3807, %v3806
  %v3880 = vpack.c.b16 %v3809, %v3808
  %v3881 = vpack.c.b16 %v3811, %v3810
  %v3882 = vpack.c.b16 %v3813, %v3812
  %v3883 = vpack.c.b16 %v3815, %v3814
  %v3884 = vpack.c.b16 %v3817, %v3816
  %v3885 = vpack.c.b16 %v3819, %v3818
  %v3886 = vpack.c.b16 %v3821, %v3820
  %v3887 = vpack.c.b16 %v3823, %v3822
  %v3888 = vpack.c.b16 %v3825, %v3824
  %v3889 = vpack.c.b16 %v3827, %v3826
  %v3890 = vpack.c.b16 %v3829, %v3828
  %v3891 = vpack.c.b16 %v3831, %v3830
  %v3892 = vpack.c.b16 %v3833, %v3832
  %v3893 = vpack.c.b16 %v3835, %v3834
  %v3894 = vpack.c.b16 %v3837, %v3836
  %v3895 = vpack.c.b16 %v3839, %v3838
  %v3896 = vpack.c.b16 %v3841, %v3840
  %v3897 = vpack.c.b16 %v3843, %v3842
  %v3898 = vpack.c.b16 %v3845, %v3844
  %v3899 = vpack.c.b16 %v3847, %v3846
  %v3900 = vpack.c.b16 %v3849, %v3848
  %v3901 = vpack.c.b16 %v3851, %v3850
  %v3902 = vpack.c.b16 %v3853, %v3852
  %v3903 = vpack.c.b16 %v3855, %v3854
  %3952 = vmatprep.subr.bf16.mxu0 0
  %3953 = vmatpush1.bf16.msra.mxu0 %v3856
  %3954 = vmatprep.subr.bf16.mxu0 0
  %3955 = vmatpush1.bf16.msra.mxu0 %v3857
  %3956 = vmatprep.subr.bf16.mxu0 0
  %3957 = vmatpush1.bf16.msra.mxu0 %v3858
  %3958 = vmatprep.subr.bf16.mxu0 0
  %3959 = vmatpush1.bf16.msra.mxu0 %v3859
  %3960 = vmatprep.subr.bf16.mxu0 0
  %3961 = vmatpush1.bf16.msra.mxu0 %v3860
  %3962 = vmatprep.subr.bf16.mxu0 0
  %3963 = vmatpush1.bf16.msra.mxu0 %v3861
  %3964 = vmatprep.subr.bf16.mxu0 0
  %3965 = vmatpush1.bf16.msra.mxu0 %v3862
  %3966 = vmatprep.subr.bf16.mxu0 0
  %3967 = vmatpush1.bf16.msra.mxu0 %v3863
  %3968 = vmatprep.subr.bf16.mxu0 0
  %3969 = vmatpush1.bf16.msra.mxu0 %v3864
  %3970 = vmatprep.subr.bf16.mxu0 0
  %3971 = vmatpush1.bf16.msra.mxu0 %v3865
  %3972 = vmatprep.subr.bf16.mxu0 0
  %3973 = vmatpush1.bf16.msra.mxu0 %v3866
  %3974 = vmatprep.subr.bf16.mxu0 0
  %3975 = vmatpush1.bf16.msra.mxu0 %v3867
  %3976 = vmatprep.subr.bf16.mxu0 0
  %3977 = vmatpush1.bf16.msra.mxu0 %v3868
  %3978 = vmatprep.subr.bf16.mxu0 0
  %3979 = vmatpush1.bf16.msra.mxu0 %v3869
  %3980 = vmatprep.subr.bf16.mxu0 0
  %3981 = vmatpush1.bf16.msra.mxu0 %v3870
  %3982 = vmatprep.subr.bf16.mxu0 0
  %3983 = vmatpush1.bf16.msra.mxu0 %v3871
  %3984 = vmatprep.mubr.bf16.mxu0 %v3049
  %3985 = vmatmul.mubr.bf16.gmra.mrb[0].mxu0 %v3048
  %v3986 = vpop.f32.mrb[0].mxu0
  %v3987 = vadd.f32 %v3658, %v3986
  %v3988 = vpop.f32.mrb[0].mxu0
  %v3989 = vpop.f32.mrb[0].mxu0
  %v3990 = vadd.f32 %v3661, %v3989
  %v3991 = vpop.f32.mrb[0].mxu0
  %3992 = vdwg.mxu0
  %3993 = vmatprep.subr.bf16.mxu0 0
  %3994 = vmatpush1.bf16.msra.mxu0 %v3872
  %3995 = vmatprep.subr.bf16.mxu0 0
  %3996 = vmatpush1.bf16.msra.mxu0 %v3873
  %3997 = vmatprep.subr.bf16.mxu0 0
  %3998 = vmatpush1.bf16.msra.mxu0 %v3874
  %3999 = vmatprep.subr.bf16.mxu0 0
  %4000 = vmatpush1.bf16.msra.mxu0 %v3875
  %4001 = vmatprep.subr.bf16.mxu0 0
  %4002 = vmatpush1.bf16.msra.mxu0 %v3876
  %4003 = vmatprep.subr.bf16.mxu0 0
  %4004 = vmatpush1.bf16.msra.mxu0 %v3877
  %4005 = vmatprep.subr.bf16.mxu0 0
  %4006 = vmatpush1.bf16.msra.mxu0 %v3878
  %4007 = vmatprep.subr.bf16.mxu0 0
  %4008 = vmatpush1.bf16.msra.mxu0 %v3879
  %4009 = vmatprep.subr.bf16.mxu0 0
  %4010 = vmatpush1.bf16.msra.mxu0 %v3880
  %4011 = vmatprep.subr.bf16.mxu0 0
  %4012 = vmatpush1.bf16.msra.mxu0 %v3881
  %4013 = vmatprep.subr.bf16.mxu0 0
  %4014 = vmatpush1.bf16.msra.mxu0 %v3882
  %4015 = vmatprep.subr.bf16.mxu0 0
  %4016 = vmatpush1.bf16.msra.mxu0 %v3883
  %4017 = vmatprep.subr.bf16.mxu0 0
  %4018 = vmatpush1.bf16.msra.mxu0 %v3884
  %4019 = vmatprep.subr.bf16.mxu0 0
  %4020 = vmatpush1.bf16.msra.mxu0 %v3885
  %4021 = vmatprep.subr.bf16.mxu0 0
  %4022 = vmatpush1.bf16.msra.mxu0 %v3886
  %4023 = vmatprep.subr.bf16.mxu0 0
  %4024 = vmatpush1.bf16.msra.mxu0 %v3887
  %4025 = vmatprep.mubr.bf16.mxu0 %v3051
  %4026 = vmatmul.mubr.bf16.gmra.mrb[0].mxu0 %v3050
  %v4027 = vpop.f32.mrb[0].mxu0
  %v4028 = vadd.f32 %v3987, %v4027
  %v4029 = vpop.f32.mrb[0].mxu0
  %v4030 = vpop.f32.mrb[0].mxu0
  %v4031 = vadd.f32 %v3990, %v4030
  %v4032 = vpop.f32.mrb[0].mxu0
  %4033 = vdwg.mxu0
  %4034 = vmatprep.subr.bf16.mxu0 0
  %4035 = vmatpush1.bf16.msra.mxu0 %v3888
  %4036 = vmatprep.subr.bf16.mxu0 0
  %4037 = vmatpush1.bf16.msra.mxu0 %v3889
  %4038 = vmatprep.subr.bf16.mxu0 0
  %4039 = vmatpush1.bf16.msra.mxu0 %v3890
  %4040 = vmatprep.subr.bf16.mxu0 0
  %4041 = vmatpush1.bf16.msra.mxu0 %v3891
  %4042 = vmatprep.subr.bf16.mxu0 0
  %4043 = vmatpush1.bf16.msra.mxu0 %v3892
  %4044 = vmatprep.subr.bf16.mxu0 0
  %4045 = vmatpush1.bf16.msra.mxu0 %v3893
  %4046 = vmatprep.subr.bf16.mxu0 0
  %4047 = vmatpush1.bf16.msra.mxu0 %v3894
  %4048 = vmatprep.subr.bf16.mxu0 0
  %4049 = vmatpush1.bf16.msra.mxu0 %v3895
  %4050 = vmatprep.subr.bf16.mxu0 0
  %4051 = vmatpush1.bf16.msra.mxu0 %v3896
  %4052 = vmatprep.subr.bf16.mxu0 0
  %4053 = vmatpush1.bf16.msra.mxu0 %v3897
  %4054 = vmatprep.subr.bf16.mxu0 0
  %4055 = vmatpush1.bf16.msra.mxu0 %v3898
  %4056 = vmatprep.subr.bf16.mxu0 0
  %4057 = vmatpush1.bf16.msra.mxu0 %v3899
  %4058 = vmatprep.subr.bf16.mxu0 0
  %4059 = vmatpush1.bf16.msra.mxu0 %v3900
  %4060 = vmatprep.subr.bf16.mxu0 0
  %4061 = vmatpush1.bf16.msra.mxu0 %v3901
  %4062 = vmatprep.subr.bf16.mxu0 0
  %4063 = vmatpush1.bf16.msra.mxu0 %v3902
  %4064 = vmatprep.subr.bf16.mxu0 0
  %4065 = vmatpush1.bf16.msra.mxu0 %v3903
  %4066 = vmatprep.mubr.bf16.mxu0 %v3053
  %4067 = vmatmul.mubr.bf16.gmra.mrb[0].mxu0 %v3052
  %v4068 = vpop.f32.mrb[0].mxu0
  %v4069 = vadd.f32 %v4028, %v4068
  %v4070 = vpop.f32.mrb[0].mxu0
  %v4071 = vpop.f32.mrb[0].mxu0
  %v4072 = vadd.f32 %v4031, %v4071
  %v4073 = vpop.f32.mrb[0].mxu0
  %4074 = vdwg.mxu0
  %v4075 = vld [vmem:[%s6] sm:$0x1]
  %v4077 = vlaneseq
  %v4078 = vshrl.u32 %v4077, 7
  %v4079 = vsub.s32 0, %v4078
  %v4080 = vrot.slane %v4075, %v4079
  %v4082 = vadd.f32 %v4069, %v4080
  %v4083 = vadd.f32 %v4072, %v4080
  %4084 = vmax.xlane.f32.xlu0 %v4082
  %v4085 = vpop.xlane.xlu0 %4084
  %4086 = vmax.xlane.f32.xlu0 %v4083
  %v4087 = vpop.xlane.xlu0 %4086
  %v4088 = vsub.f32 %v4082, %v4085
  %v4089 = vsub.f32 %v4083, %v4087
  %v4090 = vmul.f32 %v4088, 1.442695
  %v4091 = vpow.pop %v4090
  %v4092 = vmul.f32 %v4089, 1.442695
  %v4093 = vpow.pop %v4092
  %4094 = vadd.xlane.f32.xlu0 %v4091
  %v4095 = vpop.xlane.xlu0 %4094
  %4096 = vadd.xlane.f32.xlu0 %v4093
  %v4097 = vpop.xlane.xlu0 %4096
  %v4098 = vrcp.pop %v4095
  %v4099 = vmul.f32 %v4091, %v4098
  %v4100 = vrcp.pop %v4097
  %v4101 = vmul.f32 %v4093, %v4100
  %4102 = vst [vmem:[%s7] sm:$0xff] %v4099
  %4103 = vst [vmem:[%s7 + $0x8] sm:$0xff] %v4101
  // Predicated region
  $region30: #{rede_legal_forward.3} parent=0 // pred_check
    _
  $region31: #{rede_legal_forward.3} parent=0 // pred_check_branch
    %4105 = sbr.rel (0) target = $region33
  $region32: #{rede_legal_forward.3} parent=0 // pred_region
    _
  $region33: #{rede_legal_forward.3} parent=0 // pred_fallthru
    _
  // Predicated region
  $region34: #{rede_legal_forward.3} parent=0 // pred_check
    _
  $region35: #{rede_legal_forward.3} parent=0 // pred_check_branch
    %4107 = sbr.rel (0) target = $region37
  $region36: #{rede_legal_forward.3} parent=0 // pred_region
    _
  $region37: #{rede_legal_forward.3} parent=0 // pred_fallthru
    _

</llo_original>
